<compile_context>
chip_gen: v6e
topology: v6e:2x2x1
jax: 0.10.0
libtpu: 0.0.40
codegen_flags: <defaults>
</compile_context>

<pallas_src>
import functools

import jax
import jax.numpy as jnp
from jax import lax
from jax.experimental import pallas as pl
from jax.experimental.pallas import tpu as pltpu


def _erf(x):
    # Abramowitz & Stegun 7.1.26 rational approximation (|err| <= 1.5e-7).
    # Keeps nn.GELU()'s exact-erf semantics without relying on a lax.erf
    # lowering inside Mosaic; only exp / divide / where are needed.
    a1, a2, a3, a4, a5 = (0.254829592, -0.284496736, 1.421413741,
                          -1.453152027, 1.061405429)
    p = 0.3275911
    sgn = jnp.where(x >= 0.0, 1.0, -1.0)
    ax = jnp.abs(x)
    t = 1.0 / (1.0 + p * ax)
    poly = ((((a5 * t + a4) * t + a3) * t + a2) * t + a1) * t
    return sgn * (1.0 - poly * jnp.exp(-ax * ax))


def _gelu(x):
    # Exact (erf-based) GELU, matching torch.nn.GELU() defaults.
    return 0.5 * x * (1.0 + _erf(x * 0.7071067811865476))


def _sgfn_kernel(x_ref, w1_ref, b1_ref, gam_ref, bet_ref, wc_ref, bc_ref,
                 msk_ref, w2_ref, b2_ref, o_ref, *, W, Cg, eps):
    Bt, N, C = x_ref.shape
    M = Bt * N                                     # flattened batch*spatial (lanes)

    # ---- fc1 + GELU -------------------------------------------------------
    # Transpose once so every later elementwise op is lane-dense (spatial on
    # lanes, channels on sublanes).
    x = x_ref[...].astype(jnp.float32).reshape(M, C)
    xt = x.T                                                         # (C, M)
    h = jnp.dot(w1_ref[...], xt,
                preferred_element_type=jnp.float32,
                precision=lax.Precision.HIGHEST) + b1_ref[...]       # (2*Cg, M)
    h = _gelu(h)

    # ---- SpatialGate ------------------------------------------------------
    x1 = h[:Cg, :]                                 # gate half          (Cg, M)
    x2 = h[Cg:, :]                                 # conv half          (Cg, M)

    # LayerNorm over channels == sublane-axis reduction (not cross-lane).
    mean = jnp.mean(x2, axis=0, keepdims=True)
    xc = x2 - mean
    var = jnp.mean(xc * xc, axis=0, keepdims=True)
    x2n = xc * lax.rsqrt(var + eps) * gam_ref[...] + bet_ref[...]

    # 3x3 depthwise conv: 9 lane-rolls + edge masks (no padded scratch).
    # mw[k] = per-channel weight * 0/1 validity mask, hoisted out of the loop.
    mw = msk_ref[...][:, None, :] * wc_ref[...]    # (9, Cg, M)
    acc = None
    k = 0
    for dh in (-1, 0, 1):
        for dw in (-1, 0, 1):
            s = dh * W + dw                        # flat-index offset of the tap
            tap = x2n if s == 0 else pltpu.roll(x2n, (-s) % M, axis=1)
            term = tap * mw[k]
            acc = term if acc is None else acc + term
            k += 1
    conv = acc + bc_ref[...]                       # (Cg, M)
    gated = x1 * conv                              # spatial gate x1 * conv(norm(x2))

    # ---- fc2 --------------------------------------------------------------
    out_t = jnp.dot(w2_ref[...], gated,
                    preferred_element_type=jnp.float32,
                    precision=lax.Precision.HIGHEST) + b2_ref[...]   # (C_out, M)
    o_ref[...] = out_t.T.reshape(Bt, N, -1).astype(o_ref.dtype)


def _pick_block_b(B, N, C, hidden):
    """Largest batch tile whose activation footprint stays ~2 MiB, preferring
    >= 2 grid steps so the 'parallel' batch axis can shard across TensorCores
    (v7x megacore)."""
    budget = 2 << 20
    per = N * (C + 3 * hidden) * 4                 # rough f32 live bytes / element
    cands = [d for d in range(1, B + 1) if B % d == 0 and d * per <= budget]
    if not cands:
        return 1
    two_step = [d for d in cands if B // d >= 2]
    return max(two_step) if two_step else max(cands)


def _edge_masks(H, W, block_b):
    """(9, block_b*H*W) float 0/1 validity masks for the 9 conv taps."""
    h_idx = jnp.repeat(jnp.arange(H), W)
    w_idx = jnp.tile(jnp.arange(W), H)
    rows = []
    for dh in (-1, 0, 1):
        for dw in (-1, 0, 1):
            ok = ((h_idx + dh >= 0) & (h_idx + dh < H) &
                  (w_idx + dw >= 0) & (w_idx + dw < W))
            rows.append(ok)
    masks = jnp.stack(rows).astype(jnp.float32)    # (9, H*W)
    return jnp.tile(masks, (1, block_b))           # (9, block_b*H*W)


def sgfn_forward(x, w1, b1, gamma, beta, conv_w, conv_b, w2, b2,
                 *, eps=1e-5, block_b=None):
    """Fused SGFN forward.

    x:          (B, H, W, C)
    w1, b1:     (C, hidden), (hidden,)              fc1
    gamma/beta: (hidden//2,)                        LayerNorm in SpatialGate
    conv_w:     (hidden//2, 1, 3, 3)                depthwise conv (PyTorch layout)
    conv_b:     (hidden//2,)
    w2, b2:     (hidden//2, C_out), (C_out,)        fc2
    returns     (B, H, W, C_out)
    """
    B, H, W, C = x.shape
    N = H * W
    hidden = w1.shape[1]
    Cg = hidden // 2
    C_out = w2.shape[1]

    Bt = block_b or _pick_block_b(B, N, C, hidden)
    assert B % Bt == 0
    M = Bt * N

    f32 = jnp.float32
    w1t = w1.T.astype(f32)                                  # (hidden, C)
    b1c = b1.reshape(hidden, 1).astype(f32)
    gam = gamma.reshape(Cg, 1).astype(f32)
    bet = beta.reshape(Cg, 1).astype(f32)
    wc9 = conv_w.reshape(Cg, 9).T.reshape(9, Cg, 1).astype(f32)   # [kh*3+kw, c, 1]
    bcc = conv_b.reshape(Cg, 1).astype(f32)
    w2t = w2.T.astype(f32)                                  # (C_out, Cg)
    b2c = b2.reshape(C_out, 1).astype(f32)
    masks = _edge_masks(H, W, Bt)                           # (9, M)

    kernel = functools.partial(_sgfn_kernel, W=W, Cg=Cg, eps=eps)

    # TODO(synk): for very large H*W*C (v7x: 64 MiB VMEM) add an H-tile grid
    # axis with a 1-row halo instead of processing a whole image per step.
    out = pl.pallas_call(
        kernel,
        out_shape=jax.ShapeDtypeStruct((B, N, C_out), x.dtype),
        grid_spec=pltpu.PrefetchScalarGridSpec(
            num_scalar_prefetch=0,
            grid=(B // Bt,),
            in_specs=[
                pl.BlockSpec((Bt, N, C), lambda i: (i, 0, 0)),       # x
                pl.BlockSpec((hidden, C), lambda i: (0, 0)),         # fc1 w^T
                pl.BlockSpec((hidden, 1), lambda i: (0, 0)),         # fc1 b
                pl.BlockSpec((Cg, 1), lambda i: (0, 0)),             # ln gamma
                pl.BlockSpec((Cg, 1), lambda i: (0, 0)),             # ln beta
                pl.BlockSpec((9, Cg, 1), lambda i: (0, 0, 0)),       # conv w
                pl.BlockSpec((Cg, 1), lambda i: (0, 0)),             # conv b
                pl.BlockSpec((9, M), lambda i: (0, 0)),              # edge masks
                pl.BlockSpec((C_out, Cg), lambda i: (0, 0)),         # fc2 w^T
                pl.BlockSpec((C_out, 1), lambda i: (0, 0)),          # fc2 b
            ],
            out_specs=pl.BlockSpec((Bt, N, C_out), lambda i: (i, 0, 0)),
        ),
        compiler_params=pltpu.CompilerParams(
            dimension_semantics=("parallel",)),
    )(x.reshape(B, N, C), w1t, b1c, gam, bet, wc9, bcc, masks, w2t, b2c)

    # TODO(synk): dropout (p=0.0 default / eval mode) is an identity and is
    # omitted; training-time dropout would use pltpu.prng_* masking.
    return out.reshape(B, H, W, C_out)


def ref_sgfn(x, w1, b1, gamma, beta, conv_w, conv_b, w2, b2, eps=1e-5):
    """Pure-JAX reference matching PyTorch SGFN.forward (drop=0.0)."""
    B, H, W, C = x.shape
    N = H * W
    Cg = w1.shape[1] // 2
    xs = x.reshape(B, N, C)
    h = jnp.dot(xs, w1, precision=lax.Precision.HIGHEST) + b1
    h = jax.nn.gelu(h, approximate=False)           # exact GELU (erf), as nn.GELU()
    x1, x2 = h[..., :Cg], h[..., Cg:]
    mean = jnp.mean(x2, axis=-1, keepdims=True)
    var = jnp.mean((x2 - mean) ** 2, axis=-1, keepdims=True)
    x2n = (x2 - mean) / jnp.sqrt(var + eps) * gamma + beta
    img = x2n.reshape(B, H, W, Cg)
    w_hwio = jnp.transpose(conv_w, (2, 3, 1, 0))    # (3, 3, 1, Cg)
    conv = lax.conv_general_dilated(
        img, w_hwio, window_strides=(1, 1), padding="SAME",
        dimension_numbers=("NHWC", "HWIO", "NHWC"),
        feature_group_count=Cg) + conv_b
    gated = x1 * conv.reshape(B, N, Cg)
    out = jnp.dot(gated, w2, precision=lax.Precision.HIGHEST) + b2
    return out.reshape(B, H, W, -1)


if __name__ == "__main__":
    B, H, W = 2, 16, 16
    C = 32                      # in_features == out_features
    hidden = 64                 # hidden_features; SpatialGate dim = hidden // 2
    Cg = hidden // 2

    key = jax.random.PRNGKey(0)
    ks = jax.random.split(key, 9)
    x = jax.random.normal(ks[0], (B, H, W, C), jnp.float32)
    w1 = 0.2 * jax.random.normal(ks[1], (C, hidden), jnp.float32)
    b1 = 0.1 * jax.random.normal(ks[2], (hidden,), jnp.float32)
    gamma = 1.0 + 0.1 * jax.random.normal(ks[3], (Cg,), jnp.float32)
    beta = 0.1 * jax.random.normal(ks[4], (Cg,), jnp.float32)
    conv_w = 0.2 * jax.random.normal(ks[5], (Cg, 1, 3, 3), jnp.float32)
    conv_b = 0.1 * jax.random.normal(ks[6], (Cg,), jnp.float32)
    w2 = 0.2 * jax.random.normal(ks[7], (Cg, C), jnp.float32)
    b2 = 0.1 * jax.random.normal(ks[8], (C,), jnp.float32)

    out = sgfn_forward(x, w1, b1, gamma, beta, conv_w, conv_b, w2, b2)
    out = jax.block_until_ready(out)

    ref = ref_sgfn(x, w1, b1, gamma, beta, conv_w, conv_b, w2, b2)
    assert out.shape == (B, H, W, C), out.shape
    max_err = float(jnp.max(jnp.abs(out - ref)))
    assert max_err < 2e-3, f"mismatch vs reference: {max_err}"

    print("KERNEL_OK")
</pallas_src>

<mosaic_0001>
module attributes {stable_mosaic.version = 11 : i64} {
  func.func @_sgfn_kernel(%arg0: i32, %arg1: memref<1x256x32xf32, #tpu.memory_space<vmem>>, %arg2: memref<64x32xf32, #tpu.memory_space<vmem>>, %arg3: memref<64x1xf32, #tpu.memory_space<vmem>>, %arg4: memref<32x1xf32, #tpu.memory_space<vmem>>, %arg5: memref<32x1xf32, #tpu.memory_space<vmem>>, %arg6: memref<9x32x1xf32, #tpu.memory_space<vmem>>, %arg7: memref<32x1xf32, #tpu.memory_space<vmem>>, %arg8: memref<9x256xf32, #tpu.memory_space<vmem>>, %arg9: memref<32x32xf32, #tpu.memory_space<vmem>>, %arg10: memref<32x1xf32, #tpu.memory_space<vmem>>, %arg11: memref<1x256x32xf32, #tpu.memory_space<vmem>>) attributes {dimension_semantics = [#tpu.dimension_semantics<parallel>], iteration_bounds = array<i64: 2>, scalar_prefetch = 0 : i64, scratch_operands = 0 : i64, tpu.core_type = #tpu.core_type<tc>, window_params = [{transform_indices = @transform_0, window_bounds = array<i64: 1, 256, 32>}, {pipeline_mode = #tpu.pipeline_mode<synchronous>, transform_indices = @transform_1, window_bounds = array<i64: 64, 32>}, {pipeline_mode = #tpu.pipeline_mode<synchronous>, transform_indices = @transform_2, window_bounds = array<i64: 64, 1>}, {pipeline_mode = #tpu.pipeline_mode<synchronous>, transform_indices = @transform_3, window_bounds = array<i64: 32, 1>}, {pipeline_mode = #tpu.pipeline_mode<synchronous>, transform_indices = @transform_4, window_bounds = array<i64: 32, 1>}, {pipeline_mode = #tpu.pipeline_mode<synchronous>, transform_indices = @transform_5, window_bounds = array<i64: 9, 32, 1>}, {pipeline_mode = #tpu.pipeline_mode<synchronous>, transform_indices = @transform_6, window_bounds = array<i64: 32, 1>}, {pipeline_mode = #tpu.pipeline_mode<synchronous>, transform_indices = @transform_7, window_bounds = array<i64: 9, 256>}, {pipeline_mode = #tpu.pipeline_mode<synchronous>, transform_indices = @transform_8, window_bounds = array<i64: 32, 32>}, {pipeline_mode = #tpu.pipeline_mode<synchronous>, transform_indices = @transform_9, window_bounds = array<i64: 32, 1>}, {transform_indices = @transform_10, window_bounds = array<i64: 1, 256, 32>}]} {
    %c0 = arith.constant 0 : index
    %c0_0 = arith.constant 0 : index
    %c0_1 = arith.constant 0 : index
    %0 = vector.load %arg1[%c0, %c0_0, %c0_1] : memref<1x256x32xf32, #tpu.memory_space<vmem>>, vector<1x256x32xf32>
    %1 = vector.shape_cast %0 : vector<1x256x32xf32> to vector<256x32xf32>
    %2 = tpu.transpose %1, [1, 0] : vector<256x32xf32> -> vector<32x256xf32>
    %c0_2 = arith.constant 0 : index
    %c0_3 = arith.constant 0 : index
    %3 = vector.load %arg2[%c0_2, %c0_3] : memref<64x32xf32, #tpu.memory_space<vmem>>, vector<64x32xf32>
    %cst = arith.constant dense<0.000000e+00> : vector<64x256xf32>
    %4 = tpu.matmul %3, %2, %cst {dimension_numbers = #tpu.dot_dimension_numbers<[1], [0], [0], [1], [0, 0, 1, 1], [], []>, precision = #tpu.contract_precision<fp32>} : vector<64x32xf32>, vector<32x256xf32>, vector<64x256xf32> -> vector<64x256xf32>
    %c0_4 = arith.constant 0 : index
    %c0_5 = arith.constant 0 : index
    %5 = vector.load %arg3[%c0_4, %c0_5] : memref<64x1xf32, #tpu.memory_space<vmem>>, vector<64x1xf32>
    %6 = vector.broadcast %5 : vector<64x1xf32> to vector<64x256xf32>
    %7 = arith.addf %4, %6 : vector<64x256xf32>
    %cst_6 = arith.constant 5.000000e-01 : f32
    %8 = vector.broadcast %cst_6 : f32 to vector<64x256xf32>
    %9 = arith.mulf %8, %7 : vector<64x256xf32>
    %cst_7 = arith.constant 0.707106769 : f32
    %10 = vector.broadcast %cst_7 : f32 to vector<64x256xf32>
    %11 = arith.mulf %7, %10 : vector<64x256xf32>
    %cst_8 = arith.constant 0.000000e+00 : f32
    %12 = vector.broadcast %cst_8 : f32 to vector<64x256xf32>
    %13 = arith.cmpf oge, %11, %12 : vector<64x256xf32>
    %cst_9 = arith.constant 1.000000e+00 : f32
    %cst_10 = arith.constant -1.000000e+00 : f32
    %14 = vector.broadcast %cst_9 : f32 to vector<64x256xf32>
    %15 = vector.broadcast %cst_10 : f32 to vector<64x256xf32>
    %16 = arith.select %13, %14, %15 : vector<64x256xi1>, vector<64x256xf32>
    %17 = math.absf %11 : vector<64x256xf32>
    %cst_11 = arith.constant 0.327591091 : f32
    %18 = vector.broadcast %cst_11 : f32 to vector<64x256xf32>
    %19 = arith.mulf %18, %17 : vector<64x256xf32>
    %cst_12 = arith.constant 1.000000e+00 : f32
    %20 = vector.broadcast %cst_12 : f32 to vector<64x256xf32>
    %21 = arith.addf %20, %19 : vector<64x256xf32>
    %cst_13 = arith.constant 1.000000e+00 : f32
    %22 = vector.broadcast %cst_13 : f32 to vector<64x256xf32>
    %23 = arith.divf %22, %21 : vector<64x256xf32>
    %cst_14 = arith.constant 1.06140542 : f32
    %24 = vector.broadcast %cst_14 : f32 to vector<64x256xf32>
    %25 = arith.mulf %24, %23 : vector<64x256xf32>
    %cst_15 = arith.constant -1.45315206 : f32
    %26 = vector.broadcast %cst_15 : f32 to vector<64x256xf32>
    %27 = arith.addf %25, %26 : vector<64x256xf32>
    %28 = arith.mulf %27, %23 : vector<64x256xf32>
    %cst_16 = arith.constant 1.42141378 : f32
    %29 = vector.broadcast %cst_16 : f32 to vector<64x256xf32>
    %30 = arith.addf %28, %29 : vector<64x256xf32>
    %31 = arith.mulf %30, %23 : vector<64x256xf32>
    %cst_17 = arith.constant -0.284496725 : f32
    %32 = vector.broadcast %cst_17 : f32 to vector<64x256xf32>
    %33 = arith.addf %31, %32 : vector<64x256xf32>
    %34 = arith.mulf %33, %23 : vector<64x256xf32>
    %cst_18 = arith.constant 0.254829586 : f32
    %35 = vector.broadcast %cst_18 : f32 to vector<64x256xf32>
    %36 = arith.addf %34, %35 : vector<64x256xf32>
    %37 = arith.mulf %36, %23 : vector<64x256xf32>
    %cst_19 = arith.constant 0.000000e+00 : f32
    %38 = vector.broadcast %cst_19 : f32 to vector<64x256xf32>
    %39 = arith.subf %38, %17 : vector<64x256xf32>
    %40 = arith.mulf %39, %17 : vector<64x256xf32>
    %41 = math.exp %40 : vector<64x256xf32>
    %42 = arith.mulf %37, %41 : vector<64x256xf32>
    %cst_20 = arith.constant 1.000000e+00 : f32
    %43 = vector.broadcast %cst_20 : f32 to vector<64x256xf32>
    %44 = arith.subf %43, %42 : vector<64x256xf32>
    %45 = arith.mulf %16, %44 : vector<64x256xf32>
    %cst_21 = arith.constant 1.000000e+00 : f32
    %46 = vector.broadcast %cst_21 : f32 to vector<64x256xf32>
    %47 = arith.addf %46, %45 : vector<64x256xf32>
    %48 = arith.mulf %9, %47 : vector<64x256xf32>
    %49 = vector.extract_strided_slice %48 {offsets = [0, 0], sizes = [32, 256], strides = [1, 1]} : vector<64x256xf32> to vector<32x256xf32>
    %50 = vector.extract_strided_slice %48 {offsets = [32, 0], sizes = [32, 256], strides = [1, 1]} : vector<64x256xf32> to vector<32x256xf32>
    %cst_22 = arith.constant dense<0.000000e+00> : vector<256xf32>
    %51 = vector.multi_reduction <add>, %50, %cst_22 [0] : vector<32x256xf32> to vector<256xf32>
    %52 = vector.shape_cast %51 : vector<256xf32> to vector<1x256xf32>
    %cst_23 = arith.constant 3.200000e+01 : f32
    %53 = vector.broadcast %cst_23 : f32 to vector<1x256xf32>
    %54 = arith.divf %52, %53 : vector<1x256xf32>
    %55 = vector.broadcast %54 : vector<1x256xf32> to vector<32x256xf32>
    %56 = arith.subf %50, %55 : vector<32x256xf32>
    %57 = arith.mulf %56, %56 : vector<32x256xf32>
    %cst_24 = arith.constant dense<0.000000e+00> : vector<256xf32>
    %58 = vector.multi_reduction <add>, %57, %cst_24 [0] : vector<32x256xf32> to vector<256xf32>
    %59 = vector.shape_cast %58 : vector<256xf32> to vector<1x256xf32>
    %cst_25 = arith.constant 3.200000e+01 : f32
    %60 = vector.broadcast %cst_25 : f32 to vector<1x256xf32>
    %61 = arith.divf %59, %60 : vector<1x256xf32>
    %cst_26 = arith.constant 9.99999974E-6 : f32
    %62 = vector.broadcast %cst_26 : f32 to vector<1x256xf32>
    %63 = arith.addf %61, %62 : vector<1x256xf32>
    %64 = math.rsqrt %63 : vector<1x256xf32>
    %65 = vector.broadcast %64 : vector<1x256xf32> to vector<32x256xf32>
    %66 = arith.mulf %56, %65 : vector<32x256xf32>
    %c0_27 = arith.constant 0 : index
    %c0_28 = arith.constant 0 : index
    %67 = vector.load %arg4[%c0_27, %c0_28] : memref<32x1xf32, #tpu.memory_space<vmem>>, vector<32x1xf32>
    %68 = vector.broadcast %67 : vector<32x1xf32> to vector<32x256xf32>
    %69 = arith.mulf %66, %68 : vector<32x256xf32>
    %c0_29 = arith.constant 0 : index
    %c0_30 = arith.constant 0 : index
    %70 = vector.load %arg5[%c0_29, %c0_30] : memref<32x1xf32, #tpu.memory_space<vmem>>, vector<32x1xf32>
    %71 = vector.broadcast %70 : vector<32x1xf32> to vector<32x256xf32>
    %72 = arith.addf %69, %71 : vector<32x256xf32>
    %c0_31 = arith.constant 0 : index
    %c0_32 = arith.constant 0 : index
    %73 = vector.load %arg8[%c0_31, %c0_32] : memref<9x256xf32, #tpu.memory_space<vmem>>, vector<9x256xf32>
    %74 = vector.shape_cast %73 : vector<9x256xf32> to vector<9x1x256xf32>
    %c0_33 = arith.constant 0 : index
    %c0_34 = arith.constant 0 : index
    %c0_35 = arith.constant 0 : index
    %75 = vector.load %arg6[%c0_33, %c0_34, %c0_35] : memref<9x32x1xf32, #tpu.memory_space<vmem>>, vector<9x32x1xf32>
    %76 = vector.broadcast %74 : vector<9x1x256xf32> to vector<9x32x256xf32>
    %77 = vector.broadcast %75 : vector<9x32x1xf32> to vector<9x32x256xf32>
    %78 = arith.mulf %76, %77 : vector<9x32x256xf32>
    %c17_i32 = arith.constant 17 : i32
    %79 = tpu.dynamic_rotate %72 by %c17_i32 dim 1 : vector<32x256xf32>, i32 -> vector<32x256xf32>
    %80 = vector.extract_strided_slice %78 {offsets = [0, 0, 0], sizes = [1, 32, 256], strides = [1, 1, 1]} : vector<9x32x256xf32> to vector<1x32x256xf32>
    %81 = vector.shape_cast %80 : vector<1x32x256xf32> to vector<32x256xf32>
    %82 = arith.mulf %79, %81 : vector<32x256xf32>
    %c16_i32 = arith.constant 16 : i32
    %83 = tpu.dynamic_rotate %72 by %c16_i32 dim 1 : vector<32x256xf32>, i32 -> vector<32x256xf32>
    %84 = vector.extract_strided_slice %78 {offsets = [1, 0, 0], sizes = [1, 32, 256], strides = [1, 1, 1]} : vector<9x32x256xf32> to vector<1x32x256xf32>
    %85 = vector.shape_cast %84 : vector<1x32x256xf32> to vector<32x256xf32>
    %86 = arith.mulf %83, %85 : vector<32x256xf32>
    %87 = arith.addf %82, %86 : vector<32x256xf32>
    %c15_i32 = arith.constant 15 : i32
    %88 = tpu.dynamic_rotate %72 by %c15_i32 dim 1 : vector<32x256xf32>, i32 -> vector<32x256xf32>
    %89 = vector.extract_strided_slice %78 {offsets = [2, 0, 0], sizes = [1, 32, 256], strides = [1, 1, 1]} : vector<9x32x256xf32> to vector<1x32x256xf32>
    %90 = vector.shape_cast %89 : vector<1x32x256xf32> to vector<32x256xf32>
    %91 = arith.mulf %88, %90 : vector<32x256xf32>
    %92 = arith.addf %87, %91 : vector<32x256xf32>
    %c1_i32 = arith.constant 1 : i32
    %93 = tpu.dynamic_rotate %72 by %c1_i32 dim 1 : vector<32x256xf32>, i32 -> vector<32x256xf32>
    %94 = vector.extract_strided_slice %78 {offsets = [3, 0, 0], sizes = [1, 32, 256], strides = [1, 1, 1]} : vector<9x32x256xf32> to vector<1x32x256xf32>
    %95 = vector.shape_cast %94 : vector<1x32x256xf32> to vector<32x256xf32>
    %96 = arith.mulf %93, %95 : vector<32x256xf32>
    %97 = arith.addf %92, %96 : vector<32x256xf32>
    %98 = vector.extract_strided_slice %78 {offsets = [4, 0, 0], sizes = [1, 32, 256], strides = [1, 1, 1]} : vector<9x32x256xf32> to vector<1x32x256xf32>
    %99 = vector.shape_cast %98 : vector<1x32x256xf32> to vector<32x256xf32>
    %100 = arith.mulf %72, %99 : vector<32x256xf32>
    %101 = arith.addf %97, %100 : vector<32x256xf32>
    %c255_i32 = arith.constant 255 : i32
    %102 = tpu.dynamic_rotate %72 by %c255_i32 dim 1 : vector<32x256xf32>, i32 -> vector<32x256xf32>
    %103 = vector.extract_strided_slice %78 {offsets = [5, 0, 0], sizes = [1, 32, 256], strides = [1, 1, 1]} : vector<9x32x256xf32> to vector<1x32x256xf32>
    %104 = vector.shape_cast %103 : vector<1x32x256xf32> to vector<32x256xf32>
    %105 = arith.mulf %102, %104 : vector<32x256xf32>
    %106 = arith.addf %101, %105 : vector<32x256xf32>
    %c241_i32 = arith.constant 241 : i32
    %107 = tpu.dynamic_rotate %72 by %c241_i32 dim 1 : vector<32x256xf32>, i32 -> vector<32x256xf32>
    %108 = vector.extract_strided_slice %78 {offsets = [6, 0, 0], sizes = [1, 32, 256], strides = [1, 1, 1]} : vector<9x32x256xf32> to vector<1x32x256xf32>
    %109 = vector.shape_cast %108 : vector<1x32x256xf32> to vector<32x256xf32>
    %110 = arith.mulf %107, %109 : vector<32x256xf32>
    %111 = arith.addf %106, %110 : vector<32x256xf32>
    %c240_i32 = arith.constant 240 : i32
    %112 = tpu.dynamic_rotate %72 by %c240_i32 dim 1 : vector<32x256xf32>, i32 -> vector<32x256xf32>
    %113 = vector.extract_strided_slice %78 {offsets = [7, 0, 0], sizes = [1, 32, 256], strides = [1, 1, 1]} : vector<9x32x256xf32> to vector<1x32x256xf32>
    %114 = vector.shape_cast %113 : vector<1x32x256xf32> to vector<32x256xf32>
    %115 = arith.mulf %112, %114 : vector<32x256xf32>
    %116 = arith.addf %111, %115 : vector<32x256xf32>
    %c239_i32 = arith.constant 239 : i32
    %117 = tpu.dynamic_rotate %72 by %c239_i32 dim 1 : vector<32x256xf32>, i32 -> vector<32x256xf32>
    %118 = vector.extract_strided_slice %78 {offsets = [8, 0, 0], sizes = [1, 32, 256], strides = [1, 1, 1]} : vector<9x32x256xf32> to vector<1x32x256xf32>
    %119 = vector.shape_cast %118 : vector<1x32x256xf32> to vector<32x256xf32>
    %120 = arith.mulf %117, %119 : vector<32x256xf32>
    %121 = arith.addf %116, %120 : vector<32x256xf32>
    %c0_36 = arith.constant 0 : index
    %c0_37 = arith.constant 0 : index
    %122 = vector.load %arg7[%c0_36, %c0_37] : memref<32x1xf32, #tpu.memory_space<vmem>>, vector<32x1xf32>
    %123 = vector.broadcast %122 : vector<32x1xf32> to vector<32x256xf32>
    %124 = arith.addf %121, %123 : vector<32x256xf32>
    %125 = arith.mulf %49, %124 : vector<32x256xf32>
    %c0_38 = arith.constant 0 : index
    %c0_39 = arith.constant 0 : index
    %126 = vector.load %arg9[%c0_38, %c0_39] : memref<32x32xf32, #tpu.memory_space<vmem>>, vector<32x32xf32>
    %cst_40 = arith.constant dense<0.000000e+00> : vector<32x256xf32>
    %127 = tpu.matmul %126, %125, %cst_40 {dimension_numbers = #tpu.dot_dimension_numbers<[1], [0], [0], [1], [0, 0, 1, 1], [], []>, precision = #tpu.contract_precision<fp32>} : vector<32x32xf32>, vector<32x256xf32>, vector<32x256xf32> -> vector<32x256xf32>
    %c0_41 = arith.constant 0 : index
    %c0_42 = arith.constant 0 : index
    %128 = vector.load %arg10[%c0_41, %c0_42] : memref<32x1xf32, #tpu.memory_space<vmem>>, vector<32x1xf32>
    %129 = vector.broadcast %128 : vector<32x1xf32> to vector<32x256xf32>
    %130 = arith.addf %127, %129 : vector<32x256xf32>
    %131 = tpu.transpose %130, [1, 0] : vector<32x256xf32> -> vector<256x32xf32>
    %132 = vector.shape_cast %131 : vector<256x32xf32> to vector<1x256x32xf32>
    %c0_43 = arith.constant 0 : index
    %c0_44 = arith.constant 0 : index
    %c0_45 = arith.constant 0 : index
    %133 = vector.load %arg11[%c0_43, %c0_44, %c0_45] : memref<1x256x32xf32, #tpu.memory_space<vmem>>, vector<1x256x32xf32>
    tpu.vector_store %arg11[%c0_43, %c0_44, %c0_45], %132 {strides = array<i32>} : memref<1x256x32xf32, #tpu.memory_space<vmem>>, vector<1x256x32xf32>,
    return
  }
  func.func @transform_0(%arg0: i32) -> (i32, i32, i32) {
    %c0_i32 = arith.constant 0 : i32
    %c0_i32_0 = arith.constant 0 : i32
    %c0_i32_1 = arith.constant 0 : i32
    return %arg0, %c0_i32, %c0_i32_0 : i32, i32, i32
  }
  func.func @transform_1(%arg0: i32) -> (i32, i32) {
    %c0_i32 = arith.constant 0 : i32
    %c0_i32_0 = arith.constant 0 : i32
    %c0_i32_1 = arith.constant 0 : i32
    return %c0_i32, %c0_i32_0 : i32, i32
  }
  func.func @transform_2(%arg0: i32) -> (i32, i32) {
    %c0_i32 = arith.constant 0 : i32
    %c0_i32_0 = arith.constant 0 : i32
    %c0_i32_1 = arith.constant 0 : i32
    return %c0_i32, %c0_i32_0 : i32, i32
  }
  func.func @transform_3(%arg0: i32) -> (i32, i32) {
    %c0_i32 = arith.constant 0 : i32
    %c0_i32_0 = arith.constant 0 : i32
    %c0_i32_1 = arith.constant 0 : i32
    return %c0_i32, %c0_i32_0 : i32, i32
  }
  func.func @transform_4(%arg0: i32) -> (i32, i32) {
    %c0_i32 = arith.constant 0 : i32
    %c0_i32_0 = arith.constant 0 : i32
    %c0_i32_1 = arith.constant 0 : i32
    return %c0_i32, %c0_i32_0 : i32, i32
  }
  func.func @transform_5(%arg0: i32) -> (i32, i32, i32) {
    %c0_i32 = arith.constant 0 : i32
    %c0_i32_0 = arith.constant 0 : i32
    %c0_i32_1 = arith.constant 0 : i32
    %c0_i32_2 = arith.constant 0 : i32
    return %c0_i32, %c0_i32_0, %c0_i32_1 : i32, i32, i32
  }
  func.func @transform_6(%arg0: i32) -> (i32, i32) {
    %c0_i32 = arith.constant 0 : i32
    %c0_i32_0 = arith.constant 0 : i32
    %c0_i32_1 = arith.constant 0 : i32
    return %c0_i32, %c0_i32_0 : i32, i32
  }
  func.func @transform_7(%arg0: i32) -> (i32, i32) {
    %c0_i32 = arith.constant 0 : i32
    %c0_i32_0 = arith.constant 0 : i32
    %c0_i32_1 = arith.constant 0 : i32
    return %c0_i32, %c0_i32_0 : i32, i32
  }
  func.func @transform_8(%arg0: i32) -> (i32, i32) {
    %c0_i32 = arith.constant 0 : i32
    %c0_i32_0 = arith.constant 0 : i32
    %c0_i32_1 = arith.constant 0 : i32
    return %c0_i32, %c0_i32_0 : i32, i32
  }
  func.func @transform_9(%arg0: i32) -> (i32, i32) {
    %c0_i32 = arith.constant 0 : i32
    %c0_i32_0 = arith.constant 0 : i32
    %c0_i32_1 = arith.constant 0 : i32
    return %c0_i32, %c0_i32_0 : i32, i32
  }
  func.func @transform_10(%arg0: i32) -> (i32, i32, i32) {
    %c0_i32 = arith.constant 0 : i32
    %c0_i32_0 = arith.constant 0 : i32
    %c0_i32_1 = arith.constant 0 : i32
    return %arg0, %c0_i32, %c0_i32_0 : i32, i32, i32
  }
}

</mosaic_0001>

<llo_original>
// kernel: tpu_custom_call.1
$region0: #{tpu_custom_call.1}
  #allocation0 [shape = 'u32[]', space=smem, size = 0x4, offset = 0x4, fixed_abs, tag = 'smem constant byte address 0x4 - core index']
  #allocation1 [shape = 'u32[144,128]{1,0:T(1,128)}', space=vmem, size = 0x12000, scoped, tag = 'internal scratch']
  %s0 = inlined_call_operand.vmem [shape: f32[2,256,32], index: 0, kind: input, shape index: {}]
  %s1 = inlined_call_operand.vmem [shape: f32[64,32], index: 1, kind: input, shape index: {}]
  %s2 = inlined_call_operand.vmem [shape: f32[64,1], index: 2, kind: input, shape index: {}]
  %s3 = inlined_call_operand.vmem [shape: f32[32,1], index: 3, kind: input, shape index: {}]
  %s4 = inlined_call_operand.vmem [shape: f32[32,1], index: 4, kind: input, shape index: {}]
  %s5 = inlined_call_operand.vmem [shape: f32[9,32,1], index: 5, kind: input, shape index: {}]
  %s6 = inlined_call_operand.vmem [shape: f32[32,1], index: 6, kind: input, shape index: {}]
  %s7 = inlined_call_operand.vmem [shape: f32[9,256], index: 7, kind: input, shape index: {}]
  %s8 = inlined_call_operand.vmem [shape: f32[32,32], index: 8, kind: input, shape index: {}]
  %s9 = inlined_call_operand.vmem [shape: f32[32,1], index: 9, kind: input, shape index: {}]
  %s10 = inlined_call_operand.vmem [shape: f32[2,256,32], index: 10, kind: output, shape index: {}]
  %s11 = sld [smem:[#allocation0]]
  $region73: #{tpu_custom_call.1} parent=0
    _
  %s13 = ssub.s32 1, %s11
  %s14 = scalar_select 0, %s13, %s11
  loop: start=0, step=1, limit=4
  $region2: #{tpu_custom_call.1} parent=0 // loop_pre_header
    _
  $region3: #{tpu_custom_call.1} parent=0 // loop_header
    %s16 = sphi 0, %s20
    %p17 = scmp.ge.s32.totalorder %s16, 4
    %s26 = sphi 0, %s28
    %s29 = sphi 0, %s26
    %s30 = sphi 0, %s29
    %s46 = sphi 0, %s30
    %s50 = sphi 0, %s50
    %s52 = sphi 0, %s50
    %s53 = sphi 0, %s52
    %s67 = sphi 0, %s53
    %s71 = sphi 0, %s71
    %s73 = sphi 0, %s71
    %s74 = sphi 0, %s73
    %s88 = sphi 0, %s74
    %s92 = sphi 0, %s92
    %s94 = sphi 0, %s92
    %s95 = sphi 0, %s94
    %s109 = sphi 0, %s95
    %s113 = sphi 0, %s113
    %s115 = sphi 0, %s113
    %s116 = sphi 0, %s115
    %s130 = sphi 0, %s116
    %s134 = sphi 0, %s134
    %s136 = sphi 0, %s134
    %s137 = sphi 0, %s136
    %s151 = sphi 0, %s137
    %s155 = sphi 0, %s155
    %s157 = sphi 0, %s155
    %s158 = sphi 0, %s157
    %s172 = sphi 0, %s158
    %s176 = sphi 0, %s176
    %s178 = sphi 0, %s176
    %s179 = sphi 0, %s178
    %s193 = sphi 0, %s179
    %s197 = sphi 0, %s197
    %s199 = sphi 0, %s197
    %s200 = sphi 0, %s199
    %s214 = sphi 0, %s200
    %s218 = sphi 0, %s218
    %s220 = sphi 0, %s218
    %s221 = sphi 0, %s220
    %s235 = sphi 0, %s221
    %s241 = sphi 0, %s243
    %s244 = sphi 0, %s241
    %s245 = sphi 0, %s244
    %s261 = sphi 0, %s245
  $region4: #{tpu_custom_call.1} parent=0 // loop_header_branch
    %19 = sbr.rel (%p17) target = $region8
  $region5: #{tpu_custom_call.1} parent=0 // loop_body
    %s21 = ssub.s32 %s16, 1
    %s22 = ssub.s32 %s16, 2
    %s23 = sadd.s32 %s16, 1
    %s24 = ssub.s32 %s16, %s23
    %p25 = scmp.eq.s32.totalorder %s24, 0
    %s27 = sadd.s32 %s26, 1
    %s28 = scalar_select %p25, %s26, %s27
    %p31 = pneg %p25
    %p32 = scmp.eq.s32.totalorder %s16, 1
    %p33 = por %p31, %p32
    %p34 = scmp.ne.s32.totalorder %s26, %s29
    %p35 = scmp.eq.s32.totalorder %s16, 0
    %p36 = por %p34, %p35
    %p37 = scmp.ne.s32.totalorder %s26, %s29
    %p38 = scmp.eq.s32.totalorder %s21, 1
    %p39 = por %p37, %p38
    %p40 = scmp.ne.s32.totalorder %s29, %s30
    %p41 = scmp.eq.s32.totalorder %s21, 0
    %p42 = por %p40, %p41
    %p43 = scmp.ne.s32.totalorder %s29, %s30
    %p44 = scmp.eq.s32.totalorder %s22, 1
    %p45 = por %p43, %p44
    %p47 = scmp.ne.s32.totalorder %s30, %s46
    %p48 = scmp.eq.s32.totalorder %s22, 0
    %p49 = por %p47, %p48
    %s51 = sadd.s32 %s50, 1
    %p54 = scmp.eq.s32.totalorder %s16, 1
    %p55 = scmp.ne.s32.totalorder %s50, %s52
    %p56 = scmp.eq.s32.totalorder %s16, 0
    %p57 = por %p55, %p56
    %p58 = scmp.ne.s32.totalorder %s50, %s52
    %p59 = scmp.eq.s32.totalorder %s21, 1
    %p60 = por %p58, %p59
    %p61 = scmp.ne.s32.totalorder %s52, %s53
    %p62 = scmp.eq.s32.totalorder %s21, 0
    %p63 = por %p61, %p62
    %p64 = scmp.ne.s32.totalorder %s52, %s53
    %p65 = scmp.eq.s32.totalorder %s22, 1
    %p66 = por %p64, %p65
    %p68 = scmp.ne.s32.totalorder %s53, %s67
    %p69 = scmp.eq.s32.totalorder %s22, 0
    %p70 = por %p68, %p69
    %s72 = sadd.s32 %s71, 1
    %p75 = scmp.eq.s32.totalorder %s16, 1
    %p76 = scmp.ne.s32.totalorder %s71, %s73
    %p77 = scmp.eq.s32.totalorder %s16, 0
    %p78 = por %p76, %p77
    %p79 = scmp.ne.s32.totalorder %s71, %s73
    %p80 = scmp.eq.s32.totalorder %s21, 1
    %p81 = por %p79, %p80
    %p82 = scmp.ne.s32.totalorder %s73, %s74
    %p83 = scmp.eq.s32.totalorder %s21, 0
    %p84 = por %p82, %p83
    %p85 = scmp.ne.s32.totalorder %s73, %s74
    %p86 = scmp.eq.s32.totalorder %s22, 1
    %p87 = por %p85, %p86
    %p89 = scmp.ne.s32.totalorder %s74, %s88
    %p90 = scmp.eq.s32.totalorder %s22, 0
    %p91 = por %p89, %p90
    %s93 = sadd.s32 %s92, 1
    %p96 = scmp.eq.s32.totalorder %s16, 1
    %p97 = scmp.ne.s32.totalorder %s92, %s94
    %p98 = scmp.eq.s32.totalorder %s16, 0
    %p99 = por %p97, %p98
    %p100 = scmp.ne.s32.totalorder %s92, %s94
    %p101 = scmp.eq.s32.totalorder %s21, 1
    %p102 = por %p100, %p101
    %p103 = scmp.ne.s32.totalorder %s94, %s95
    %p104 = scmp.eq.s32.totalorder %s21, 0
    %p105 = por %p103, %p104
    %p106 = scmp.ne.s32.totalorder %s94, %s95
    %p107 = scmp.eq.s32.totalorder %s22, 1
    %p108 = por %p106, %p107
    %p110 = scmp.ne.s32.totalorder %s95, %s109
    %p111 = scmp.eq.s32.totalorder %s22, 0
    %p112 = por %p110, %p111
    %s114 = sadd.s32 %s113, 1
    %p117 = scmp.eq.s32.totalorder %s16, 1
    %p118 = scmp.ne.s32.totalorder %s113, %s115
    %p119 = scmp.eq.s32.totalorder %s16, 0
    %p120 = por %p118, %p119
    %p121 = scmp.ne.s32.totalorder %s113, %s115
    %p122 = scmp.eq.s32.totalorder %s21, 1
    %p123 = por %p121, %p122
    %p124 = scmp.ne.s32.totalorder %s115, %s116
    %p125 = scmp.eq.s32.totalorder %s21, 0
    %p126 = por %p124, %p125
    %p127 = scmp.ne.s32.totalorder %s115, %s116
    %p128 = scmp.eq.s32.totalorder %s22, 1
    %p129 = por %p127, %p128
    %p131 = scmp.ne.s32.totalorder %s116, %s130
    %p132 = scmp.eq.s32.totalorder %s22, 0
    %p133 = por %p131, %p132
    %s135 = sadd.s32 %s134, 1
    %p138 = scmp.eq.s32.totalorder %s16, 1
    %p139 = scmp.ne.s32.totalorder %s134, %s136
    %p140 = scmp.eq.s32.totalorder %s16, 0
    %p141 = por %p139, %p140
    %p142 = scmp.ne.s32.totalorder %s134, %s136
    %p143 = scmp.eq.s32.totalorder %s21, 1
    %p144 = por %p142, %p143
    %p145 = scmp.ne.s32.totalorder %s136, %s137
    %p146 = scmp.eq.s32.totalorder %s21, 0
    %p147 = por %p145, %p146
    %p148 = scmp.ne.s32.totalorder %s136, %s137
    %p149 = scmp.eq.s32.totalorder %s22, 1
    %p150 = por %p148, %p149
    %p152 = scmp.ne.s32.totalorder %s137, %s151
    %p153 = scmp.eq.s32.totalorder %s22, 0
    %p154 = por %p152, %p153
    %s156 = sadd.s32 %s155, 1
    %p159 = scmp.eq.s32.totalorder %s16, 1
    %p160 = scmp.ne.s32.totalorder %s155, %s157
    %p161 = scmp.eq.s32.totalorder %s16, 0
    %p162 = por %p160, %p161
    %p163 = scmp.ne.s32.totalorder %s155, %s157
    %p164 = scmp.eq.s32.totalorder %s21, 1
    %p165 = por %p163, %p164
    %p166 = scmp.ne.s32.totalorder %s157, %s158
    %p167 = scmp.eq.s32.totalorder %s21, 0
    %p168 = por %p166, %p167
    %p169 = scmp.ne.s32.totalorder %s157, %s158
    %p170 = scmp.eq.s32.totalorder %s22, 1
    %p171 = por %p169, %p170
    %p173 = scmp.ne.s32.totalorder %s158, %s172
    %p174 = scmp.eq.s32.totalorder %s22, 0
    %p175 = por %p173, %p174
    %s177 = sadd.s32 %s176, 1
    %p180 = scmp.eq.s32.totalorder %s16, 1
    %p181 = scmp.ne.s32.totalorder %s176, %s178
    %p182 = scmp.eq.s32.totalorder %s16, 0
    %p183 = por %p181, %p182
    %p184 = scmp.ne.s32.totalorder %s176, %s178
    %p185 = scmp.eq.s32.totalorder %s21, 1
    %p186 = por %p184, %p185
    %p187 = scmp.ne.s32.totalorder %s178, %s179
    %p188 = scmp.eq.s32.totalorder %s21, 0
    %p189 = por %p187, %p188
    %p190 = scmp.ne.s32.totalorder %s178, %s179
    %p191 = scmp.eq.s32.totalorder %s22, 1
    %p192 = por %p190, %p191
    %p194 = scmp.ne.s32.totalorder %s179, %s193
    %p195 = scmp.eq.s32.totalorder %s22, 0
    %p196 = por %p194, %p195
    %s198 = sadd.s32 %s197, 1
    %p201 = scmp.eq.s32.totalorder %s16, 1
    %p202 = scmp.ne.s32.totalorder %s197, %s199
    %p203 = scmp.eq.s32.totalorder %s16, 0
    %p204 = por %p202, %p203
    %p205 = scmp.ne.s32.totalorder %s197, %s199
    %p206 = scmp.eq.s32.totalorder %s21, 1
    %p207 = por %p205, %p206
    %p208 = scmp.ne.s32.totalorder %s199, %s200
    %p209 = scmp.eq.s32.totalorder %s21, 0
    %p210 = por %p208, %p209
    %p211 = scmp.ne.s32.totalorder %s199, %s200
    %p212 = scmp.eq.s32.totalorder %s22, 1
    %p213 = por %p211, %p212
    %p215 = scmp.ne.s32.totalorder %s200, %s214
    %p216 = scmp.eq.s32.totalorder %s22, 0
    %p217 = por %p215, %p216
    %s219 = sadd.s32 %s218, 1
    %p222 = scmp.eq.s32.totalorder %s16, 1
    %p223 = scmp.ne.s32.totalorder %s218, %s220
    %p224 = scmp.eq.s32.totalorder %s16, 0
    %p225 = por %p223, %p224
    %p226 = scmp.ne.s32.totalorder %s218, %s220
    %p227 = scmp.eq.s32.totalorder %s21, 1
    %p228 = por %p226, %p227
    %p229 = scmp.ne.s32.totalorder %s220, %s221
    %p230 = scmp.eq.s32.totalorder %s21, 0
    %p231 = por %p229, %p230
    %p232 = scmp.ne.s32.totalorder %s220, %s221
    %p233 = scmp.eq.s32.totalorder %s22, 1
    %p234 = por %p232, %p233
    %p236 = scmp.ne.s32.totalorder %s221, %s235
    %p237 = scmp.eq.s32.totalorder %s22, 0
    %p238 = por %p236, %p237
    %s239 = ssub.s32 %s16, %s23
    %p240 = scmp.eq.s32.totalorder %s239, 0
    %s242 = sadd.s32 %s241, 1
    %s243 = scalar_select %p240, %s241, %s242
    %p246 = pneg %p240
    %p247 = scmp.eq.s32.totalorder %s16, 1
    %p248 = por %p246, %p247
    %p249 = scmp.ne.s32.totalorder %s241, %s244
    %p250 = scmp.eq.s32.totalorder %s16, 0
    %p251 = por %p249, %p250
    %p252 = scmp.ne.s32.totalorder %s241, %s244
    %p253 = scmp.eq.s32.totalorder %s21, 1
    %p254 = por %p252, %p253
    %p255 = scmp.ne.s32.totalorder %s244, %s245
    %p256 = scmp.eq.s32.totalorder %s21, 0
    %p257 = por %p255, %p256
    %p258 = scmp.ne.s32.totalorder %s244, %s245
    %p259 = scmp.eq.s32.totalorder %s22, 1
    %p260 = por %p258, %p259
    %p262 = scmp.ne.s32.totalorder %s245, %s261
    %p263 = scmp.eq.s32.totalorder %s22, 0
    %p264 = por %p262, %p263
    %p265 = scmp.le.s32.totalorder 1, %s16
    %p266 = scmp.lt.s32.totalorder %s16, 3
    %p267 = pnand %p265, %p266
    %p268 = pneg %p267
    // Predicated region
    $region9: #{tpu_custom_call.1} parent=5 // pred_check
      _
    $region10: #{tpu_custom_call.1} parent=5 // pred_check_branch
      %270 = sbr.rel (%p267) target = $region12
    $region11: #{tpu_custom_call.1} parent=5 // pred_region
      %s271 = ssub.s32 %s16, 1
      // Predicated region
      $region13: #{tpu_custom_call.1} parent=11 // pred_check
        %p272 = pneg %p63
      $region14: #{tpu_custom_call.1} parent=11 // pred_check_branch
        %274 = sbr.rel (%p272) target = $region16
      $region15: #{tpu_custom_call.1} parent=11 // pred_region
        _
      $region16: #{tpu_custom_call.1} parent=11 // pred_fallthru
        _
      // Predicated region
      $region17: #{tpu_custom_call.1} parent=11 // pred_check
        %p275 = pneg %p84
      $region18: #{tpu_custom_call.1} parent=11 // pred_check_branch
        %277 = sbr.rel (%p275) target = $region20
      $region19: #{tpu_custom_call.1} parent=11 // pred_region
        _
      $region20: #{tpu_custom_call.1} parent=11 // pred_fallthru
        _
      // Predicated region
      $region21: #{tpu_custom_call.1} parent=11 // pred_check
        %p278 = pneg %p105
      $region22: #{tpu_custom_call.1} parent=11 // pred_check_branch
        %280 = sbr.rel (%p278) target = $region24
      $region23: #{tpu_custom_call.1} parent=11 // pred_region
        _
      $region24: #{tpu_custom_call.1} parent=11 // pred_fallthru
        _
      // Predicated region
      $region25: #{tpu_custom_call.1} parent=11 // pred_check
        %p281 = pneg %p126
      $region26: #{tpu_custom_call.1} parent=11 // pred_check_branch
        %283 = sbr.rel (%p281) target = $region28
      $region27: #{tpu_custom_call.1} parent=11 // pred_region
        _
      $region28: #{tpu_custom_call.1} parent=11 // pred_fallthru
        _
      // Predicated region
      $region29: #{tpu_custom_call.1} parent=11 // pred_check
        %p284 = pneg %p147
      $region30: #{tpu_custom_call.1} parent=11 // pred_check_branch
        %286 = sbr.rel (%p284) target = $region32
      $region31: #{tpu_custom_call.1} parent=11 // pred_region
        _
      $region32: #{tpu_custom_call.1} parent=11 // pred_fallthru
        _
      // Predicated region
      $region33: #{tpu_custom_call.1} parent=11 // pred_check
        %p287 = pneg %p168
      $region34: #{tpu_custom_call.1} parent=11 // pred_check_branch
        %289 = sbr.rel (%p287) target = $region36
      $region35: #{tpu_custom_call.1} parent=11 // pred_region
        _
      $region36: #{tpu_custom_call.1} parent=11 // pred_fallthru
        _
      // Predicated region
      $region37: #{tpu_custom_call.1} parent=11 // pred_check
        %p290 = pneg %p189
      $region38: #{tpu_custom_call.1} parent=11 // pred_check_branch
        %292 = sbr.rel (%p290) target = $region40
      $region39: #{tpu_custom_call.1} parent=11 // pred_region
        _
      $region40: #{tpu_custom_call.1} parent=11 // pred_fallthru
        _
      // Predicated region
      $region41: #{tpu_custom_call.1} parent=11 // pred_check
        %p293 = pneg %p210
      $region42: #{tpu_custom_call.1} parent=11 // pred_check_branch
        %295 = sbr.rel (%p293) target = $region44
      $region43: #{tpu_custom_call.1} parent=11 // pred_region
        _
      $region44: #{tpu_custom_call.1} parent=11 // pred_fallthru
        _
      // Predicated region
      $region45: #{tpu_custom_call.1} parent=11 // pred_check
        %p296 = pneg %p231
      $region46: #{tpu_custom_call.1} parent=11 // pred_check_branch
        %298 = sbr.rel (%p296) target = $region48
      $region47: #{tpu_custom_call.1} parent=11 // pred_region
        _
      $region48: #{tpu_custom_call.1} parent=11 // pred_fallthru
        _
    $region12: #{tpu_custom_call.1} parent=5 // pred_fallthru
      _
    %p299 = scmp.lt.s32.totalorder %s16, 2
    // Predicated region
    $region49: #{tpu_custom_call.1} parent=5 // pred_check
      %p300 = pneg %p299
    $region50: #{tpu_custom_call.1} parent=5 // pred_check_branch
      %302 = sbr.rel (%p300) target = $region52
    $region51: #{tpu_custom_call.1} parent=5 // pred_region
      // Predicated region
      $region53: #{tpu_custom_call.1} parent=51 // pred_check
        %p303 = pneg %p36
      $region54: #{tpu_custom_call.1} parent=51 // pred_check_branch
        %305 = sbr.rel (%p303) target = $region56
      $region55: #{tpu_custom_call.1} parent=51 // pred_region
        %p306 = scmp.lt.s32.totalorder %s16, 1
        %s307 = scalar_select %p306, %s16, 1
        %s308 = smul.addr %s307, 32
        %s309 = smul.addr %s308, 8
        %s310 = scalar_lea.vmem %s0, %s309
      $region56: #{tpu_custom_call.1} parent=51 // pred_fallthru
        _
    $region52: #{tpu_custom_call.1} parent=5 // pred_fallthru
      _
    %p311 = scmp.le.s32.totalorder 1, %s16
    %p312 = scmp.lt.s32.totalorder %s16, 3
    %p313 = pnand %p311, %p312
    %p314 = pneg %p313
    // Predicated region
    $region57: #{tpu_custom_call.1} parent=5 // pred_check
      _
    $region58: #{tpu_custom_call.1} parent=5 // pred_check_branch
      %316 = sbr.rel (%p313) target = $region60
    $region59: #{tpu_custom_call.1} parent=5 // pred_region
      %s317 = ssub.s32 %s16, 1
      %p318 = scmp.lt.s32.totalorder %s21, 1
      %s319 = scalar_select %p318, %s21, 1
      %s320 = smul.addr %s319, 32
      %s321 = smul.addr %s320, 8
      %s322 = scalar_lea.vmem %s0, %s321
      %p323 = pneg %p42
      %p324 = pneg %p39
      %p325 = pneg %p63
      %p326 = pneg %p60
      %p327 = pneg %p84
      %p328 = pneg %p81
      %p329 = pneg %p105
      %p330 = pneg %p102
      %p331 = pneg %p126
      %p332 = pneg %p123
      %p333 = pneg %p147
      %p334 = pneg %p144
      %p335 = pneg %p168
      %p336 = pneg %p165
      %p337 = pneg %p189
      %p338 = pneg %p186
      %p339 = pneg %p210
      %p340 = pneg %p207
      %p341 = pneg %p231
      %p342 = pneg %p228
      %p343 = pneg %p257
      %p344 = pneg %p254
      %p345 = scmp.lt.s32.totalorder %s21, 1
      %s346 = scalar_select %p345, %s21, 1
      %s347 = smul.addr %s346, 32
      %s348 = smul.addr %s347, 8
      %s349 = scalar_lea.vmem %s10, %s348
      %p350 = scmp.lt.s32.totalorder %s21, 1
      %s351 = scalar_select %p350, %s21, 1
      %s352 = smul.addr %s351, 32
      %s353 = smul.addr %s352, 8
      %s354 = scalar_lea.vmem %s0, %s353
      %p355 = scmp.lt.s32.totalorder %s21, 1
      %s356 = scalar_select %p355, %s21, 1
      %s357 = smul.addr %s356, 32
      %s358 = smul.addr %s357, 8
      %s359 = scalar_lea.vmem %s10, %s358
      %v360 = vld [vmem:[%s354] sm:$0xff]
      %v361 = vld [vmem:[%s354 + $0x8] sm:$0xff]
      %v362 = vld [vmem:[%s354 + $0x10] sm:$0xff]
      %v363 = vld [vmem:[%s354 + $0x18] sm:$0xff]
      %v364 = vld [vmem:[%s354 + $0x20] sm:$0xff]
      %v365 = vld [vmem:[%s354 + $0x28] sm:$0xff]
      %v366 = vld [vmem:[%s354 + $0x30] sm:$0xff]
      %v367 = vld [vmem:[%s354 + $0x38] sm:$0xff]
      %v368 = vld [vmem:[%s354 + $0x40] sm:$0xff]
      %v369 = vld [vmem:[%s354 + $0x48] sm:$0xff]
      %v370 = vld [vmem:[%s354 + $0x50] sm:$0xff]
      %v371 = vld [vmem:[%s354 + $0x58] sm:$0xff]
      %v372 = vld [vmem:[%s354 + $0x60] sm:$0xff]
      %v373 = vld [vmem:[%s354 + $0x68] sm:$0xff]
      %v374 = vld [vmem:[%s354 + $0x70] sm:$0xff]
      %v375 = vld [vmem:[%s354 + $0x78] sm:$0xff]
      %v376 = vld [vmem:[%s354 + $0x80] sm:$0xff]
      %v377 = vld [vmem:[%s354 + $0x88] sm:$0xff]
      %v378 = vld [vmem:[%s354 + $0x90] sm:$0xff]
      %v379 = vld [vmem:[%s354 + $0x98] sm:$0xff]
      %v380 = vld [vmem:[%s354 + $0xa0] sm:$0xff]
      %v381 = vld [vmem:[%s354 + $0xa8] sm:$0xff]
      %v382 = vld [vmem:[%s354 + $0xb0] sm:$0xff]
      %v383 = vld [vmem:[%s354 + $0xb8] sm:$0xff]
      %v384 = vld [vmem:[%s354 + $0xc0] sm:$0xff]
      %v385 = vld [vmem:[%s354 + $0xc8] sm:$0xff]
      %v386 = vld [vmem:[%s354 + $0xd0] sm:$0xff]
      %v387 = vld [vmem:[%s354 + $0xd8] sm:$0xff]
      %v388 = vld [vmem:[%s354 + $0xe0] sm:$0xff]
      %v389 = vld [vmem:[%s354 + $0xe8] sm:$0xff]
      %v390 = vld [vmem:[%s354 + $0xf0] sm:$0xff]
      %v391 = vld [vmem:[%s354 + $0xf8] sm:$0xff]
      %v392 = vld [vmem:[%s1] sm:$0xff]
      %v393 = vld [vmem:[%s1 + $0x8] sm:$0xff]
      %v394 = vld [vmem:[%s1 + $0x10] sm:$0xff]
      %v395 = vld [vmem:[%s1 + $0x18] sm:$0xff]
      %v396 = vld [vmem:[%s1 + $0x20] sm:$0xff]
      %v397 = vld [vmem:[%s1 + $0x28] sm:$0xff]
      %v398 = vld [vmem:[%s1 + $0x30] sm:$0xff]
      %v399 = vld [vmem:[%s1 + $0x38] sm:$0xff]
      %v400 = vld [vmem:[%s2] sm:$0xff]
      %v401 = vld [vmem:[%s2 + $0x8] sm:$0xff]
      %v402 = vld [vmem:[%s2 + $0x10] sm:$0xff]
      %v403 = vld [vmem:[%s2 + $0x18] sm:$0xff]
      %v404 = vld [vmem:[%s2 + $0x20] sm:$0xff]
      %v405 = vld [vmem:[%s2 + $0x28] sm:$0xff]
      %v406 = vld [vmem:[%s2 + $0x30] sm:$0xff]
      %v407 = vld [vmem:[%s2 + $0x38] sm:$0xff]
      %409 = vset.pattern.permute.xlu0 0
      %410 = vperm.xlu0 %409, %v400
      %v411 = vpop.permute.xlu0 %410
      %414 = vset.pattern.permute.xlu0 0
      %415 = vperm.xlu0 %414, %v401
      %v416 = vpop.permute.xlu0 %415
      %419 = vset.pattern.permute.xlu0 0
      %420 = vperm.xlu0 %419, %v402
      %v421 = vpop.permute.xlu0 %420
      %424 = vset.pattern.permute.xlu0 0
      %425 = vperm.xlu0 %424, %v403
      %v426 = vpop.permute.xlu0 %425
      %429 = vset.pattern.permute.xlu0 0
      %430 = vperm.xlu0 %429, %v404
      %v431 = vpop.permute.xlu0 %430
      %434 = vset.pattern.permute.xlu0 0
      %435 = vperm.xlu0 %434, %v405
      %v436 = vpop.permute.xlu0 %435
      %439 = vset.pattern.permute.xlu0 0
      %440 = vperm.xlu0 %439, %v406
      %v441 = vpop.permute.xlu0 %440
      %444 = vset.pattern.permute.xlu0 0
      %445 = vperm.xlu0 %444, %v407
      %v446 = vpop.permute.xlu0 %445
      %vm448 = vcmask 261120
      %v450 = vsel %vm448, %v392, 0
      %v453 = vsel %vm448, %v393, 0
      %v456 = vsel %vm448, %v394, 0
      %v459 = vsel %vm448, %v395, 0
      %v462 = vsel %vm448, %v396, 0
      %v465 = vsel %vm448, %v397, 0
      %v468 = vsel %vm448, %v398, 0
      %v471 = vsel %vm448, %v399, 0
      %v474 = vsel %vm448, %v360, 0
      %v477 = vsel %vm448, %v361, 0
      %v480 = vsel %vm448, %v362, 0
      %v483 = vsel %vm448, %v363, 0
      %v486 = vsel %vm448, %v364, 0
      %v489 = vsel %vm448, %v365, 0
      %v492 = vsel %vm448, %v366, 0
      %v495 = vsel %vm448, %v367, 0
      %v498 = vsel %vm448, %v368, 0
      %v501 = vsel %vm448, %v369, 0
      %v504 = vsel %vm448, %v370, 0
      %v507 = vsel %vm448, %v371, 0
      %v510 = vsel %vm448, %v372, 0
      %v513 = vsel %vm448, %v373, 0
      %v516 = vsel %vm448, %v374, 0
      %v519 = vsel %vm448, %v375, 0
      %v522 = vsel %vm448, %v376, 0
      %v525 = vsel %vm448, %v377, 0
      %v528 = vsel %vm448, %v378, 0
      %v531 = vsel %vm448, %v379, 0
      %v534 = vsel %vm448, %v380, 0
      %v537 = vsel %vm448, %v381, 0
      %v540 = vsel %vm448, %v382, 0
      %v543 = vsel %vm448, %v383, 0
      %v546 = vsel %vm448, %v384, 0
      %v549 = vsel %vm448, %v385, 0
      %v552 = vsel %vm448, %v386, 0
      %v555 = vsel %vm448, %v387, 0
      %v558 = vsel %vm448, %v388, 0
      %v561 = vsel %vm448, %v389, 0
      %v564 = vsel %vm448, %v390, 0
      %v567 = vsel %vm448, %v391, 0
      %569 = vmatprep.subr.mxu0 0.0
      %v570 = vand.u32 %v519, 4294901760
      %571 = vmatpush1.xpose.msra.mxu0 %v570
      %572 = vmatprep.subr.mxu0 0.0
      %v573 = vand.u32 %v516, 4294901760
      %574 = vmatpush1.xpose.msra.mxu0 %v573
      %575 = vmatprep.subr.mxu0 0.0
      %v576 = vand.u32 %v513, 4294901760
      %577 = vmatpush1.xpose.msra.mxu0 %v576
      %578 = vmatprep.subr.mxu0 0.0
      %v579 = vand.u32 %v510, 4294901760
      %580 = vmatpush1.xpose.msra.mxu0 %v579
      %581 = vmatprep.subr.mxu0 0.0
      %v582 = vand.u32 %v507, 4294901760
      %583 = vmatpush1.xpose.msra.mxu0 %v582
      %584 = vmatprep.subr.mxu0 0.0
      %v585 = vand.u32 %v504, 4294901760
      %586 = vmatpush1.xpose.msra.mxu0 %v585
      %587 = vmatprep.subr.mxu0 0.0
      %v588 = vand.u32 %v501, 4294901760
      %589 = vmatpush1.xpose.msra.mxu0 %v588
      %590 = vmatprep.subr.mxu0 0.0
      %v591 = vand.u32 %v498, 4294901760
      %592 = vmatpush1.xpose.msra.mxu0 %v591
      %593 = vmatprep.subr.mxu0 0.0
      %v594 = vand.u32 %v495, 4294901760
      %595 = vmatpush1.xpose.msra.mxu0 %v594
      %596 = vmatprep.subr.mxu0 0.0
      %v597 = vand.u32 %v492, 4294901760
      %598 = vmatpush1.xpose.msra.mxu0 %v597
      %599 = vmatprep.subr.mxu0 0.0
      %v600 = vand.u32 %v489, 4294901760
      %601 = vmatpush1.xpose.msra.mxu0 %v600
      %602 = vmatprep.subr.mxu0 0.0
      %v603 = vand.u32 %v486, 4294901760
      %604 = vmatpush1.xpose.msra.mxu0 %v603
      %605 = vmatprep.subr.mxu0 0.0
      %v606 = vand.u32 %v483, 4294901760
      %607 = vmatpush1.xpose.msra.mxu0 %v606
      %608 = vmatprep.subr.mxu0 0.0
      %v609 = vand.u32 %v480, 4294901760
      %610 = vmatpush1.xpose.msra.mxu0 %v609
      %611 = vmatprep.subr.mxu0 0.0
      %v612 = vand.u32 %v477, 4294901760
      %613 = vmatpush1.xpose.msra.mxu0 %v612
      %614 = vmatprep.subr.mxu0 0.0
      %v615 = vand.u32 %v474, 4294901760
      %616 = vmatpush1.xpose.msra.mxu0 %v615
      %617 = vmatprep.subr.mxu0 0.0
      %v618 = vand.u32 %v567, 4294901760
      %619 = vmatpush2.xpose.msra.mxu0 %v618
      %620 = vmatprep.subr.mxu0 0.0
      %v621 = vand.u32 %v564, 4294901760
      %622 = vmatpush2.xpose.msra.mxu0 %v621
      %623 = vmatprep.subr.mxu0 0.0
      %v624 = vand.u32 %v561, 4294901760
      %625 = vmatpush2.xpose.msra.mxu0 %v624
      %626 = vmatprep.subr.mxu0 0.0
      %v627 = vand.u32 %v558, 4294901760
      %628 = vmatpush2.xpose.msra.mxu0 %v627
      %629 = vmatprep.subr.mxu0 0.0
      %v630 = vand.u32 %v555, 4294901760
      %631 = vmatpush2.xpose.msra.mxu0 %v630
      %632 = vmatprep.subr.mxu0 0.0
      %v633 = vand.u32 %v552, 4294901760
      %634 = vmatpush2.xpose.msra.mxu0 %v633
      %635 = vmatprep.subr.mxu0 0.0
      %v636 = vand.u32 %v549, 4294901760
      %637 = vmatpush2.xpose.msra.mxu0 %v636
      %638 = vmatprep.subr.mxu0 0.0
      %v639 = vand.u32 %v546, 4294901760
      %640 = vmatpush2.xpose.msra.mxu0 %v639
      %641 = vmatprep.subr.mxu0 0.0
      %v642 = vand.u32 %v543, 4294901760
      %643 = vmatpush2.xpose.msra.mxu0 %v642
      %644 = vmatprep.subr.mxu0 0.0
      %v645 = vand.u32 %v540, 4294901760
      %646 = vmatpush2.xpose.msra.mxu0 %v645
      %647 = vmatprep.subr.mxu0 0.0
      %v648 = vand.u32 %v537, 4294901760
      %649 = vmatpush2.xpose.msra.mxu0 %v648
      %650 = vmatprep.subr.mxu0 0.0
      %v651 = vand.u32 %v534, 4294901760
      %652 = vmatpush2.xpose.msra.mxu0 %v651
      %653 = vmatprep.subr.mxu0 0.0
      %v654 = vand.u32 %v531, 4294901760
      %655 = vmatpush2.xpose.msra.mxu0 %v654
      %656 = vmatprep.subr.mxu0 0.0
      %v657 = vand.u32 %v528, 4294901760
      %658 = vmatpush2.xpose.msra.mxu0 %v657
      %659 = vmatprep.subr.mxu0 0.0
      %v660 = vand.u32 %v525, 4294901760
      %661 = vmatpush2.xpose.msra.mxu0 %v660
      %662 = vmatprep.subr.mxu0 0.0
      %v663 = vand.u32 %v522, 4294901760
      %664 = vmatpush2.xpose.msra.mxu0 %v663
      %665 = vmatprep.mubr.f32.mxu0 0.0
      %v666 = vand.u32 %v450, 4294901760
      %v667 = vsub.f32 %v450, %v666
      %v668 = vand.u32 %v667, 4294901760
      %v669 = vsub.f32 %v667, %v668
      %v670 = vand.u32 %v669, 4294901760
      %671 = vmatmul.mubr.f32.gmra.mxu0 %v670
      %v672 = vpop.f32.mrf.mxu0
      %v673 = vadd.f32 %v411, %v672
      %v674 = vpop.f32.mrf.mxu0
      %v675 = vadd.f32 %v411, %v674
      %676 = vmatprep.mubr.f32.mxu0 0.0
      %v677 = vand.u32 %v453, 4294901760
      %v678 = vsub.f32 %v453, %v677
      %v679 = vand.u32 %v678, 4294901760
      %v680 = vsub.f32 %v678, %v679
      %v681 = vand.u32 %v680, 4294901760
      %682 = vmatmul.mubr.f32.gmra.mxu0 %v681
      %v683 = vpop.f32.mrf.mxu0
      %v684 = vadd.f32 %v416, %v683
      %v685 = vpop.f32.mrf.mxu0
      %v686 = vadd.f32 %v416, %v685
      %687 = vmatprep.mubr.f32.mxu0 0.0
      %v688 = vand.u32 %v456, 4294901760
      %v689 = vsub.f32 %v456, %v688
      %v690 = vand.u32 %v689, 4294901760
      %v691 = vsub.f32 %v689, %v690
      %v692 = vand.u32 %v691, 4294901760
      %693 = vmatmul.mubr.f32.gmra.mxu0 %v692
      %v694 = vpop.f32.mrf.mxu0
      %v695 = vadd.f32 %v421, %v694
      %v696 = vpop.f32.mrf.mxu0
      %v697 = vadd.f32 %v421, %v696
      %698 = vmatprep.mubr.f32.mxu0 0.0
      %v699 = vand.u32 %v459, 4294901760
      %v700 = vsub.f32 %v459, %v699
      %v701 = vand.u32 %v700, 4294901760
      %v702 = vsub.f32 %v700, %v701
      %v703 = vand.u32 %v702, 4294901760
      %704 = vmatmul.mubr.f32.gmra.mxu0 %v703
      %v705 = vpop.f32.mrf.mxu0
      %v706 = vadd.f32 %v426, %v705
      %v707 = vpop.f32.mrf.mxu0
      %v708 = vadd.f32 %v426, %v707
      %709 = vmatprep.mubr.f32.mxu0 0.0
      %v710 = vand.u32 %v462, 4294901760
      %v711 = vsub.f32 %v462, %v710
      %v712 = vand.u32 %v711, 4294901760
      %v713 = vsub.f32 %v711, %v712
      %v714 = vand.u32 %v713, 4294901760
      %715 = vmatmul.mubr.f32.gmra.mxu0 %v714
      %v716 = vpop.f32.mrf.mxu0
      %v717 = vadd.f32 %v431, %v716
      %v718 = vpop.f32.mrf.mxu0
      %v719 = vadd.f32 %v431, %v718
      %720 = vmatprep.mubr.f32.mxu0 0.0
      %v721 = vand.u32 %v465, 4294901760
      %v722 = vsub.f32 %v465, %v721
      %v723 = vand.u32 %v722, 4294901760
      %v724 = vsub.f32 %v722, %v723
      %v725 = vand.u32 %v724, 4294901760
      %726 = vmatmul.mubr.f32.gmra.mxu0 %v725
      %v727 = vpop.f32.mrf.mxu0
      %v728 = vadd.f32 %v436, %v727
      %v729 = vpop.f32.mrf.mxu0
      %v730 = vadd.f32 %v436, %v729
      %731 = vmatprep.mubr.f32.mxu0 0.0
      %v732 = vand.u32 %v468, 4294901760
      %v733 = vsub.f32 %v468, %v732
      %v734 = vand.u32 %v733, 4294901760
      %v735 = vsub.f32 %v733, %v734
      %v736 = vand.u32 %v735, 4294901760
      %737 = vmatmul.mubr.f32.gmra.mxu0 %v736
      %v738 = vpop.f32.mrf.mxu0
      %v739 = vadd.f32 %v441, %v738
      %v740 = vpop.f32.mrf.mxu0
      %v741 = vadd.f32 %v441, %v740
      %742 = vmatprep.mubr.f32.mxu0 0.0
      %v743 = vand.u32 %v471, 4294901760
      %v744 = vsub.f32 %v471, %v743
      %v745 = vand.u32 %v744, 4294901760
      %v746 = vsub.f32 %v744, %v745
      %v747 = vand.u32 %v746, 4294901760
      %748 = vmatmul.mubr.f32.gmra.mxu0 %v747
      %v749 = vpop.f32.mrf.mxu0
      %v750 = vadd.f32 %v446, %v749
      %v751 = vpop.f32.mrf.mxu0
      %v752 = vadd.f32 %v446, %v751
      %753 = vdwg.mxu0
      %754 = vmatprep.subr.mxu0 0.0
      %v755 = vand.u32 %v519, 4294901760
      %v756 = vsub.f32 %v519, %v755
      %v757 = vand.u32 %v756, 4294901760
      %v758 = vsub.f32 %v756, %v757
      %v759 = vand.u32 %v758, 4294901760
      %760 = vmatpush1.xpose.msra.mxu0 %v759
      %761 = vmatprep.subr.mxu0 0.0
      %v762 = vand.u32 %v516, 4294901760
      %v763 = vsub.f32 %v516, %v762
      %v764 = vand.u32 %v763, 4294901760
      %v765 = vsub.f32 %v763, %v764
      %v766 = vand.u32 %v765, 4294901760
      %767 = vmatpush1.xpose.msra.mxu0 %v766
      %768 = vmatprep.subr.mxu0 0.0
      %v769 = vand.u32 %v513, 4294901760
      %v770 = vsub.f32 %v513, %v769
      %v771 = vand.u32 %v770, 4294901760
      %v772 = vsub.f32 %v770, %v771
      %v773 = vand.u32 %v772, 4294901760
      %774 = vmatpush1.xpose.msra.mxu0 %v773
      %775 = vmatprep.subr.mxu0 0.0
      %v776 = vand.u32 %v510, 4294901760
      %v777 = vsub.f32 %v510, %v776
      %v778 = vand.u32 %v777, 4294901760
      %v779 = vsub.f32 %v777, %v778
      %v780 = vand.u32 %v779, 4294901760
      %781 = vmatpush1.xpose.msra.mxu0 %v780
      %782 = vmatprep.subr.mxu0 0.0
      %v783 = vand.u32 %v507, 4294901760
      %v784 = vsub.f32 %v507, %v783
      %v785 = vand.u32 %v784, 4294901760
      %v786 = vsub.f32 %v784, %v785
      %v787 = vand.u32 %v786, 4294901760
      %788 = vmatpush1.xpose.msra.mxu0 %v787
      %789 = vmatprep.subr.mxu0 0.0
      %v790 = vand.u32 %v504, 4294901760
      %v791 = vsub.f32 %v504, %v790
      %v792 = vand.u32 %v791, 4294901760
      %v793 = vsub.f32 %v791, %v792
      %v794 = vand.u32 %v793, 4294901760
      %795 = vmatpush1.xpose.msra.mxu0 %v794
      %796 = vmatprep.subr.mxu0 0.0
      %v797 = vand.u32 %v501, 4294901760
      %v798 = vsub.f32 %v501, %v797
      %v799 = vand.u32 %v798, 4294901760
      %v800 = vsub.f32 %v798, %v799
      %v801 = vand.u32 %v800, 4294901760
      %802 = vmatpush1.xpose.msra.mxu0 %v801
      %803 = vmatprep.subr.mxu0 0.0
      %v804 = vand.u32 %v498, 4294901760
      %v805 = vsub.f32 %v498, %v804
      %v806 = vand.u32 %v805, 4294901760
      %v807 = vsub.f32 %v805, %v806
      %v808 = vand.u32 %v807, 4294901760
      %809 = vmatpush1.xpose.msra.mxu0 %v808
      %810 = vmatprep.subr.mxu0 0.0
      %v811 = vand.u32 %v495, 4294901760
      %v812 = vsub.f32 %v495, %v811
      %v813 = vand.u32 %v812, 4294901760
      %v814 = vsub.f32 %v812, %v813
      %v815 = vand.u32 %v814, 4294901760
      %816 = vmatpush1.xpose.msra.mxu0 %v815
      %817 = vmatprep.subr.mxu0 0.0
      %v818 = vand.u32 %v492, 4294901760
      %v819 = vsub.f32 %v492, %v818
      %v820 = vand.u32 %v819, 4294901760
      %v821 = vsub.f32 %v819, %v820
      %v822 = vand.u32 %v821, 4294901760
      %823 = vmatpush1.xpose.msra.mxu0 %v822
      %824 = vmatprep.subr.mxu0 0.0
      %v825 = vand.u32 %v489, 4294901760
      %v826 = vsub.f32 %v489, %v825
      %v827 = vand.u32 %v826, 4294901760
      %v828 = vsub.f32 %v826, %v827
      %v829 = vand.u32 %v828, 4294901760
      %830 = vmatpush1.xpose.msra.mxu0 %v829
      %831 = vmatprep.subr.mxu0 0.0
      %v832 = vand.u32 %v486, 4294901760
      %v833 = vsub.f32 %v486, %v832
      %v834 = vand.u32 %v833, 4294901760
      %v835 = vsub.f32 %v833, %v834
      %v836 = vand.u32 %v835, 4294901760
      %837 = vmatpush1.xpose.msra.mxu0 %v836
      %838 = vmatprep.subr.mxu0 0.0
      %v839 = vand.u32 %v483, 4294901760
      %v840 = vsub.f32 %v483, %v839
      %v841 = vand.u32 %v840, 4294901760
      %v842 = vsub.f32 %v840, %v841
      %v843 = vand.u32 %v842, 4294901760
      %844 = vmatpush1.xpose.msra.mxu0 %v843
      %845 = vmatprep.subr.mxu0 0.0
      %v846 = vand.u32 %v480, 4294901760
      %v847 = vsub.f32 %v480, %v846
      %v848 = vand.u32 %v847, 4294901760
      %v849 = vsub.f32 %v847, %v848
      %v850 = vand.u32 %v849, 4294901760
      %851 = vmatpush1.xpose.msra.mxu0 %v850
      %852 = vmatprep.subr.mxu0 0.0
      %v853 = vand.u32 %v477, 4294901760
      %v854 = vsub.f32 %v477, %v853
      %v855 = vand.u32 %v854, 4294901760
      %v856 = vsub.f32 %v854, %v855
      %v857 = vand.u32 %v856, 4294901760
      %858 = vmatpush1.xpose.msra.mxu0 %v857
      %859 = vmatprep.subr.mxu0 0.0
      %v860 = vand.u32 %v474, 4294901760
      %v861 = vsub.f32 %v474, %v860
      %v862 = vand.u32 %v861, 4294901760
      %v863 = vsub.f32 %v861, %v862
      %v864 = vand.u32 %v863, 4294901760
      %865 = vmatpush1.xpose.msra.mxu0 %v864
      %866 = vmatprep.subr.mxu0 0.0
      %v867 = vand.u32 %v567, 4294901760
      %v868 = vsub.f32 %v567, %v867
      %v869 = vand.u32 %v868, 4294901760
      %v870 = vsub.f32 %v868, %v869
      %v871 = vand.u32 %v870, 4294901760
      %872 = vmatpush2.xpose.msra.mxu0 %v871
      %873 = vmatprep.subr.mxu0 0.0
      %v874 = vand.u32 %v564, 4294901760
      %v875 = vsub.f32 %v564, %v874
      %v876 = vand.u32 %v875, 4294901760
      %v877 = vsub.f32 %v875, %v876
      %v878 = vand.u32 %v877, 4294901760
      %879 = vmatpush2.xpose.msra.mxu0 %v878
      %880 = vmatprep.subr.mxu0 0.0
      %v881 = vand.u32 %v561, 4294901760
      %v882 = vsub.f32 %v561, %v881
      %v883 = vand.u32 %v882, 4294901760
      %v884 = vsub.f32 %v882, %v883
      %v885 = vand.u32 %v884, 4294901760
      %886 = vmatpush2.xpose.msra.mxu0 %v885
      %887 = vmatprep.subr.mxu0 0.0
      %v888 = vand.u32 %v558, 4294901760
      %v889 = vsub.f32 %v558, %v888
      %v890 = vand.u32 %v889, 4294901760
      %v891 = vsub.f32 %v889, %v890
      %v892 = vand.u32 %v891, 4294901760
      %893 = vmatpush2.xpose.msra.mxu0 %v892
      %894 = vmatprep.subr.mxu0 0.0
      %v895 = vand.u32 %v555, 4294901760
      %v896 = vsub.f32 %v555, %v895
      %v897 = vand.u32 %v896, 4294901760
      %v898 = vsub.f32 %v896, %v897
      %v899 = vand.u32 %v898, 4294901760
      %900 = vmatpush2.xpose.msra.mxu0 %v899
      %901 = vmatprep.subr.mxu0 0.0
      %v902 = vand.u32 %v552, 4294901760
      %v903 = vsub.f32 %v552, %v902
      %v904 = vand.u32 %v903, 4294901760
      %v905 = vsub.f32 %v903, %v904
      %v906 = vand.u32 %v905, 4294901760
      %907 = vmatpush2.xpose.msra.mxu0 %v906
      %908 = vmatprep.subr.mxu0 0.0
      %v909 = vand.u32 %v549, 4294901760
      %v910 = vsub.f32 %v549, %v909
      %v911 = vand.u32 %v910, 4294901760
      %v912 = vsub.f32 %v910, %v911
      %v913 = vand.u32 %v912, 4294901760
      %914 = vmatpush2.xpose.msra.mxu0 %v913
      %915 = vmatprep.subr.mxu0 0.0
      %v916 = vand.u32 %v546, 4294901760
      %v917 = vsub.f32 %v546, %v916
      %v918 = vand.u32 %v917, 4294901760
      %v919 = vsub.f32 %v917, %v918
      %v920 = vand.u32 %v919, 4294901760
      %921 = vmatpush2.xpose.msra.mxu0 %v920
      %922 = vmatprep.subr.mxu0 0.0
      %v923 = vand.u32 %v543, 4294901760
      %v924 = vsub.f32 %v543, %v923
      %v925 = vand.u32 %v924, 4294901760
      %v926 = vsub.f32 %v924, %v925
      %v927 = vand.u32 %v926, 4294901760
      %928 = vmatpush2.xpose.msra.mxu0 %v927
      %929 = vmatprep.subr.mxu0 0.0
      %v930 = vand.u32 %v540, 4294901760
      %v931 = vsub.f32 %v540, %v930
      %v932 = vand.u32 %v931, 4294901760
      %v933 = vsub.f32 %v931, %v932
      %v934 = vand.u32 %v933, 4294901760
      %935 = vmatpush2.xpose.msra.mxu0 %v934
      %936 = vmatprep.subr.mxu0 0.0
      %v937 = vand.u32 %v537, 4294901760
      %v938 = vsub.f32 %v537, %v937
      %v939 = vand.u32 %v938, 4294901760
      %v940 = vsub.f32 %v938, %v939
      %v941 = vand.u32 %v940, 4294901760
      %942 = vmatpush2.xpose.msra.mxu0 %v941
      %943 = vmatprep.subr.mxu0 0.0
      %v944 = vand.u32 %v534, 4294901760
      %v945 = vsub.f32 %v534, %v944
      %v946 = vand.u32 %v945, 4294901760
      %v947 = vsub.f32 %v945, %v946
      %v948 = vand.u32 %v947, 4294901760
      %949 = vmatpush2.xpose.msra.mxu0 %v948
      %950 = vmatprep.subr.mxu0 0.0
      %v951 = vand.u32 %v531, 4294901760
      %v952 = vsub.f32 %v531, %v951
      %v953 = vand.u32 %v952, 4294901760
      %v954 = vsub.f32 %v952, %v953
      %v955 = vand.u32 %v954, 4294901760
      %956 = vmatpush2.xpose.msra.mxu0 %v955
      %957 = vmatprep.subr.mxu0 0.0
      %v958 = vand.u32 %v528, 4294901760
      %v959 = vsub.f32 %v528, %v958
      %v960 = vand.u32 %v959, 4294901760
      %v961 = vsub.f32 %v959, %v960
      %v962 = vand.u32 %v961, 4294901760
      %963 = vmatpush2.xpose.msra.mxu0 %v962
      %964 = vmatprep.subr.mxu0 0.0
      %v965 = vand.u32 %v525, 4294901760
      %v966 = vsub.f32 %v525, %v965
      %v967 = vand.u32 %v966, 4294901760
      %v968 = vsub.f32 %v966, %v967
      %v969 = vand.u32 %v968, 4294901760
      %970 = vmatpush2.xpose.msra.mxu0 %v969
      %971 = vmatprep.subr.mxu0 0.0
      %v972 = vand.u32 %v522, 4294901760
      %v973 = vsub.f32 %v522, %v972
      %v974 = vand.u32 %v973, 4294901760
      %v975 = vsub.f32 %v973, %v974
      %v976 = vand.u32 %v975, 4294901760
      %977 = vmatpush2.xpose.msra.mxu0 %v976
      %978 = vmatprep.mubr.f32.mxu0 0.0
      %v979 = vand.u32 %v450, 4294901760
      %980 = vmatmul.mubr.f32.gmra.mxu0 %v979
      %v981 = vpop.f32.mrf.mxu0
      %v982 = vadd.f32 %v673, %v981
      %v983 = vpop.f32.mrf.mxu0
      %v984 = vadd.f32 %v675, %v983
      %985 = vmatprep.mubr.f32.mxu0 0.0
      %v986 = vand.u32 %v453, 4294901760
      %987 = vmatmul.mubr.f32.gmra.mxu0 %v986
      %v988 = vpop.f32.mrf.mxu0
      %v989 = vadd.f32 %v684, %v988
      %v990 = vpop.f32.mrf.mxu0
      %v991 = vadd.f32 %v686, %v990
      %992 = vmatprep.mubr.f32.mxu0 0.0
      %v993 = vand.u32 %v456, 4294901760
      %994 = vmatmul.mubr.f32.gmra.mxu0 %v993
      %v995 = vpop.f32.mrf.mxu0
      %v996 = vadd.f32 %v695, %v995
      %v997 = vpop.f32.mrf.mxu0
      %v998 = vadd.f32 %v697, %v997
      %999 = vmatprep.mubr.f32.mxu0 0.0
      %v1000 = vand.u32 %v459, 4294901760
      %1001 = vmatmul.mubr.f32.gmra.mxu0 %v1000
      %v1002 = vpop.f32.mrf.mxu0
      %v1003 = vadd.f32 %v706, %v1002
      %v1004 = vpop.f32.mrf.mxu0
      %v1005 = vadd.f32 %v708, %v1004
      %1006 = vmatprep.mubr.f32.mxu0 0.0
      %v1007 = vand.u32 %v462, 4294901760
      %1008 = vmatmul.mubr.f32.gmra.mxu0 %v1007
      %v1009 = vpop.f32.mrf.mxu0
      %v1010 = vadd.f32 %v717, %v1009
      %v1011 = vpop.f32.mrf.mxu0
      %v1012 = vadd.f32 %v719, %v1011
      %1013 = vmatprep.mubr.f32.mxu0 0.0
      %v1014 = vand.u32 %v465, 4294901760
      %1015 = vmatmul.mubr.f32.gmra.mxu0 %v1014
      %v1016 = vpop.f32.mrf.mxu0
      %v1017 = vadd.f32 %v728, %v1016
      %v1018 = vpop.f32.mrf.mxu0
      %v1019 = vadd.f32 %v730, %v1018
      %1020 = vmatprep.mubr.f32.mxu0 0.0
      %v1021 = vand.u32 %v468, 4294901760
      %1022 = vmatmul.mubr.f32.gmra.mxu0 %v1021
      %v1023 = vpop.f32.mrf.mxu0
      %v1024 = vadd.f32 %v739, %v1023
      %v1025 = vpop.f32.mrf.mxu0
      %v1026 = vadd.f32 %v741, %v1025
      %1027 = vmatprep.mubr.f32.mxu0 0.0
      %v1028 = vand.u32 %v471, 4294901760
      %1029 = vmatmul.mubr.f32.gmra.mxu0 %v1028
      %v1030 = vpop.f32.mrf.mxu0
      %v1031 = vadd.f32 %v750, %v1030
      %v1032 = vpop.f32.mrf.mxu0
      %v1033 = vadd.f32 %v752, %v1032
      %1034 = vdwg.mxu0
      %1035 = vmatprep.subr.mxu0 0.0
      %v1036 = vand.u32 %v519, 4294901760
      %v1037 = vsub.f32 %v519, %v1036
      %1038 = vmatpush1.xpose.msra.mxu0 %v1037
      %1039 = vmatprep.subr.mxu0 0.0
      %v1040 = vand.u32 %v516, 4294901760
      %v1041 = vsub.f32 %v516, %v1040
      %1042 = vmatpush1.xpose.msra.mxu0 %v1041
      %1043 = vmatprep.subr.mxu0 0.0
      %v1044 = vand.u32 %v513, 4294901760
      %v1045 = vsub.f32 %v513, %v1044
      %1046 = vmatpush1.xpose.msra.mxu0 %v1045
      %1047 = vmatprep.subr.mxu0 0.0
      %v1048 = vand.u32 %v510, 4294901760
      %v1049 = vsub.f32 %v510, %v1048
      %1050 = vmatpush1.xpose.msra.mxu0 %v1049
      %1051 = vmatprep.subr.mxu0 0.0
      %v1052 = vand.u32 %v507, 4294901760
      %v1053 = vsub.f32 %v507, %v1052
      %1054 = vmatpush1.xpose.msra.mxu0 %v1053
      %1055 = vmatprep.subr.mxu0 0.0
      %v1056 = vand.u32 %v504, 4294901760
      %v1057 = vsub.f32 %v504, %v1056
      %1058 = vmatpush1.xpose.msra.mxu0 %v1057
      %1059 = vmatprep.subr.mxu0 0.0
      %v1060 = vand.u32 %v501, 4294901760
      %v1061 = vsub.f32 %v501, %v1060
      %1062 = vmatpush1.xpose.msra.mxu0 %v1061
      %1063 = vmatprep.subr.mxu0 0.0
      %v1064 = vand.u32 %v498, 4294901760
      %v1065 = vsub.f32 %v498, %v1064
      %1066 = vmatpush1.xpose.msra.mxu0 %v1065
      %1067 = vmatprep.subr.mxu0 0.0
      %v1068 = vand.u32 %v495, 4294901760
      %v1069 = vsub.f32 %v495, %v1068
      %1070 = vmatpush1.xpose.msra.mxu0 %v1069
      %1071 = vmatprep.subr.mxu0 0.0
      %v1072 = vand.u32 %v492, 4294901760
      %v1073 = vsub.f32 %v492, %v1072
      %1074 = vmatpush1.xpose.msra.mxu0 %v1073
      %1075 = vmatprep.subr.mxu0 0.0
      %v1076 = vand.u32 %v489, 4294901760
      %v1077 = vsub.f32 %v489, %v1076
      %1078 = vmatpush1.xpose.msra.mxu0 %v1077
      %1079 = vmatprep.subr.mxu0 0.0
      %v1080 = vand.u32 %v486, 4294901760
      %v1081 = vsub.f32 %v486, %v1080
      %1082 = vmatpush1.xpose.msra.mxu0 %v1081
      %1083 = vmatprep.subr.mxu0 0.0
      %v1084 = vand.u32 %v483, 4294901760
      %v1085 = vsub.f32 %v483, %v1084
      %1086 = vmatpush1.xpose.msra.mxu0 %v1085
      %1087 = vmatprep.subr.mxu0 0.0
      %v1088 = vand.u32 %v480, 4294901760
      %v1089 = vsub.f32 %v480, %v1088
      %1090 = vmatpush1.xpose.msra.mxu0 %v1089
      %1091 = vmatprep.subr.mxu0 0.0
      %v1092 = vand.u32 %v477, 4294901760
      %v1093 = vsub.f32 %v477, %v1092
      %1094 = vmatpush1.xpose.msra.mxu0 %v1093
      %1095 = vmatprep.subr.mxu0 0.0
      %v1096 = vand.u32 %v474, 4294901760
      %v1097 = vsub.f32 %v474, %v1096
      %1098 = vmatpush1.xpose.msra.mxu0 %v1097
      %1099 = vmatprep.subr.mxu0 0.0
      %v1100 = vand.u32 %v567, 4294901760
      %v1101 = vsub.f32 %v567, %v1100
      %1102 = vmatpush2.xpose.msra.mxu0 %v1101
      %1103 = vmatprep.subr.mxu0 0.0
      %v1104 = vand.u32 %v564, 4294901760
      %v1105 = vsub.f32 %v564, %v1104
      %1106 = vmatpush2.xpose.msra.mxu0 %v1105
      %1107 = vmatprep.subr.mxu0 0.0
      %v1108 = vand.u32 %v561, 4294901760
      %v1109 = vsub.f32 %v561, %v1108
      %1110 = vmatpush2.xpose.msra.mxu0 %v1109
      %1111 = vmatprep.subr.mxu0 0.0
      %v1112 = vand.u32 %v558, 4294901760
      %v1113 = vsub.f32 %v558, %v1112
      %1114 = vmatpush2.xpose.msra.mxu0 %v1113
      %1115 = vmatprep.subr.mxu0 0.0
      %v1116 = vand.u32 %v555, 4294901760
      %v1117 = vsub.f32 %v555, %v1116
      %1118 = vmatpush2.xpose.msra.mxu0 %v1117
      %1119 = vmatprep.subr.mxu0 0.0
      %v1120 = vand.u32 %v552, 4294901760
      %v1121 = vsub.f32 %v552, %v1120
      %1122 = vmatpush2.xpose.msra.mxu0 %v1121
      %1123 = vmatprep.subr.mxu0 0.0
      %v1124 = vand.u32 %v549, 4294901760
      %v1125 = vsub.f32 %v549, %v1124
      %1126 = vmatpush2.xpose.msra.mxu0 %v1125
      %1127 = vmatprep.subr.mxu0 0.0
      %v1128 = vand.u32 %v546, 4294901760
      %v1129 = vsub.f32 %v546, %v1128
      %1130 = vmatpush2.xpose.msra.mxu0 %v1129
      %1131 = vmatprep.subr.mxu0 0.0
      %v1132 = vand.u32 %v543, 4294901760
      %v1133 = vsub.f32 %v543, %v1132
      %1134 = vmatpush2.xpose.msra.mxu0 %v1133
      %1135 = vmatprep.subr.mxu0 0.0
      %v1136 = vand.u32 %v540, 4294901760
      %v1137 = vsub.f32 %v540, %v1136
      %1138 = vmatpush2.xpose.msra.mxu0 %v1137
      %1139 = vmatprep.subr.mxu0 0.0
      %v1140 = vand.u32 %v537, 4294901760
      %v1141 = vsub.f32 %v537, %v1140
      %1142 = vmatpush2.xpose.msra.mxu0 %v1141
      %1143 = vmatprep.subr.mxu0 0.0
      %v1144 = vand.u32 %v534, 4294901760
      %v1145 = vsub.f32 %v534, %v1144
      %1146 = vmatpush2.xpose.msra.mxu0 %v1145
      %1147 = vmatprep.subr.mxu0 0.0
      %v1148 = vand.u32 %v531, 4294901760
      %v1149 = vsub.f32 %v531, %v1148
      %1150 = vmatpush2.xpose.msra.mxu0 %v1149
      %1151 = vmatprep.subr.mxu0 0.0
      %v1152 = vand.u32 %v528, 4294901760
      %v1153 = vsub.f32 %v528, %v1152
      %1154 = vmatpush2.xpose.msra.mxu0 %v1153
      %1155 = vmatprep.subr.mxu0 0.0
      %v1156 = vand.u32 %v525, 4294901760
      %v1157 = vsub.f32 %v525, %v1156
      %1158 = vmatpush2.xpose.msra.mxu0 %v1157
      %1159 = vmatprep.subr.mxu0 0.0
      %v1160 = vand.u32 %v522, 4294901760
      %v1161 = vsub.f32 %v522, %v1160
      %1162 = vmatpush2.xpose.msra.mxu0 %v1161
      %1163 = vmatprep.mubr.f32.mxu0 0.0
      %v1164 = vand.u32 %v450, 4294901760
      %v1165 = vsub.f32 %v450, %v1164
      %1166 = vmatmul.mubr.f32.gmra.mxu0 %v1165
      %v1167 = vpop.f32.mrf.mxu0
      %v1168 = vadd.f32 %v982, %v1167
      %v1169 = vpop.f32.mrf.mxu0
      %v1170 = vadd.f32 %v984, %v1169
      %1171 = vmatprep.mubr.f32.mxu0 0.0
      %v1172 = vand.u32 %v453, 4294901760
      %v1173 = vsub.f32 %v453, %v1172
      %1174 = vmatmul.mubr.f32.gmra.mxu0 %v1173
      %v1175 = vpop.f32.mrf.mxu0
      %v1176 = vadd.f32 %v989, %v1175
      %v1177 = vpop.f32.mrf.mxu0
      %v1178 = vadd.f32 %v991, %v1177
      %1179 = vmatprep.mubr.f32.mxu0 0.0
      %v1180 = vand.u32 %v456, 4294901760
      %v1181 = vsub.f32 %v456, %v1180
      %1182 = vmatmul.mubr.f32.gmra.mxu0 %v1181
      %v1183 = vpop.f32.mrf.mxu0
      %v1184 = vadd.f32 %v996, %v1183
      %v1185 = vpop.f32.mrf.mxu0
      %v1186 = vadd.f32 %v998, %v1185
      %1187 = vmatprep.mubr.f32.mxu0 0.0
      %v1188 = vand.u32 %v459, 4294901760
      %v1189 = vsub.f32 %v459, %v1188
      %1190 = vmatmul.mubr.f32.gmra.mxu0 %v1189
      %v1191 = vpop.f32.mrf.mxu0
      %v1192 = vadd.f32 %v1003, %v1191
      %v1193 = vpop.f32.mrf.mxu0
      %v1194 = vadd.f32 %v1005, %v1193
      %1195 = vmatprep.mubr.f32.mxu0 0.0
      %v1196 = vand.u32 %v462, 4294901760
      %v1197 = vsub.f32 %v462, %v1196
      %1198 = vmatmul.mubr.f32.gmra.mxu0 %v1197
      %v1199 = vpop.f32.mrf.mxu0
      %v1200 = vadd.f32 %v1010, %v1199
      %v1201 = vpop.f32.mrf.mxu0
      %v1202 = vadd.f32 %v1012, %v1201
      %1203 = vmatprep.mubr.f32.mxu0 0.0
      %v1204 = vand.u32 %v465, 4294901760
      %v1205 = vsub.f32 %v465, %v1204
      %1206 = vmatmul.mubr.f32.gmra.mxu0 %v1205
      %v1207 = vpop.f32.mrf.mxu0
      %v1208 = vadd.f32 %v1017, %v1207
      %v1209 = vpop.f32.mrf.mxu0
      %v1210 = vadd.f32 %v1019, %v1209
      %1211 = vmatprep.mubr.f32.mxu0 0.0
      %v1212 = vand.u32 %v468, 4294901760
      %v1213 = vsub.f32 %v468, %v1212
      %1214 = vmatmul.mubr.f32.gmra.mxu0 %v1213
      %v1215 = vpop.f32.mrf.mxu0
      %v1216 = vadd.f32 %v1024, %v1215
      %v1217 = vpop.f32.mrf.mxu0
      %v1218 = vadd.f32 %v1026, %v1217
      %1219 = vmatprep.mubr.f32.mxu0 0.0
      %v1220 = vand.u32 %v471, 4294901760
      %v1221 = vsub.f32 %v471, %v1220
      %1222 = vmatmul.mubr.f32.gmra.mxu0 %v1221
      %v1223 = vpop.f32.mrf.mxu0
      %v1224 = vadd.f32 %v1031, %v1223
      %v1225 = vpop.f32.mrf.mxu0
      %v1226 = vadd.f32 %v1033, %v1225
      %1227 = vdwg.mxu0
      %1228 = vmatprep.subr.mxu0 0.0
      %v1229 = vand.u32 %v519, 4294901760
      %1230 = vmatpush1.xpose.msra.mxu0 %v1229
      %1231 = vmatprep.subr.mxu0 0.0
      %v1232 = vand.u32 %v516, 4294901760
      %1233 = vmatpush1.xpose.msra.mxu0 %v1232
      %1234 = vmatprep.subr.mxu0 0.0
      %v1235 = vand.u32 %v513, 4294901760
      %1236 = vmatpush1.xpose.msra.mxu0 %v1235
      %1237 = vmatprep.subr.mxu0 0.0
      %v1238 = vand.u32 %v510, 4294901760
      %1239 = vmatpush1.xpose.msra.mxu0 %v1238
      %1240 = vmatprep.subr.mxu0 0.0
      %v1241 = vand.u32 %v507, 4294901760
      %1242 = vmatpush1.xpose.msra.mxu0 %v1241
      %1243 = vmatprep.subr.mxu0 0.0
      %v1244 = vand.u32 %v504, 4294901760
      %1245 = vmatpush1.xpose.msra.mxu0 %v1244
      %1246 = vmatprep.subr.mxu0 0.0
      %v1247 = vand.u32 %v501, 4294901760
      %1248 = vmatpush1.xpose.msra.mxu0 %v1247
      %1249 = vmatprep.subr.mxu0 0.0
      %v1250 = vand.u32 %v498, 4294901760
      %1251 = vmatpush1.xpose.msra.mxu0 %v1250
      %1252 = vmatprep.subr.mxu0 0.0
      %v1253 = vand.u32 %v495, 4294901760
      %1254 = vmatpush1.xpose.msra.mxu0 %v1253
      %1255 = vmatprep.subr.mxu0 0.0
      %v1256 = vand.u32 %v492, 4294901760
      %1257 = vmatpush1.xpose.msra.mxu0 %v1256
      %1258 = vmatprep.subr.mxu0 0.0
      %v1259 = vand.u32 %v489, 4294901760
      %1260 = vmatpush1.xpose.msra.mxu0 %v1259
      %1261 = vmatprep.subr.mxu0 0.0
      %v1262 = vand.u32 %v486, 4294901760
      %1263 = vmatpush1.xpose.msra.mxu0 %v1262
      %1264 = vmatprep.subr.mxu0 0.0
      %v1265 = vand.u32 %v483, 4294901760
      %1266 = vmatpush1.xpose.msra.mxu0 %v1265
      %1267 = vmatprep.subr.mxu0 0.0
      %v1268 = vand.u32 %v480, 4294901760
      %1269 = vmatpush1.xpose.msra.mxu0 %v1268
      %1270 = vmatprep.subr.mxu0 0.0
      %v1271 = vand.u32 %v477, 4294901760
      %1272 = vmatpush1.xpose.msra.mxu0 %v1271
      %1273 = vmatprep.subr.mxu0 0.0
      %v1274 = vand.u32 %v474, 4294901760
      %1275 = vmatpush1.xpose.msra.mxu0 %v1274
      %1276 = vmatprep.subr.mxu0 0.0
      %v1277 = vand.u32 %v567, 4294901760
      %1278 = vmatpush2.xpose.msra.mxu0 %v1277
      %1279 = vmatprep.subr.mxu0 0.0
      %v1280 = vand.u32 %v564, 4294901760
      %1281 = vmatpush2.xpose.msra.mxu0 %v1280
      %1282 = vmatprep.subr.mxu0 0.0
      %v1283 = vand.u32 %v561, 4294901760
      %1284 = vmatpush2.xpose.msra.mxu0 %v1283
      %1285 = vmatprep.subr.mxu0 0.0
      %v1286 = vand.u32 %v558, 4294901760
      %1287 = vmatpush2.xpose.msra.mxu0 %v1286
      %1288 = vmatprep.subr.mxu0 0.0
      %v1289 = vand.u32 %v555, 4294901760
      %1290 = vmatpush2.xpose.msra.mxu0 %v1289
      %1291 = vmatprep.subr.mxu0 0.0
      %v1292 = vand.u32 %v552, 4294901760
      %1293 = vmatpush2.xpose.msra.mxu0 %v1292
      %1294 = vmatprep.subr.mxu0 0.0
      %v1295 = vand.u32 %v549, 4294901760
      %1296 = vmatpush2.xpose.msra.mxu0 %v1295
      %1297 = vmatprep.subr.mxu0 0.0
      %v1298 = vand.u32 %v546, 4294901760
      %1299 = vmatpush2.xpose.msra.mxu0 %v1298
      %1300 = vmatprep.subr.mxu0 0.0
      %v1301 = vand.u32 %v543, 4294901760
      %1302 = vmatpush2.xpose.msra.mxu0 %v1301
      %1303 = vmatprep.subr.mxu0 0.0
      %v1304 = vand.u32 %v540, 4294901760
      %1305 = vmatpush2.xpose.msra.mxu0 %v1304
      %1306 = vmatprep.subr.mxu0 0.0
      %v1307 = vand.u32 %v537, 4294901760
      %1308 = vmatpush2.xpose.msra.mxu0 %v1307
      %1309 = vmatprep.subr.mxu0 0.0
      %v1310 = vand.u32 %v534, 4294901760
      %1311 = vmatpush2.xpose.msra.mxu0 %v1310
      %1312 = vmatprep.subr.mxu0 0.0
      %v1313 = vand.u32 %v531, 4294901760
      %1314 = vmatpush2.xpose.msra.mxu0 %v1313
      %1315 = vmatprep.subr.mxu0 0.0
      %v1316 = vand.u32 %v528, 4294901760
      %1317 = vmatpush2.xpose.msra.mxu0 %v1316
      %1318 = vmatprep.subr.mxu0 0.0
      %v1319 = vand.u32 %v525, 4294901760
      %1320 = vmatpush2.xpose.msra.mxu0 %v1319
      %1321 = vmatprep.subr.mxu0 0.0
      %v1322 = vand.u32 %v522, 4294901760
      %1323 = vmatpush2.xpose.msra.mxu0 %v1322
      %1324 = vmatprep.mubr.f32.mxu0 0.0
      %v1325 = vand.u32 %v450, 4294901760
      %v1326 = vsub.f32 %v450, %v1325
      %v1327 = vand.u32 %v1326, 4294901760
      %1328 = vmatmul.mubr.f32.gmra.mxu0 %v1327
      %v1329 = vpop.f32.mrf.mxu0
      %v1330 = vadd.f32 %v1168, %v1329
      %v1331 = vpop.f32.mrf.mxu0
      %v1332 = vadd.f32 %v1170, %v1331
      %1333 = vmatprep.mubr.f32.mxu0 0.0
      %v1334 = vand.u32 %v453, 4294901760
      %v1335 = vsub.f32 %v453, %v1334
      %v1336 = vand.u32 %v1335, 4294901760
      %1337 = vmatmul.mubr.f32.gmra.mxu0 %v1336
      %v1338 = vpop.f32.mrf.mxu0
      %v1339 = vadd.f32 %v1176, %v1338
      %v1340 = vpop.f32.mrf.mxu0
      %v1341 = vadd.f32 %v1178, %v1340
      %1342 = vmatprep.mubr.f32.mxu0 0.0
      %v1343 = vand.u32 %v456, 4294901760
      %v1344 = vsub.f32 %v456, %v1343
      %v1345 = vand.u32 %v1344, 4294901760
      %1346 = vmatmul.mubr.f32.gmra.mxu0 %v1345
      %v1347 = vpop.f32.mrf.mxu0
      %v1348 = vadd.f32 %v1184, %v1347
      %v1349 = vpop.f32.mrf.mxu0
      %v1350 = vadd.f32 %v1186, %v1349
      %1351 = vmatprep.mubr.f32.mxu0 0.0
      %v1352 = vand.u32 %v459, 4294901760
      %v1353 = vsub.f32 %v459, %v1352
      %v1354 = vand.u32 %v1353, 4294901760
      %1355 = vmatmul.mubr.f32.gmra.mxu0 %v1354
      %v1356 = vpop.f32.mrf.mxu0
      %v1357 = vadd.f32 %v1192, %v1356
      %v1358 = vpop.f32.mrf.mxu0
      %v1359 = vadd.f32 %v1194, %v1358
      %1360 = vmatprep.mubr.f32.mxu0 0.0
      %v1361 = vand.u32 %v462, 4294901760
      %v1362 = vsub.f32 %v462, %v1361
      %v1363 = vand.u32 %v1362, 4294901760
      %1364 = vmatmul.mubr.f32.gmra.mxu0 %v1363
      %v1365 = vpop.f32.mrf.mxu0
      %v1366 = vadd.f32 %v1200, %v1365
      %v1367 = vpop.f32.mrf.mxu0
      %v1368 = vadd.f32 %v1202, %v1367
      %1369 = vmatprep.mubr.f32.mxu0 0.0
      %v1370 = vand.u32 %v465, 4294901760
      %v1371 = vsub.f32 %v465, %v1370
      %v1372 = vand.u32 %v1371, 4294901760
      %1373 = vmatmul.mubr.f32.gmra.mxu0 %v1372
      %v1374 = vpop.f32.mrf.mxu0
      %v1375 = vadd.f32 %v1208, %v1374
      %v1376 = vpop.f32.mrf.mxu0
      %v1377 = vadd.f32 %v1210, %v1376
      %1378 = vmatprep.mubr.f32.mxu0 0.0
      %v1379 = vand.u32 %v468, 4294901760
      %v1380 = vsub.f32 %v468, %v1379
      %v1381 = vand.u32 %v1380, 4294901760
      %1382 = vmatmul.mubr.f32.gmra.mxu0 %v1381
      %v1383 = vpop.f32.mrf.mxu0
      %v1384 = vadd.f32 %v1216, %v1383
      %v1385 = vpop.f32.mrf.mxu0
      %v1386 = vadd.f32 %v1218, %v1385
      %1387 = vmatprep.mubr.f32.mxu0 0.0
      %v1388 = vand.u32 %v471, 4294901760
      %v1389 = vsub.f32 %v471, %v1388
      %v1390 = vand.u32 %v1389, 4294901760
      %1391 = vmatmul.mubr.f32.gmra.mxu0 %v1390
      %v1392 = vpop.f32.mrf.mxu0
      %v1393 = vadd.f32 %v1224, %v1392
      %v1394 = vpop.f32.mrf.mxu0
      %v1395 = vadd.f32 %v1226, %v1394
      %1396 = vdwg.mxu0
      %1397 = vmatprep.subr.mxu0 0.0
      %v1398 = vand.u32 %v519, 4294901760
      %v1399 = vsub.f32 %v519, %v1398
      %v1400 = vand.u32 %v1399, 4294901760
      %1401 = vmatpush1.xpose.msra.mxu0 %v1400
      %1402 = vmatprep.subr.mxu0 0.0
      %v1403 = vand.u32 %v516, 4294901760
      %v1404 = vsub.f32 %v516, %v1403
      %v1405 = vand.u32 %v1404, 4294901760
      %1406 = vmatpush1.xpose.msra.mxu0 %v1405
      %1407 = vmatprep.subr.mxu0 0.0
      %v1408 = vand.u32 %v513, 4294901760
      %v1409 = vsub.f32 %v513, %v1408
      %v1410 = vand.u32 %v1409, 4294901760
      %1411 = vmatpush1.xpose.msra.mxu0 %v1410
      %1412 = vmatprep.subr.mxu0 0.0
      %v1413 = vand.u32 %v510, 4294901760
      %v1414 = vsub.f32 %v510, %v1413
      %v1415 = vand.u32 %v1414, 4294901760
      %1416 = vmatpush1.xpose.msra.mxu0 %v1415
      %1417 = vmatprep.subr.mxu0 0.0
      %v1418 = vand.u32 %v507, 4294901760
      %v1419 = vsub.f32 %v507, %v1418
      %v1420 = vand.u32 %v1419, 4294901760
      %1421 = vmatpush1.xpose.msra.mxu0 %v1420
      %1422 = vmatprep.subr.mxu0 0.0
      %v1423 = vand.u32 %v504, 4294901760
      %v1424 = vsub.f32 %v504, %v1423
      %v1425 = vand.u32 %v1424, 4294901760
      %1426 = vmatpush1.xpose.msra.mxu0 %v1425
      %1427 = vmatprep.subr.mxu0 0.0
      %v1428 = vand.u32 %v501, 4294901760
      %v1429 = vsub.f32 %v501, %v1428
      %v1430 = vand.u32 %v1429, 4294901760
      %1431 = vmatpush1.xpose.msra.mxu0 %v1430
      %1432 = vmatprep.subr.mxu0 0.0
      %v1433 = vand.u32 %v498, 4294901760
      %v1434 = vsub.f32 %v498, %v1433
      %v1435 = vand.u32 %v1434, 4294901760
      %1436 = vmatpush1.xpose.msra.mxu0 %v1435
      %1437 = vmatprep.subr.mxu0 0.0
      %v1438 = vand.u32 %v495, 4294901760
      %v1439 = vsub.f32 %v495, %v1438
      %v1440 = vand.u32 %v1439, 4294901760
      %1441 = vmatpush1.xpose.msra.mxu0 %v1440
      %1442 = vmatprep.subr.mxu0 0.0
      %v1443 = vand.u32 %v492, 4294901760
      %v1444 = vsub.f32 %v492, %v1443
      %v1445 = vand.u32 %v1444, 4294901760
      %1446 = vmatpush1.xpose.msra.mxu0 %v1445
      %1447 = vmatprep.subr.mxu0 0.0
      %v1448 = vand.u32 %v489, 4294901760
      %v1449 = vsub.f32 %v489, %v1448
      %v1450 = vand.u32 %v1449, 4294901760
      %1451 = vmatpush1.xpose.msra.mxu0 %v1450
      %1452 = vmatprep.subr.mxu0 0.0
      %v1453 = vand.u32 %v486, 4294901760
      %v1454 = vsub.f32 %v486, %v1453
      %v1455 = vand.u32 %v1454, 4294901760
      %1456 = vmatpush1.xpose.msra.mxu0 %v1455
      %1457 = vmatprep.subr.mxu0 0.0
      %v1458 = vand.u32 %v483, 4294901760
      %v1459 = vsub.f32 %v483, %v1458
      %v1460 = vand.u32 %v1459, 4294901760
      %1461 = vmatpush1.xpose.msra.mxu0 %v1460
      %1462 = vmatprep.subr.mxu0 0.0
      %v1463 = vand.u32 %v480, 4294901760
      %v1464 = vsub.f32 %v480, %v1463
      %v1465 = vand.u32 %v1464, 4294901760
      %1466 = vmatpush1.xpose.msra.mxu0 %v1465
      %1467 = vmatprep.subr.mxu0 0.0
      %v1468 = vand.u32 %v477, 4294901760
      %v1469 = vsub.f32 %v477, %v1468
      %v1470 = vand.u32 %v1469, 4294901760
      %1471 = vmatpush1.xpose.msra.mxu0 %v1470
      %1472 = vmatprep.subr.mxu0 0.0
      %v1473 = vand.u32 %v474, 4294901760
      %v1474 = vsub.f32 %v474, %v1473
      %v1475 = vand.u32 %v1474, 4294901760
      %1476 = vmatpush1.xpose.msra.mxu0 %v1475
      %1477 = vmatprep.subr.mxu0 0.0
      %v1478 = vand.u32 %v567, 4294901760
      %v1479 = vsub.f32 %v567, %v1478
      %v1480 = vand.u32 %v1479, 4294901760
      %1481 = vmatpush2.xpose.msra.mxu0 %v1480
      %1482 = vmatprep.subr.mxu0 0.0
      %v1483 = vand.u32 %v564, 4294901760
      %v1484 = vsub.f32 %v564, %v1483
      %v1485 = vand.u32 %v1484, 4294901760
      %1486 = vmatpush2.xpose.msra.mxu0 %v1485
      %1487 = vmatprep.subr.mxu0 0.0
      %v1488 = vand.u32 %v561, 4294901760
      %v1489 = vsub.f32 %v561, %v1488
      %v1490 = vand.u32 %v1489, 4294901760
      %1491 = vmatpush2.xpose.msra.mxu0 %v1490
      %1492 = vmatprep.subr.mxu0 0.0
      %v1493 = vand.u32 %v558, 4294901760
      %v1494 = vsub.f32 %v558, %v1493
      %v1495 = vand.u32 %v1494, 4294901760
      %1496 = vmatpush2.xpose.msra.mxu0 %v1495
      %1497 = vmatprep.subr.mxu0 0.0
      %v1498 = vand.u32 %v555, 4294901760
      %v1499 = vsub.f32 %v555, %v1498
      %v1500 = vand.u32 %v1499, 4294901760
      %1501 = vmatpush2.xpose.msra.mxu0 %v1500
      %1502 = vmatprep.subr.mxu0 0.0
      %v1503 = vand.u32 %v552, 4294901760
      %v1504 = vsub.f32 %v552, %v1503
      %v1505 = vand.u32 %v1504, 4294901760
      %1506 = vmatpush2.xpose.msra.mxu0 %v1505
      %1507 = vmatprep.subr.mxu0 0.0
      %v1508 = vand.u32 %v549, 4294901760
      %v1509 = vsub.f32 %v549, %v1508
      %v1510 = vand.u32 %v1509, 4294901760
      %1511 = vmatpush2.xpose.msra.mxu0 %v1510
      %1512 = vmatprep.subr.mxu0 0.0
      %v1513 = vand.u32 %v546, 4294901760
      %v1514 = vsub.f32 %v546, %v1513
      %v1515 = vand.u32 %v1514, 4294901760
      %1516 = vmatpush2.xpose.msra.mxu0 %v1515
      %1517 = vmatprep.subr.mxu0 0.0
      %v1518 = vand.u32 %v543, 4294901760
      %v1519 = vsub.f32 %v543, %v1518
      %v1520 = vand.u32 %v1519, 4294901760
      %1521 = vmatpush2.xpose.msra.mxu0 %v1520
      %1522 = vmatprep.subr.mxu0 0.0
      %v1523 = vand.u32 %v540, 4294901760
      %v1524 = vsub.f32 %v540, %v1523
      %v1525 = vand.u32 %v1524, 4294901760
      %1526 = vmatpush2.xpose.msra.mxu0 %v1525
      %1527 = vmatprep.subr.mxu0 0.0
      %v1528 = vand.u32 %v537, 4294901760
      %v1529 = vsub.f32 %v537, %v1528
      %v1530 = vand.u32 %v1529, 4294901760
      %1531 = vmatpush2.xpose.msra.mxu0 %v1530
      %1532 = vmatprep.subr.mxu0 0.0
      %v1533 = vand.u32 %v534, 4294901760
      %v1534 = vsub.f32 %v534, %v1533
      %v1535 = vand.u32 %v1534, 4294901760
      %1536 = vmatpush2.xpose.msra.mxu0 %v1535
      %1537 = vmatprep.subr.mxu0 0.0
      %v1538 = vand.u32 %v531, 4294901760
      %v1539 = vsub.f32 %v531, %v1538
      %v1540 = vand.u32 %v1539, 4294901760
      %1541 = vmatpush2.xpose.msra.mxu0 %v1540
      %1542 = vmatprep.subr.mxu0 0.0
      %v1543 = vand.u32 %v528, 4294901760
      %v1544 = vsub.f32 %v528, %v1543
      %v1545 = vand.u32 %v1544, 4294901760
      %1546 = vmatpush2.xpose.msra.mxu0 %v1545
      %1547 = vmatprep.subr.mxu0 0.0
      %v1548 = vand.u32 %v525, 4294901760
      %v1549 = vsub.f32 %v525, %v1548
      %v1550 = vand.u32 %v1549, 4294901760
      %1551 = vmatpush2.xpose.msra.mxu0 %v1550
      %1552 = vmatprep.subr.mxu0 0.0
      %v1553 = vand.u32 %v522, 4294901760
      %v1554 = vsub.f32 %v522, %v1553
      %v1555 = vand.u32 %v1554, 4294901760
      %1556 = vmatpush2.xpose.msra.mxu0 %v1555
      %1557 = vmatprep.mubr.f32.mxu0 0.0
      %v1558 = vand.u32 %v450, 4294901760
      %1559 = vmatmul.mubr.f32.gmra.mxu0 %v1558
      %v1560 = vpop.f32.mrf.mxu0
      %v1561 = vadd.f32 %v1330, %v1560
      %v1562 = vpop.f32.mrf.mxu0
      %v1563 = vadd.f32 %v1332, %v1562
      %1564 = vmatprep.mubr.f32.mxu0 0.0
      %v1565 = vand.u32 %v453, 4294901760
      %1566 = vmatmul.mubr.f32.gmra.mxu0 %v1565
      %v1567 = vpop.f32.mrf.mxu0
      %v1568 = vadd.f32 %v1339, %v1567
      %v1569 = vpop.f32.mrf.mxu0
      %v1570 = vadd.f32 %v1341, %v1569
      %1571 = vmatprep.mubr.f32.mxu0 0.0
      %v1572 = vand.u32 %v456, 4294901760
      %1573 = vmatmul.mubr.f32.gmra.mxu0 %v1572
      %v1574 = vpop.f32.mrf.mxu0
      %v1575 = vadd.f32 %v1348, %v1574
      %v1576 = vpop.f32.mrf.mxu0
      %v1577 = vadd.f32 %v1350, %v1576
      %1578 = vmatprep.mubr.f32.mxu0 0.0
      %v1579 = vand.u32 %v459, 4294901760
      %1580 = vmatmul.mubr.f32.gmra.mxu0 %v1579
      %v1581 = vpop.f32.mrf.mxu0
      %v1582 = vadd.f32 %v1357, %v1581
      %v1583 = vpop.f32.mrf.mxu0
      %v1584 = vadd.f32 %v1359, %v1583
      %1585 = vmatprep.mubr.f32.mxu0 0.0
      %v1586 = vand.u32 %v462, 4294901760
      %1587 = vmatmul.mubr.f32.gmra.mxu0 %v1586
      %v1588 = vpop.f32.mrf.mxu0
      %v1589 = vadd.f32 %v1366, %v1588
      %v1590 = vpop.f32.mrf.mxu0
      %v1591 = vadd.f32 %v1368, %v1590
      %1592 = vmatprep.mubr.f32.mxu0 0.0
      %v1593 = vand.u32 %v465, 4294901760
      %1594 = vmatmul.mubr.f32.gmra.mxu0 %v1593
      %v1595 = vpop.f32.mrf.mxu0
      %v1596 = vadd.f32 %v1375, %v1595
      %v1597 = vpop.f32.mrf.mxu0
      %v1598 = vadd.f32 %v1377, %v1597
      %1599 = vmatprep.mubr.f32.mxu0 0.0
      %v1600 = vand.u32 %v468, 4294901760
      %1601 = vmatmul.mubr.f32.gmra.mxu0 %v1600
      %v1602 = vpop.f32.mrf.mxu0
      %v1603 = vadd.f32 %v1384, %v1602
      %v1604 = vpop.f32.mrf.mxu0
      %v1605 = vadd.f32 %v1386, %v1604
      %1606 = vmatprep.mubr.f32.mxu0 0.0
      %v1607 = vand.u32 %v471, 4294901760
      %1608 = vmatmul.mubr.f32.gmra.mxu0 %v1607
      %v1609 = vpop.f32.mrf.mxu0
      %v1610 = vadd.f32 %v1393, %v1609
      %v1611 = vpop.f32.mrf.mxu0
      %v1612 = vadd.f32 %v1395, %v1611
      %1613 = vdwg.mxu0
      %1614 = vmatprep.subr.mxu0 0.0
      %v1615 = vand.u32 %v519, 4294901760
      %1616 = vmatpush1.xpose.msra.mxu0 %v1615
      %1617 = vmatprep.subr.mxu0 0.0
      %v1618 = vand.u32 %v516, 4294901760
      %1619 = vmatpush1.xpose.msra.mxu0 %v1618
      %1620 = vmatprep.subr.mxu0 0.0
      %v1621 = vand.u32 %v513, 4294901760
      %1622 = vmatpush1.xpose.msra.mxu0 %v1621
      %1623 = vmatprep.subr.mxu0 0.0
      %v1624 = vand.u32 %v510, 4294901760
      %1625 = vmatpush1.xpose.msra.mxu0 %v1624
      %1626 = vmatprep.subr.mxu0 0.0
      %v1627 = vand.u32 %v507, 4294901760
      %1628 = vmatpush1.xpose.msra.mxu0 %v1627
      %1629 = vmatprep.subr.mxu0 0.0
      %v1630 = vand.u32 %v504, 4294901760
      %1631 = vmatpush1.xpose.msra.mxu0 %v1630
      %1632 = vmatprep.subr.mxu0 0.0
      %v1633 = vand.u32 %v501, 4294901760
      %1634 = vmatpush1.xpose.msra.mxu0 %v1633
      %1635 = vmatprep.subr.mxu0 0.0
      %v1636 = vand.u32 %v498, 4294901760
      %1637 = vmatpush1.xpose.msra.mxu0 %v1636
      %1638 = vmatprep.subr.mxu0 0.0
      %v1639 = vand.u32 %v495, 4294901760
      %1640 = vmatpush1.xpose.msra.mxu0 %v1639
      %1641 = vmatprep.subr.mxu0 0.0
      %v1642 = vand.u32 %v492, 4294901760
      %1643 = vmatpush1.xpose.msra.mxu0 %v1642
      %1644 = vmatprep.subr.mxu0 0.0
      %v1645 = vand.u32 %v489, 4294901760
      %1646 = vmatpush1.xpose.msra.mxu0 %v1645
      %1647 = vmatprep.subr.mxu0 0.0
      %v1648 = vand.u32 %v486, 4294901760
      %1649 = vmatpush1.xpose.msra.mxu0 %v1648
      %1650 = vmatprep.subr.mxu0 0.0
      %v1651 = vand.u32 %v483, 4294901760
      %1652 = vmatpush1.xpose.msra.mxu0 %v1651
      %1653 = vmatprep.subr.mxu0 0.0
      %v1654 = vand.u32 %v480, 4294901760
      %1655 = vmatpush1.xpose.msra.mxu0 %v1654
      %1656 = vmatprep.subr.mxu0 0.0
      %v1657 = vand.u32 %v477, 4294901760
      %1658 = vmatpush1.xpose.msra.mxu0 %v1657
      %1659 = vmatprep.subr.mxu0 0.0
      %v1660 = vand.u32 %v474, 4294901760
      %1661 = vmatpush1.xpose.msra.mxu0 %v1660
      %1662 = vmatprep.subr.mxu0 0.0
      %v1663 = vand.u32 %v567, 4294901760
      %1664 = vmatpush2.xpose.msra.mxu0 %v1663
      %1665 = vmatprep.subr.mxu0 0.0
      %v1666 = vand.u32 %v564, 4294901760
      %1667 = vmatpush2.xpose.msra.mxu0 %v1666
      %1668 = vmatprep.subr.mxu0 0.0
      %v1669 = vand.u32 %v561, 4294901760
      %1670 = vmatpush2.xpose.msra.mxu0 %v1669
      %1671 = vmatprep.subr.mxu0 0.0
      %v1672 = vand.u32 %v558, 4294901760
      %1673 = vmatpush2.xpose.msra.mxu0 %v1672
      %1674 = vmatprep.subr.mxu0 0.0
      %v1675 = vand.u32 %v555, 4294901760
      %1676 = vmatpush2.xpose.msra.mxu0 %v1675
      %1677 = vmatprep.subr.mxu0 0.0
      %v1678 = vand.u32 %v552, 4294901760
      %1679 = vmatpush2.xpose.msra.mxu0 %v1678
      %1680 = vmatprep.subr.mxu0 0.0
      %v1681 = vand.u32 %v549, 4294901760
      %1682 = vmatpush2.xpose.msra.mxu0 %v1681
      %1683 = vmatprep.subr.mxu0 0.0
      %v1684 = vand.u32 %v546, 4294901760
      %1685 = vmatpush2.xpose.msra.mxu0 %v1684
      %1686 = vmatprep.subr.mxu0 0.0
      %v1687 = vand.u32 %v543, 4294901760
      %1688 = vmatpush2.xpose.msra.mxu0 %v1687
      %1689 = vmatprep.subr.mxu0 0.0
      %v1690 = vand.u32 %v540, 4294901760
      %1691 = vmatpush2.xpose.msra.mxu0 %v1690
      %1692 = vmatprep.subr.mxu0 0.0
      %v1693 = vand.u32 %v537, 4294901760
      %1694 = vmatpush2.xpose.msra.mxu0 %v1693
      %1695 = vmatprep.subr.mxu0 0.0
      %v1696 = vand.u32 %v534, 4294901760
      %1697 = vmatpush2.xpose.msra.mxu0 %v1696
      %1698 = vmatprep.subr.mxu0 0.0
      %v1699 = vand.u32 %v531, 4294901760
      %1700 = vmatpush2.xpose.msra.mxu0 %v1699
      %1701 = vmatprep.subr.mxu0 0.0
      %v1702 = vand.u32 %v528, 4294901760
      %1703 = vmatpush2.xpose.msra.mxu0 %v1702
      %1704 = vmatprep.subr.mxu0 0.0
      %v1705 = vand.u32 %v525, 4294901760
      %1706 = vmatpush2.xpose.msra.mxu0 %v1705
      %1707 = vmatprep.subr.mxu0 0.0
      %v1708 = vand.u32 %v522, 4294901760
      %1709 = vmatpush2.xpose.msra.mxu0 %v1708
      %1710 = vmatprep.mubr.f32.mxu0 0.0
      %v1711 = vand.u32 %v450, 4294901760
      %1712 = vmatmul.mubr.f32.gmra.mxu0 %v1711
      %v1713 = vpop.f32.mrf.mxu0
      %v1714 = vadd.f32 %v1561, %v1713
      %v1715 = vpop.f32.mrf.mxu0
      %v1716 = vadd.f32 %v1563, %v1715
      %1717 = vmatprep.mubr.f32.mxu0 0.0
      %v1718 = vand.u32 %v453, 4294901760
      %1719 = vmatmul.mubr.f32.gmra.mxu0 %v1718
      %v1720 = vpop.f32.mrf.mxu0
      %v1721 = vadd.f32 %v1568, %v1720
      %v1722 = vpop.f32.mrf.mxu0
      %v1723 = vadd.f32 %v1570, %v1722
      %1724 = vmatprep.mubr.f32.mxu0 0.0
      %v1725 = vand.u32 %v456, 4294901760
      %1726 = vmatmul.mubr.f32.gmra.mxu0 %v1725
      %v1727 = vpop.f32.mrf.mxu0
      %v1728 = vadd.f32 %v1575, %v1727
      %v1729 = vpop.f32.mrf.mxu0
      %v1730 = vadd.f32 %v1577, %v1729
      %1731 = vmatprep.mubr.f32.mxu0 0.0
      %v1732 = vand.u32 %v459, 4294901760
      %1733 = vmatmul.mubr.f32.gmra.mxu0 %v1732
      %v1734 = vpop.f32.mrf.mxu0
      %v1735 = vadd.f32 %v1582, %v1734
      %v1736 = vpop.f32.mrf.mxu0
      %v1737 = vadd.f32 %v1584, %v1736
      %1738 = vmatprep.mubr.f32.mxu0 0.0
      %v1739 = vand.u32 %v462, 4294901760
      %1740 = vmatmul.mubr.f32.gmra.mxu0 %v1739
      %v1741 = vpop.f32.mrf.mxu0
      %v1742 = vadd.f32 %v1589, %v1741
      %v1743 = vpop.f32.mrf.mxu0
      %v1744 = vadd.f32 %v1591, %v1743
      %1745 = vmatprep.mubr.f32.mxu0 0.0
      %v1746 = vand.u32 %v465, 4294901760
      %1747 = vmatmul.mubr.f32.gmra.mxu0 %v1746
      %v1748 = vpop.f32.mrf.mxu0
      %v1749 = vadd.f32 %v1596, %v1748
      %v1750 = vpop.f32.mrf.mxu0
      %v1751 = vadd.f32 %v1598, %v1750
      %1752 = vmatprep.mubr.f32.mxu0 0.0
      %v1753 = vand.u32 %v468, 4294901760
      %1754 = vmatmul.mubr.f32.gmra.mxu0 %v1753
      %v1755 = vpop.f32.mrf.mxu0
      %v1756 = vadd.f32 %v1603, %v1755
      %v1757 = vpop.f32.mrf.mxu0
      %v1758 = vadd.f32 %v1605, %v1757
      %1759 = vmatprep.mubr.f32.mxu0 0.0
      %v1760 = vand.u32 %v471, 4294901760
      %1761 = vmatmul.mubr.f32.gmra.mxu0 %v1760
      %v1762 = vpop.f32.mrf.mxu0
      %v1763 = vadd.f32 %v1610, %v1762
      %v1764 = vpop.f32.mrf.mxu0
      %v1765 = vadd.f32 %v1612, %v1764
      %1766 = vdwg.mxu0
      %v1767 = vmul.f32 %v1714, 0.5
      %v1768 = vmul.f32 %v1716, 0.5
      %v1769 = vmul.f32 %v1721, 0.5
      %v1770 = vmul.f32 %v1723, 0.5
      %v1771 = vmul.f32 %v1728, 0.5
      %v1772 = vmul.f32 %v1730, 0.5
      %v1773 = vmul.f32 %v1735, 0.5
      %v1774 = vmul.f32 %v1737, 0.5
      %v1775 = vmul.f32 %v1742, 0.5
      %v1776 = vmul.f32 %v1744, 0.5
      %v1777 = vmul.f32 %v1749, 0.5
      %v1778 = vmul.f32 %v1751, 0.5
      %v1779 = vmul.f32 %v1756, 0.5
      %v1780 = vmul.f32 %v1758, 0.5
      %v1781 = vmul.f32 %v1763, 0.5
      %v1782 = vmul.f32 %v1765, 0.5
      %v1783 = vmul.f32 %v1714, 0.70710677
      %v1784 = vmul.f32 %v1716, 0.70710677
      %v1785 = vmul.f32 %v1721, 0.70710677
      %v1786 = vmul.f32 %v1723, 0.70710677
      %v1787 = vmul.f32 %v1728, 0.70710677
      %v1788 = vmul.f32 %v1730, 0.70710677
      %v1789 = vmul.f32 %v1735, 0.70710677
      %v1790 = vmul.f32 %v1737, 0.70710677
      %v1791 = vmul.f32 %v1742, 0.70710677
      %v1792 = vmul.f32 %v1744, 0.70710677
      %v1793 = vmul.f32 %v1749, 0.70710677
      %v1794 = vmul.f32 %v1751, 0.70710677
      %v1795 = vmul.f32 %v1756, 0.70710677
      %v1796 = vmul.f32 %v1758, 0.70710677
      %v1797 = vmul.f32 %v1763, 0.70710677
      %v1798 = vmul.f32 %v1765, 0.70710677
      %vm1799 = vcmp.ge.f32.partialorder %v1783, 0.0
      %vm1800 = vcmp.ge.f32.partialorder %v1784, 0.0
      %vm1801 = vcmp.ge.f32.partialorder %v1785, 0.0
      %vm1802 = vcmp.ge.f32.partialorder %v1786, 0.0
      %vm1803 = vcmp.ge.f32.partialorder %v1787, 0.0
      %vm1804 = vcmp.ge.f32.partialorder %v1788, 0.0
      %vm1805 = vcmp.ge.f32.partialorder %v1789, 0.0
      %vm1806 = vcmp.ge.f32.partialorder %v1790, 0.0
      %vm1807 = vcmp.ge.f32.partialorder %v1791, 0.0
      %vm1808 = vcmp.ge.f32.partialorder %v1792, 0.0
      %vm1809 = vcmp.ge.f32.partialorder %v1793, 0.0
      %vm1810 = vcmp.ge.f32.partialorder %v1794, 0.0
      %vm1811 = vcmp.ge.f32.partialorder %v1795, 0.0
      %vm1812 = vcmp.ge.f32.partialorder %v1796, 0.0
      %vm1813 = vcmp.ge.f32.partialorder %v1797, 0.0
      %vm1814 = vcmp.ge.f32.partialorder %v1798, 0.0
      %v1815 = vsel %vm1799, 1.0, -1.0
      %v1816 = vsel %vm1800, 1.0, -1.0
      %v1817 = vsel %vm1801, 1.0, -1.0
      %v1818 = vsel %vm1802, 1.0, -1.0
      %v1819 = vsel %vm1803, 1.0, -1.0
      %v1820 = vsel %vm1804, 1.0, -1.0
      %v1821 = vsel %vm1805, 1.0, -1.0
      %v1822 = vsel %vm1806, 1.0, -1.0
      %v1823 = vsel %vm1807, 1.0, -1.0
      %v1824 = vsel %vm1808, 1.0, -1.0
      %v1825 = vsel %vm1809, 1.0, -1.0
      %v1826 = vsel %vm1810, 1.0, -1.0
      %v1827 = vsel %vm1811, 1.0, -1.0
      %v1828 = vsel %vm1812, 1.0, -1.0
      %v1829 = vsel %vm1813, 1.0, -1.0
      %v1830 = vsel %vm1814, 1.0, -1.0
      %v1831 = vand.u32 2147483647, %v1783
      %v1832 = vand.u32 2147483647, %v1784
      %v1833 = vand.u32 2147483647, %v1785
      %v1834 = vand.u32 2147483647, %v1786
      %v1835 = vand.u32 2147483647, %v1787
      %v1836 = vand.u32 2147483647, %v1788
      %v1837 = vand.u32 2147483647, %v1789
      %v1838 = vand.u32 2147483647, %v1790
      %v1839 = vand.u32 2147483647, %v1791
      %v1840 = vand.u32 2147483647, %v1792
      %v1841 = vand.u32 2147483647, %v1793
      %v1842 = vand.u32 2147483647, %v1794
      %v1843 = vand.u32 2147483647, %v1795
      %v1844 = vand.u32 2147483647, %v1796
      %v1845 = vand.u32 2147483647, %v1797
      %v1846 = vand.u32 2147483647, %v1798
      %v1847 = vmul.f32 %v1831, 0.3275911
      %v1848 = vmul.f32 %v1832, 0.3275911
      %v1849 = vmul.f32 %v1833, 0.3275911
      %v1850 = vmul.f32 %v1834, 0.3275911
      %v1851 = vmul.f32 %v1835, 0.3275911
      %v1852 = vmul.f32 %v1836, 0.3275911
      %v1853 = vmul.f32 %v1837, 0.3275911
      %v1854 = vmul.f32 %v1838, 0.3275911
      %v1855 = vmul.f32 %v1839, 0.3275911
      %v1856 = vmul.f32 %v1840, 0.3275911
      %v1857 = vmul.f32 %v1841, 0.3275911
      %v1858 = vmul.f32 %v1842, 0.3275911
      %v1859 = vmul.f32 %v1843, 0.3275911
      %v1860 = vmul.f32 %v1844, 0.3275911
      %v1861 = vmul.f32 %v1845, 0.3275911
      %v1862 = vmul.f32 %v1846, 0.3275911
      %v1863 = vadd.f32 %v1847, 1.0
      %v1864 = vadd.f32 %v1848, 1.0
      %v1865 = vadd.f32 %v1849, 1.0
      %v1866 = vadd.f32 %v1850, 1.0
      %v1867 = vadd.f32 %v1851, 1.0
      %v1868 = vadd.f32 %v1852, 1.0
      %v1869 = vadd.f32 %v1853, 1.0
      %v1870 = vadd.f32 %v1854, 1.0
      %v1871 = vadd.f32 %v1855, 1.0
      %v1872 = vadd.f32 %v1856, 1.0
      %v1873 = vadd.f32 %v1857, 1.0
      %v1874 = vadd.f32 %v1858, 1.0
      %v1875 = vadd.f32 %v1859, 1.0
      %v1876 = vadd.f32 %v1860, 1.0
      %v1877 = vadd.f32 %v1861, 1.0
      %v1878 = vadd.f32 %v1862, 1.0
      %v1879 = vrcp.pop %v1863
      %v1880 = vmul.f32 1.0, %v1879
      %v1881 = vrcp.pop %v1864
      %v1882 = vmul.f32 1.0, %v1881
      %v1883 = vrcp.pop %v1865
      %v1884 = vmul.f32 1.0, %v1883
      %v1885 = vrcp.pop %v1866
      %v1886 = vmul.f32 1.0, %v1885
      %v1887 = vrcp.pop %v1867
      %v1888 = vmul.f32 1.0, %v1887
      %v1889 = vrcp.pop %v1868
      %v1890 = vmul.f32 1.0, %v1889
      %v1891 = vrcp.pop %v1869
      %v1892 = vmul.f32 1.0, %v1891
      %v1893 = vrcp.pop %v1870
      %v1894 = vmul.f32 1.0, %v1893
      %v1895 = vrcp.pop %v1871
      %v1896 = vmul.f32 1.0, %v1895
      %v1897 = vrcp.pop %v1872
      %v1898 = vmul.f32 1.0, %v1897
      %v1899 = vrcp.pop %v1873
      %v1900 = vmul.f32 1.0, %v1899
      %v1901 = vrcp.pop %v1874
      %v1902 = vmul.f32 1.0, %v1901
      %v1903 = vrcp.pop %v1875
      %v1904 = vmul.f32 1.0, %v1903
      %v1905 = vrcp.pop %v1876
      %v1906 = vmul.f32 1.0, %v1905
      %v1907 = vrcp.pop %v1877
      %v1908 = vmul.f32 1.0, %v1907
      %v1909 = vrcp.pop %v1878
      %v1910 = vmul.f32 1.0, %v1909
      %v1911 = vmul.f32 %v1880, 1.0614054
      %v1912 = vmul.f32 %v1882, 1.0614054
      %v1913 = vmul.f32 %v1884, 1.0614054
      %v1914 = vmul.f32 %v1886, 1.0614054
      %v1915 = vmul.f32 %v1888, 1.0614054
      %v1916 = vmul.f32 %v1890, 1.0614054
      %v1917 = vmul.f32 %v1892, 1.0614054
      %v1918 = vmul.f32 %v1894, 1.0614054
      %v1919 = vmul.f32 %v1896, 1.0614054
      %v1920 = vmul.f32 %v1898, 1.0614054
      %v1921 = vmul.f32 %v1900, 1.0614054
      %v1922 = vmul.f32 %v1902, 1.0614054
      %v1923 = vmul.f32 %v1904, 1.0614054
      %v1924 = vmul.f32 %v1906, 1.0614054
      %v1925 = vmul.f32 %v1908, 1.0614054
      %v1926 = vmul.f32 %v1910, 1.0614054
      %v1927 = vadd.f32 %v1911, -1.4531521
      %v1928 = vadd.f32 %v1912, -1.4531521
      %v1929 = vadd.f32 %v1913, -1.4531521
      %v1930 = vadd.f32 %v1914, -1.4531521
      %v1931 = vadd.f32 %v1915, -1.4531521
      %v1932 = vadd.f32 %v1916, -1.4531521
      %v1933 = vadd.f32 %v1917, -1.4531521
      %v1934 = vadd.f32 %v1918, -1.4531521
      %v1935 = vadd.f32 %v1919, -1.4531521
      %v1936 = vadd.f32 %v1920, -1.4531521
      %v1937 = vadd.f32 %v1921, -1.4531521
      %v1938 = vadd.f32 %v1922, -1.4531521
      %v1939 = vadd.f32 %v1923, -1.4531521
      %v1940 = vadd.f32 %v1924, -1.4531521
      %v1941 = vadd.f32 %v1925, -1.4531521
      %v1942 = vadd.f32 %v1926, -1.4531521
      %v1943 = vmul.f32 %v1927, %v1880
      %v1944 = vmul.f32 %v1928, %v1882
      %v1945 = vmul.f32 %v1929, %v1884
      %v1946 = vmul.f32 %v1930, %v1886
      %v1947 = vmul.f32 %v1931, %v1888
      %v1948 = vmul.f32 %v1932, %v1890
      %v1949 = vmul.f32 %v1933, %v1892
      %v1950 = vmul.f32 %v1934, %v1894
      %v1951 = vmul.f32 %v1935, %v1896
      %v1952 = vmul.f32 %v1936, %v1898
      %v1953 = vmul.f32 %v1937, %v1900
      %v1954 = vmul.f32 %v1938, %v1902
      %v1955 = vmul.f32 %v1939, %v1904
      %v1956 = vmul.f32 %v1940, %v1906
      %v1957 = vmul.f32 %v1941, %v1908
      %v1958 = vmul.f32 %v1942, %v1910
      %v1959 = vadd.f32 %v1943, 1.4214138
      %v1960 = vadd.f32 %v1944, 1.4214138
      %v1961 = vadd.f32 %v1945, 1.4214138
      %v1962 = vadd.f32 %v1946, 1.4214138
      %v1963 = vadd.f32 %v1947, 1.4214138
      %v1964 = vadd.f32 %v1948, 1.4214138
      %v1965 = vadd.f32 %v1949, 1.4214138
      %v1966 = vadd.f32 %v1950, 1.4214138
      %v1967 = vadd.f32 %v1951, 1.4214138
      %v1968 = vadd.f32 %v1952, 1.4214138
      %v1969 = vadd.f32 %v1953, 1.4214138
      %v1970 = vadd.f32 %v1954, 1.4214138
      %v1971 = vadd.f32 %v1955, 1.4214138
      %v1972 = vadd.f32 %v1956, 1.4214138
      %v1973 = vadd.f32 %v1957, 1.4214138
      %v1974 = vadd.f32 %v1958, 1.4214138
      %v1975 = vmul.f32 %v1959, %v1880
      %v1976 = vmul.f32 %v1960, %v1882
      %v1977 = vmul.f32 %v1961, %v1884
      %v1978 = vmul.f32 %v1962, %v1886
      %v1979 = vmul.f32 %v1963, %v1888
      %v1980 = vmul.f32 %v1964, %v1890
      %v1981 = vmul.f32 %v1965, %v1892
      %v1982 = vmul.f32 %v1966, %v1894
      %v1983 = vmul.f32 %v1967, %v1896
      %v1984 = vmul.f32 %v1968, %v1898
      %v1985 = vmul.f32 %v1969, %v1900
      %v1986 = vmul.f32 %v1970, %v1902
      %v1987 = vmul.f32 %v1971, %v1904
      %v1988 = vmul.f32 %v1972, %v1906
      %v1989 = vmul.f32 %v1973, %v1908
      %v1990 = vmul.f32 %v1974, %v1910
      %v1991 = vadd.f32 %v1975, -0.28449672
      %v1992 = vadd.f32 %v1976, -0.28449672
      %v1993 = vadd.f32 %v1977, -0.28449672
      %v1994 = vadd.f32 %v1978, -0.28449672
      %v1995 = vadd.f32 %v1979, -0.28449672
      %v1996 = vadd.f32 %v1980, -0.28449672
      %v1997 = vadd.f32 %v1981, -0.28449672
      %v1998 = vadd.f32 %v1982, -0.28449672
      %v1999 = vadd.f32 %v1983, -0.28449672
      %v2000 = vadd.f32 %v1984, -0.28449672
      %v2001 = vadd.f32 %v1985, -0.28449672
      %v2002 = vadd.f32 %v1986, -0.28449672
      %v2003 = vadd.f32 %v1987, -0.28449672
      %v2004 = vadd.f32 %v1988, -0.28449672
      %v2005 = vadd.f32 %v1989, -0.28449672
      %v2006 = vadd.f32 %v1990, -0.28449672
      %v2007 = vmul.f32 %v1991, %v1880
      %v2008 = vmul.f32 %v1992, %v1882
      %v2009 = vmul.f32 %v1993, %v1884
      %v2010 = vmul.f32 %v1994, %v1886
      %v2011 = vmul.f32 %v1995, %v1888
      %v2012 = vmul.f32 %v1996, %v1890
      %v2013 = vmul.f32 %v1997, %v1892
      %v2014 = vmul.f32 %v1998, %v1894
      %v2015 = vmul.f32 %v1999, %v1896
      %v2016 = vmul.f32 %v2000, %v1898
      %v2017 = vmul.f32 %v2001, %v1900
      %v2018 = vmul.f32 %v2002, %v1902
      %v2019 = vmul.f32 %v2003, %v1904
      %v2020 = vmul.f32 %v2004, %v1906
      %v2021 = vmul.f32 %v2005, %v1908
      %v2022 = vmul.f32 %v2006, %v1910
      %v2023 = vadd.f32 %v2007, 0.2548296
      %v2024 = vadd.f32 %v2008, 0.2548296
      %v2025 = vadd.f32 %v2009, 0.2548296
      %v2026 = vadd.f32 %v2010, 0.2548296
      %v2027 = vadd.f32 %v2011, 0.2548296
      %v2028 = vadd.f32 %v2012, 0.2548296
      %v2029 = vadd.f32 %v2013, 0.2548296
      %v2030 = vadd.f32 %v2014, 0.2548296
      %v2031 = vadd.f32 %v2015, 0.2548296
      %v2032 = vadd.f32 %v2016, 0.2548296
      %v2033 = vadd.f32 %v2017, 0.2548296
      %v2034 = vadd.f32 %v2018, 0.2548296
      %v2035 = vadd.f32 %v2019, 0.2548296
      %v2036 = vadd.f32 %v2020, 0.2548296
      %v2037 = vadd.f32 %v2021, 0.2548296
      %v2038 = vadd.f32 %v2022, 0.2548296
      %v2039 = vmul.f32 %v2023, %v1880
      %v2040 = vmul.f32 %v2024, %v1882
      %v2041 = vmul.f32 %v2025, %v1884
      %v2042 = vmul.f32 %v2026, %v1886
      %v2043 = vmul.f32 %v2027, %v1888
      %v2044 = vmul.f32 %v2028, %v1890
      %v2045 = vmul.f32 %v2029, %v1892
      %v2046 = vmul.f32 %v2030, %v1894
      %v2047 = vmul.f32 %v2031, %v1896
      %v2048 = vmul.f32 %v2032, %v1898
      %v2049 = vmul.f32 %v2033, %v1900
      %v2050 = vmul.f32 %v2034, %v1902
      %v2051 = vmul.f32 %v2035, %v1904
      %v2052 = vmul.f32 %v2036, %v1906
      %v2053 = vmul.f32 %v2037, %v1908
      %v2054 = vmul.f32 %v2038, %v1910
      %v2055 = vsub.f32 0.0, %v1831
      %v2056 = vsub.f32 0.0, %v1832
      %v2057 = vsub.f32 0.0, %v1833
      %v2058 = vsub.f32 0.0, %v1834
      %v2059 = vsub.f32 0.0, %v1835
      %v2060 = vsub.f32 0.0, %v1836
      %v2061 = vsub.f32 0.0, %v1837
      %v2062 = vsub.f32 0.0, %v1838
      %v2063 = vsub.f32 0.0, %v1839
      %v2064 = vsub.f32 0.0, %v1840
      %v2065 = vsub.f32 0.0, %v1841
      %v2066 = vsub.f32 0.0, %v1842
      %v2067 = vsub.f32 0.0, %v1843
      %v2068 = vsub.f32 0.0, %v1844
      %v2069 = vsub.f32 0.0, %v1845
      %v2070 = vsub.f32 0.0, %v1846
      %v2071 = vmul.f32 %v2055, %v1831
      %v2072 = vmul.f32 %v2056, %v1832
      %v2073 = vmul.f32 %v2057, %v1833
      %v2074 = vmul.f32 %v2058, %v1834
      %v2075 = vmul.f32 %v2059, %v1835
      %v2076 = vmul.f32 %v2060, %v1836
      %v2077 = vmul.f32 %v2061, %v1837
      %v2078 = vmul.f32 %v2062, %v1838
      %v2079 = vmul.f32 %v2063, %v1839
      %v2080 = vmul.f32 %v2064, %v1840
      %v2081 = vmul.f32 %v2065, %v1841
      %v2082 = vmul.f32 %v2066, %v1842
      %v2083 = vmul.f32 %v2067, %v1843
      %v2084 = vmul.f32 %v2068, %v1844
      %v2085 = vmul.f32 %v2069, %v1845
      %v2086 = vmul.f32 %v2070, %v1846
      %v2087 = vmul.f32 %v2071, 1.442695
      %v2088 = vpow.pop %v2087
      %v2089 = vmul.f32 %v2072, 1.442695
      %v2090 = vpow.pop %v2089
      %v2091 = vmul.f32 %v2073, 1.442695
      %v2092 = vpow.pop %v2091
      %v2093 = vmul.f32 %v2074, 1.442695
      %v2094 = vpow.pop %v2093
      %v2095 = vmul.f32 %v2075, 1.442695
      %v2096 = vpow.pop %v2095
      %v2097 = vmul.f32 %v2076, 1.442695
      %v2098 = vpow.pop %v2097
      %v2099 = vmul.f32 %v2077, 1.442695
      %v2100 = vpow.pop %v2099
      %v2101 = vmul.f32 %v2078, 1.442695
      %v2102 = vpow.pop %v2101
      %v2103 = vmul.f32 %v2079, 1.442695
      %v2104 = vpow.pop %v2103
      %v2105 = vmul.f32 %v2080, 1.442695
      %v2106 = vpow.pop %v2105
      %v2107 = vmul.f32 %v2081, 1.442695
      %v2108 = vpow.pop %v2107
      %v2109 = vmul.f32 %v2082, 1.442695
      %v2110 = vpow.pop %v2109
      %v2111 = vmul.f32 %v2083, 1.442695
      %v2112 = vpow.pop %v2111
      %v2113 = vmul.f32 %v2084, 1.442695
      %v2114 = vpow.pop %v2113
      %v2115 = vmul.f32 %v2085, 1.442695
      %v2116 = vpow.pop %v2115
      %v2117 = vmul.f32 %v2086, 1.442695
      %v2118 = vpow.pop %v2117
      %v2119 = vmul.f32 %v2039, %v2088
      %v2120 = vmul.f32 %v2040, %v2090
      %v2121 = vmul.f32 %v2041, %v2092
      %v2122 = vmul.f32 %v2042, %v2094
      %v2123 = vmul.f32 %v2043, %v2096
      %v2124 = vmul.f32 %v2044, %v2098
      %v2125 = vmul.f32 %v2045, %v2100
      %v2126 = vmul.f32 %v2046, %v2102
      %v2127 = vmul.f32 %v2047, %v2104
      %v2128 = vmul.f32 %v2048, %v2106
      %v2129 = vmul.f32 %v2049, %v2108
      %v2130 = vmul.f32 %v2050, %v2110
      %v2131 = vmul.f32 %v2051, %v2112
      %v2132 = vmul.f32 %v2052, %v2114
      %v2133 = vmul.f32 %v2053, %v2116
      %v2134 = vmul.f32 %v2054, %v2118
      %v2135 = vsub.f32 1.0, %v2119
      %v2136 = vsub.f32 1.0, %v2120
      %v2137 = vsub.f32 1.0, %v2121
      %v2138 = vsub.f32 1.0, %v2122
      %v2139 = vsub.f32 1.0, %v2123
      %v2140 = vsub.f32 1.0, %v2124
      %v2141 = vsub.f32 1.0, %v2125
      %v2142 = vsub.f32 1.0, %v2126
      %v2143 = vsub.f32 1.0, %v2127
      %v2144 = vsub.f32 1.0, %v2128
      %v2145 = vsub.f32 1.0, %v2129
      %v2146 = vsub.f32 1.0, %v2130
      %v2147 = vsub.f32 1.0, %v2131
      %v2148 = vsub.f32 1.0, %v2132
      %v2149 = vsub.f32 1.0, %v2133
      %v2150 = vsub.f32 1.0, %v2134
      %v2151 = vmul.f32 %v1815, %v2135
      %v2152 = vmul.f32 %v1816, %v2136
      %v2153 = vmul.f32 %v1817, %v2137
      %v2154 = vmul.f32 %v1818, %v2138
      %v2155 = vmul.f32 %v1819, %v2139
      %v2156 = vmul.f32 %v1820, %v2140
      %v2157 = vmul.f32 %v1821, %v2141
      %v2158 = vmul.f32 %v1822, %v2142
      %v2159 = vmul.f32 %v1823, %v2143
      %v2160 = vmul.f32 %v1824, %v2144
      %v2161 = vmul.f32 %v1825, %v2145
      %v2162 = vmul.f32 %v1826, %v2146
      %v2163 = vmul.f32 %v1827, %v2147
      %v2164 = vmul.f32 %v1828, %v2148
      %v2165 = vmul.f32 %v1829, %v2149
      %v2166 = vmul.f32 %v1830, %v2150
      %v2167 = vadd.f32 %v2151, 1.0
      %v2168 = vadd.f32 %v2152, 1.0
      %v2169 = vadd.f32 %v2153, 1.0
      %v2170 = vadd.f32 %v2154, 1.0
      %v2171 = vadd.f32 %v2155, 1.0
      %v2172 = vadd.f32 %v2156, 1.0
      %v2173 = vadd.f32 %v2157, 1.0
      %v2174 = vadd.f32 %v2158, 1.0
      %v2175 = vadd.f32 %v2159, 1.0
      %v2176 = vadd.f32 %v2160, 1.0
      %v2177 = vadd.f32 %v2161, 1.0
      %v2178 = vadd.f32 %v2162, 1.0
      %v2179 = vadd.f32 %v2163, 1.0
      %v2180 = vadd.f32 %v2164, 1.0
      %v2181 = vadd.f32 %v2165, 1.0
      %v2182 = vadd.f32 %v2166, 1.0
      %v2183 = vmul.f32 %v1767, %v2167
      %v2184 = vmul.f32 %v1768, %v2168
      %v2185 = vmul.f32 %v1769, %v2169
      %v2186 = vmul.f32 %v1770, %v2170
      %v2187 = vmul.f32 %v1771, %v2171
      %v2188 = vmul.f32 %v1772, %v2172
      %v2189 = vmul.f32 %v1773, %v2173
      %v2190 = vmul.f32 %v1774, %v2174
      %v2191 = vmul.f32 %v1775, %v2175
      %v2192 = vmul.f32 %v1776, %v2176
      %v2193 = vmul.f32 %v1777, %v2177
      %v2194 = vmul.f32 %v1778, %v2178
      %v2195 = vmul.f32 %v1779, %v2179
      %v2196 = vmul.f32 %v1780, %v2180
      %v2197 = vmul.f32 %v1781, %v2181
      %v2198 = vmul.f32 %v1782, %v2182
      %v2199 = vadd.f32 %v2191, %v2193
      %v2200 = vadd.f32 %v2199, %v2195
      %v2201 = vadd.f32 %v2200, %v2197
      %v2202 = vrot.slane %v2201, 4
      %v2203 = vadd.f32 %v2201, %v2202
      %v2204 = vrot.slane %v2203, 2
      %v2205 = vadd.f32 %v2203, %v2204
      %v2206 = vrot.slane %v2205, 1
      %v2207 = vadd.f32 %v2205, %v2206
      %v2208 = vadd.f32 %v2192, %v2194
      %v2209 = vadd.f32 %v2208, %v2196
      %v2210 = vadd.f32 %v2209, %v2198
      %v2211 = vrot.slane %v2210, 4
      %v2212 = vadd.f32 %v2210, %v2211
      %v2213 = vrot.slane %v2212, 2
      %v2214 = vadd.f32 %v2212, %v2213
      %v2215 = vrot.slane %v2214, 1
      %v2216 = vadd.f32 %v2214, %v2215
      %v2217 = vrcp.pop 32.0
      %v2218 = vmul.f32 %v2207, %v2217
      %v2219 = vmul.f32 %v2216, %v2217
      %v2220 = vsub.f32 %v2191, %v2218
      %v2221 = vsub.f32 %v2192, %v2219
      %v2222 = vsub.f32 %v2193, %v2218
      %v2223 = vsub.f32 %v2194, %v2219
      %v2224 = vsub.f32 %v2195, %v2218
      %v2225 = vsub.f32 %v2196, %v2219
      %v2226 = vsub.f32 %v2197, %v2218
      %v2227 = vsub.f32 %v2198, %v2219
      %v2228 = vmul.f32 %v2220, %v2220
      %v2229 = vmul.f32 %v2221, %v2221
      %v2230 = vmul.f32 %v2222, %v2222
      %v2231 = vmul.f32 %v2223, %v2223
      %v2232 = vmul.f32 %v2224, %v2224
      %v2233 = vmul.f32 %v2225, %v2225
      %v2234 = vmul.f32 %v2226, %v2226
      %v2235 = vmul.f32 %v2227, %v2227
      %v2236 = vadd.f32 %v2228, %v2230
      %v2237 = vadd.f32 %v2236, %v2232
      %v2238 = vadd.f32 %v2237, %v2234
      %v2239 = vrot.slane %v2238, 4
      %v2240 = vadd.f32 %v2238, %v2239
      %v2241 = vrot.slane %v2240, 2
      %v2242 = vadd.f32 %v2240, %v2241
      %v2243 = vrot.slane %v2242, 1
      %v2244 = vadd.f32 %v2242, %v2243
      %v2245 = vadd.f32 %v2229, %v2231
      %v2246 = vadd.f32 %v2245, %v2233
      %v2247 = vadd.f32 %v2246, %v2235
      %v2248 = vrot.slane %v2247, 4
      %v2249 = vadd.f32 %v2247, %v2248
      %v2250 = vrot.slane %v2249, 2
      %v2251 = vadd.f32 %v2249, %v2250
      %v2252 = vrot.slane %v2251, 1
      %v2253 = vadd.f32 %v2251, %v2252
      %v2254 = vmul.f32 %v2244, %v2217
      %v2255 = vmul.f32 %v2253, %v2217
      %v2256 = vadd.f32 %v2254, 1e-05
      %v2257 = vadd.f32 %v2255, 1e-05
      %v2258 = vrsqrt.pop %v2256
      %v2259 = vrsqrt.pop %v2257
      %v2260 = vmul.f32 %v2220, %v2258
      %v2261 = vmul.f32 %v2221, %v2259
      %v2262 = vmul.f32 %v2222, %v2258
      %v2263 = vmul.f32 %v2223, %v2259
      %v2264 = vmul.f32 %v2224, %v2258
      %v2265 = vmul.f32 %v2225, %v2259
      %v2266 = vmul.f32 %v2226, %v2258
      %v2267 = vmul.f32 %v2227, %v2259
      %v2268 = vld [vmem:[%s3] sm:$0xff]
      %v2269 = vld [vmem:[%s3 + $0x8] sm:$0xff]
      %v2270 = vld [vmem:[%s3 + $0x10] sm:$0xff]
      %v2271 = vld [vmem:[%s3 + $0x18] sm:$0xff]
      %2273 = vset.pattern.permute.xlu0 0
      %2274 = vperm.xlu0 %2273, %v2268
      %v2275 = vpop.permute.xlu0 %2274
      %2278 = vset.pattern.permute.xlu0 0
      %2279 = vperm.xlu0 %2278, %v2269
      %v2280 = vpop.permute.xlu0 %2279
      %2283 = vset.pattern.permute.xlu0 0
      %2284 = vperm.xlu0 %2283, %v2270
      %v2285 = vpop.permute.xlu0 %2284
      %2288 = vset.pattern.permute.xlu0 0
      %2289 = vperm.xlu0 %2288, %v2271
      %v2290 = vpop.permute.xlu0 %2289
      %v2292 = vmul.f32 %v2260, %v2275
      %v2293 = vmul.f32 %v2261, %v2275
      %v2294 = vmul.f32 %v2262, %v2280
      %v2295 = vmul.f32 %v2263, %v2280
      %v2296 = vmul.f32 %v2264, %v2285
      %v2297 = vmul.f32 %v2265, %v2285
      %v2298 = vmul.f32 %v2266, %v2290
      %v2299 = vmul.f32 %v2267, %v2290
      %v2300 = vld [vmem:[%s4] sm:$0xff]
      %v2301 = vld [vmem:[%s4 + $0x8] sm:$0xff]
      %v2302 = vld [vmem:[%s4 + $0x10] sm:$0xff]
      %v2303 = vld [vmem:[%s4 + $0x18] sm:$0xff]
      %2305 = vset.pattern.permute.xlu0 0
      %2306 = vperm.xlu0 %2305, %v2300
      %v2307 = vpop.permute.xlu0 %2306
      %2310 = vset.pattern.permute.xlu0 0
      %2311 = vperm.xlu0 %2310, %v2301
      %v2312 = vpop.permute.xlu0 %2311
      %2315 = vset.pattern.permute.xlu0 0
      %2316 = vperm.xlu0 %2315, %v2302
      %v2317 = vpop.permute.xlu0 %2316
      %2320 = vset.pattern.permute.xlu0 0
      %2321 = vperm.xlu0 %2320, %v2303
      %v2322 = vpop.permute.xlu0 %2321
      %v2324 = vadd.f32 %v2292, %v2307
      %v2325 = vadd.f32 %v2293, %v2307
      %v2326 = vadd.f32 %v2294, %v2312
      %v2327 = vadd.f32 %v2295, %v2312
      %v2328 = vadd.f32 %v2296, %v2317
      %v2329 = vadd.f32 %v2297, %v2317
      %v2330 = vadd.f32 %v2298, %v2322
      %v2331 = vadd.f32 %v2299, %v2322
      %v2332 = vld [vmem:[%s7] sm:$0xff]
      %v2333 = vld [vmem:[%s7 + $0x8] sm:$0xff]
      %v2334 = vld [vmem:[%s7 + $0x10] sm:$0x1]
      %v2335 = vld [vmem:[%s7 + $0x18] sm:$0x1]
      %v2340 = vcombine.low %v2332, %v2333
      %v2341 = vcombine.high %v2332, %v2333
      %v2343 = vunpack.c.l.s4 1966171168
      %v2344 = vunpack.c.0.s8 %v2343
      %v2345 = vlaneseq
      %v2346 = vshrl.u32 %v2345, 7
      %v2347 = vsub.s32 %v2344, %v2346
      %v2348 = vrot.slane %v2340, %v2347
      %v2350 = vunpack.c.l.s4 1966171168
      %v2351 = vunpack.c.0.s8 %v2350
      %v2352 = vlaneseq
      %v2353 = vshrl.u32 %v2352, 7
      %v2354 = vsub.s32 %v2351, %v2353
      %v2355 = vrot.slane %v2341, %v2354
      %v2356 = vcombine.high %v2348, %v2348
      %v2357 = vcombine.high %v2355, %v2355
      %v2359 = vunpack.c.l.s4 1966171168
      %v2360 = vunpack.c.0.s8 %v2359
      %v2361 = vlaneseq
      %v2362 = vshrl.u32 %v2361, 7
      %v2363 = vsub.s32 %v2360, %v2362
      %v2364 = vrot.slane %v2348, %v2363
      %v2366 = vunpack.c.l.s4 1966171168
      %v2367 = vunpack.c.0.s8 %v2366
      %v2368 = vlaneseq
      %v2369 = vshrl.u32 %v2368, 7
      %v2370 = vsub.s32 %v2367, %v2369
      %v2371 = vrot.slane %v2355, %v2370
      %v2373 = vunpack.c.l.s4 1966171168
      %v2374 = vunpack.c.0.s8 %v2373
      %v2375 = vlaneseq
      %v2376 = vshrl.u32 %v2375, 7
      %v2377 = vsub.s32 %v2374, %v2376
      %v2378 = vrot.slane %v2356, %v2377
      %v2380 = vunpack.c.l.s4 1966171168
      %v2381 = vunpack.c.0.s8 %v2380
      %v2382 = vlaneseq
      %v2383 = vshrl.u32 %v2382, 7
      %v2384 = vsub.s32 %v2381, %v2383
      %v2385 = vrot.slane %v2357, %v2384
      %v2386 = vcombine.high %v2364, %v2364
      %v2387 = vcombine.high %v2371, %v2371
      %v2388 = vcombine.high %v2378, %v2378
      %v2389 = vcombine.high %v2385, %v2385
      %v2390 = vcombine.low %v2334, %v2335
      %v2392 = vunpack.c.l.s4 1966171168
      %v2393 = vunpack.c.0.s8 %v2392
      %v2394 = vlaneseq
      %v2395 = vshrl.u32 %v2394, 7
      %v2396 = vsub.s32 %v2393, %v2395
      %v2397 = vrot.slane %v2390, %v2396
      %v2399 = vunpack.c.l.s4 1966171168
      %v2400 = vunpack.c.0.s8 %v2399
      %v2401 = vlaneseq
      %v2402 = vshrl.u32 %v2401, 7
      %v2403 = vsub.s32 %v2400, %v2402
      %v2404 = vrot.slane %v2397, %v2403
      %v2405 = vld [vmem:[%s5] sm:$0xff]
      %v2406 = vld [vmem:[%s5 + $0x8] sm:$0xff]
      %v2407 = vld [vmem:[%s5 + $0x10] sm:$0xff]
      %v2408 = vld [vmem:[%s5 + $0x18] sm:$0xff]
      %v2409 = vld [vmem:[%s5 + $0x20] sm:$0xff]
      %v2410 = vld [vmem:[%s5 + $0x28] sm:$0xff]
      %v2411 = vld [vmem:[%s5 + $0x30] sm:$0xff]
      %v2412 = vld [vmem:[%s5 + $0x38] sm:$0xff]
      %v2413 = vld [vmem:[%s5 + $0x40] sm:$0xff]
      %v2414 = vld [vmem:[%s5 + $0x48] sm:$0xff]
      %v2415 = vld [vmem:[%s5 + $0x50] sm:$0xff]
      %v2416 = vld [vmem:[%s5 + $0x58] sm:$0xff]
      %v2417 = vld [vmem:[%s5 + $0x60] sm:$0xff]
      %v2418 = vld [vmem:[%s5 + $0x68] sm:$0xff]
      %v2419 = vld [vmem:[%s5 + $0x70] sm:$0xff]
      %v2420 = vld [vmem:[%s5 + $0x78] sm:$0xff]
      %v2421 = vld [vmem:[%s5 + $0x80] sm:$0xff]
      %v2422 = vld [vmem:[%s5 + $0x88] sm:$0xff]
      %v2423 = vld [vmem:[%s5 + $0x90] sm:$0xff]
      %v2424 = vld [vmem:[%s5 + $0x98] sm:$0xff]
      %v2425 = vld [vmem:[%s5 + $0xa0] sm:$0xff]
      %v2426 = vld [vmem:[%s5 + $0xa8] sm:$0xff]
      %v2427 = vld [vmem:[%s5 + $0xb0] sm:$0xff]
      %v2428 = vld [vmem:[%s5 + $0xb8] sm:$0xff]
      %v2429 = vld [vmem:[%s5 + $0xc0] sm:$0xff]
      %v2430 = vld [vmem:[%s5 + $0xc8] sm:$0xff]
      %v2431 = vld [vmem:[%s5 + $0xd0] sm:$0xff]
      %v2432 = vld [vmem:[%s5 + $0xd8] sm:$0xff]
      %v2433 = vld [vmem:[%s5 + $0xe0] sm:$0xff]
      %v2434 = vld [vmem:[%s5 + $0xe8] sm:$0xff]
      %v2435 = vld [vmem:[%s5 + $0xf0] sm:$0xff]
      %v2436 = vld [vmem:[%s5 + $0xf8] sm:$0xff]
      %v2437 = vld [vmem:[%s5 + $0x100] sm:$0xff]
      %v2438 = vld [vmem:[%s5 + $0x108] sm:$0xff]
      %v2439 = vld [vmem:[%s5 + $0x110] sm:$0xff]
      %v2440 = vld [vmem:[%s5 + $0x118] sm:$0xff]
      %v2441 = vlaneseq
      %v2442 = vshrl.u32 %v2441, 7
      %v2443 = vsub.s32 0, %v2442
      %v2444 = vrot.slane %v2364, %v2443
      %v2445 = vlaneseq
      %v2446 = vshrl.u32 %v2445, 7
      %v2447 = vsub.s32 1, %v2446
      %v2448 = vrot.slane %v2364, %v2447
      %v2449 = vlaneseq
      %v2450 = vshrl.u32 %v2449, 7
      %v2451 = vsub.s32 0, %v2450
      %v2452 = vrot.slane %v2378, %v2451
      %v2453 = vlaneseq
      %v2454 = vshrl.u32 %v2453, 7
      %v2455 = vsub.s32 1, %v2454
      %v2456 = vrot.slane %v2378, %v2455
      %v2457 = vlaneseq
      %v2458 = vshrl.u32 %v2457, 7
      %v2459 = vsub.s32 0, %v2458
      %v2460 = vrot.slane %v2386, %v2459
      %v2461 = vlaneseq
      %v2462 = vshrl.u32 %v2461, 7
      %v2463 = vsub.s32 1, %v2462
      %v2464 = vrot.slane %v2386, %v2463
      %v2465 = vlaneseq
      %v2466 = vshrl.u32 %v2465, 7
      %v2467 = vsub.s32 0, %v2466
      %v2468 = vrot.slane %v2388, %v2467
      %v2469 = vlaneseq
      %v2470 = vshrl.u32 %v2469, 7
      %v2471 = vsub.s32 1, %v2470
      %v2472 = vrot.slane %v2388, %v2471
      %v2473 = vlaneseq
      %v2474 = vshrl.u32 %v2473, 7
      %v2475 = vsub.s32 0, %v2474
      %v2476 = vrot.slane %v2371, %v2475
      %v2477 = vlaneseq
      %v2478 = vshrl.u32 %v2477, 7
      %v2479 = vsub.s32 1, %v2478
      %v2480 = vrot.slane %v2371, %v2479
      %v2481 = vlaneseq
      %v2482 = vshrl.u32 %v2481, 7
      %v2483 = vsub.s32 0, %v2482
      %v2484 = vrot.slane %v2385, %v2483
      %v2485 = vlaneseq
      %v2486 = vshrl.u32 %v2485, 7
      %v2487 = vsub.s32 1, %v2486
      %v2488 = vrot.slane %v2385, %v2487
      %v2489 = vlaneseq
      %v2490 = vshrl.u32 %v2489, 7
      %v2491 = vsub.s32 0, %v2490
      %v2492 = vrot.slane %v2387, %v2491
      %v2493 = vlaneseq
      %v2494 = vshrl.u32 %v2493, 7
      %v2495 = vsub.s32 1, %v2494
      %v2496 = vrot.slane %v2387, %v2495
      %v2497 = vlaneseq
      %v2498 = vshrl.u32 %v2497, 7
      %v2499 = vsub.s32 0, %v2498
      %v2500 = vrot.slane %v2389, %v2499
      %v2501 = vlaneseq
      %v2502 = vshrl.u32 %v2501, 7
      %v2503 = vsub.s32 1, %v2502
      %v2504 = vrot.slane %v2389, %v2503
      %v2505 = vlaneseq
      %v2506 = vshrl.u32 %v2505, 7
      %v2507 = vsub.s32 0, %v2506
      %v2508 = vrot.slane %v2404, %v2507
      %v2509 = vlaneseq
      %v2510 = vshrl.u32 %v2509, 7
      %v2511 = vsub.s32 1, %v2510
      %v2512 = vrot.slane %v2404, %v2511
      %2532 = vset.pattern.permute.xlu0 0
      %2533 = vperm.xlu0 %2532, %v2405
      %v2534 = vpop.permute.xlu0 %2533
      %2537 = vset.pattern.permute.xlu0 0
      %2538 = vperm.xlu0 %2537, %v2406
      %v2539 = vpop.permute.xlu0 %2538
      %2542 = vset.pattern.permute.xlu0 0
      %2543 = vperm.xlu0 %2542, %v2407
      %v2544 = vpop.permute.xlu0 %2543
      %2547 = vset.pattern.permute.xlu0 0
      %2548 = vperm.xlu0 %2547, %v2408
      %v2549 = vpop.permute.xlu0 %2548
      %2552 = vset.pattern.permute.xlu0 0
      %2553 = vperm.xlu0 %2552, %v2409
      %v2554 = vpop.permute.xlu0 %2553
      %2557 = vset.pattern.permute.xlu0 0
      %2558 = vperm.xlu0 %2557, %v2410
      %v2559 = vpop.permute.xlu0 %2558
      %2562 = vset.pattern.permute.xlu0 0
      %2563 = vperm.xlu0 %2562, %v2411
      %v2564 = vpop.permute.xlu0 %2563
      %2567 = vset.pattern.permute.xlu0 0
      %2568 = vperm.xlu0 %2567, %v2412
      %v2569 = vpop.permute.xlu0 %2568
      %2572 = vset.pattern.permute.xlu0 0
      %2573 = vperm.xlu0 %2572, %v2413
      %v2574 = vpop.permute.xlu0 %2573
      %2577 = vset.pattern.permute.xlu0 0
      %2578 = vperm.xlu0 %2577, %v2414
      %v2579 = vpop.permute.xlu0 %2578
      %2582 = vset.pattern.permute.xlu0 0
      %2583 = vperm.xlu0 %2582, %v2415
      %v2584 = vpop.permute.xlu0 %2583
      %2587 = vset.pattern.permute.xlu0 0
      %2588 = vperm.xlu0 %2587, %v2416
      %v2589 = vpop.permute.xlu0 %2588
      %2592 = vset.pattern.permute.xlu0 0
      %2593 = vperm.xlu0 %2592, %v2417
      %v2594 = vpop.permute.xlu0 %2593
      %2597 = vset.pattern.permute.xlu0 0
      %2598 = vperm.xlu0 %2597, %v2418
      %v2599 = vpop.permute.xlu0 %2598
      %2602 = vset.pattern.permute.xlu0 0
      %2603 = vperm.xlu0 %2602, %v2419
      %v2604 = vpop.permute.xlu0 %2603
      %2607 = vset.pattern.permute.xlu0 0
      %2608 = vperm.xlu0 %2607, %v2420
      %v2609 = vpop.permute.xlu0 %2608
      %2612 = vset.pattern.permute.xlu0 0
      %2613 = vperm.xlu0 %2612, %v2421
      %v2614 = vpop.permute.xlu0 %2613
      %2617 = vset.pattern.permute.xlu0 0
      %2618 = vperm.xlu0 %2617, %v2422
      %v2619 = vpop.permute.xlu0 %2618
      %2622 = vset.pattern.permute.xlu0 0
      %2623 = vperm.xlu0 %2622, %v2423
      %v2624 = vpop.permute.xlu0 %2623
      %2627 = vset.pattern.permute.xlu0 0
      %2628 = vperm.xlu0 %2627, %v2424
      %v2629 = vpop.permute.xlu0 %2628
      %2632 = vset.pattern.permute.xlu0 0
      %2633 = vperm.xlu0 %2632, %v2425
      %v2634 = vpop.permute.xlu0 %2633
      %2637 = vset.pattern.permute.xlu0 0
      %2638 = vperm.xlu0 %2637, %v2426
      %v2639 = vpop.permute.xlu0 %2638
      %2642 = vset.pattern.permute.xlu0 0
      %2643 = vperm.xlu0 %2642, %v2427
      %v2644 = vpop.permute.xlu0 %2643
      %2647 = vset.pattern.permute.xlu0 0
      %2648 = vperm.xlu0 %2647, %v2428
      %v2649 = vpop.permute.xlu0 %2648
      %2652 = vset.pattern.permute.xlu0 0
      %2653 = vperm.xlu0 %2652, %v2429
      %v2654 = vpop.permute.xlu0 %2653
      %2657 = vset.pattern.permute.xlu0 0
      %2658 = vperm.xlu0 %2657, %v2430
      %v2659 = vpop.permute.xlu0 %2658
      %2662 = vset.pattern.permute.xlu0 0
      %2663 = vperm.xlu0 %2662, %v2431
      %v2664 = vpop.permute.xlu0 %2663
      %2667 = vset.pattern.permute.xlu0 0
      %2668 = vperm.xlu0 %2667, %v2432
      %v2669 = vpop.permute.xlu0 %2668
      %2672 = vset.pattern.permute.xlu0 0
      %2673 = vperm.xlu0 %2672, %v2433
      %v2674 = vpop.permute.xlu0 %2673
      %2677 = vset.pattern.permute.xlu0 0
      %2678 = vperm.xlu0 %2677, %v2434
      %v2679 = vpop.permute.xlu0 %2678
      %2682 = vset.pattern.permute.xlu0 0
      %2683 = vperm.xlu0 %2682, %v2435
      %v2684 = vpop.permute.xlu0 %2683
      %2687 = vset.pattern.permute.xlu0 0
      %2688 = vperm.xlu0 %2687, %v2436
      %v2689 = vpop.permute.xlu0 %2688
      %2692 = vset.pattern.permute.xlu0 0
      %2693 = vperm.xlu0 %2692, %v2437
      %v2694 = vpop.permute.xlu0 %2693
      %2697 = vset.pattern.permute.xlu0 0
      %2698 = vperm.xlu0 %2697, %v2438
      %v2699 = vpop.permute.xlu0 %2698
      %2702 = vset.pattern.permute.xlu0 0
      %2703 = vperm.xlu0 %2702, %v2439
      %v2704 = vpop.permute.xlu0 %2703
      %2707 = vset.pattern.permute.xlu0 0
      %2708 = vperm.xlu0 %2707, %v2440
      %v2709 = vpop.permute.xlu0 %2708
      %v2711 = vmul.f32 %v2444, %v2534
      %v2712 = vmul.f32 %v2448, %v2534
      %v2713 = vmul.f32 %v2444, %v2539
      %v2714 = vmul.f32 %v2448, %v2539
      %v2715 = vmul.f32 %v2444, %v2544
      %v2716 = vmul.f32 %v2448, %v2544
      %v2717 = vmul.f32 %v2444, %v2549
      %v2718 = vmul.f32 %v2448, %v2549
      %v2719 = vmul.f32 %v2452, %v2554
      %v2720 = vmul.f32 %v2456, %v2554
      %v2721 = vmul.f32 %v2452, %v2559
      %v2722 = vmul.f32 %v2456, %v2559
      %v2723 = vmul.f32 %v2452, %v2564
      %v2724 = vmul.f32 %v2456, %v2564
      %v2725 = vmul.f32 %v2452, %v2569
      %v2726 = vmul.f32 %v2456, %v2569
      %v2727 = vmul.f32 %v2460, %v2574
      %v2728 = vmul.f32 %v2464, %v2574
      %v2729 = vmul.f32 %v2460, %v2579
      %v2730 = vmul.f32 %v2464, %v2579
      %v2731 = vmul.f32 %v2460, %v2584
      %v2732 = vmul.f32 %v2464, %v2584
      %v2733 = vmul.f32 %v2460, %v2589
      %v2734 = vmul.f32 %v2464, %v2589
      %v2735 = vmul.f32 %v2468, %v2594
      %v2736 = vmul.f32 %v2472, %v2594
      %v2737 = vmul.f32 %v2468, %v2599
      %v2738 = vmul.f32 %v2472, %v2599
      %v2739 = vmul.f32 %v2468, %v2604
      %v2740 = vmul.f32 %v2472, %v2604
      %v2741 = vmul.f32 %v2468, %v2609
      %v2742 = vmul.f32 %v2472, %v2609
      %v2743 = vmul.f32 %v2476, %v2614
      %v2744 = vmul.f32 %v2480, %v2614
      %v2745 = vmul.f32 %v2476, %v2619
      %v2746 = vmul.f32 %v2480, %v2619
      %v2747 = vmul.f32 %v2476, %v2624
      %v2748 = vmul.f32 %v2480, %v2624
      %v2749 = vmul.f32 %v2476, %v2629
      %v2750 = vmul.f32 %v2480, %v2629
      %v2751 = vmul.f32 %v2484, %v2634
      %v2752 = vmul.f32 %v2488, %v2634
      %v2753 = vmul.f32 %v2484, %v2639
      %v2754 = vmul.f32 %v2488, %v2639
      %v2755 = vmul.f32 %v2484, %v2644
      %v2756 = vmul.f32 %v2488, %v2644
      %v2757 = vmul.f32 %v2484, %v2649
      %v2758 = vmul.f32 %v2488, %v2649
      %v2759 = vmul.f32 %v2492, %v2654
      %v2760 = vmul.f32 %v2496, %v2654
      %v2761 = vmul.f32 %v2492, %v2659
      %v2762 = vmul.f32 %v2496, %v2659
      %v2763 = vmul.f32 %v2492, %v2664
      %v2764 = vmul.f32 %v2496, %v2664
      %v2765 = vmul.f32 %v2492, %v2669
      %v2766 = vmul.f32 %v2496, %v2669
      %v2767 = vmul.f32 %v2500, %v2674
      %v2768 = vmul.f32 %v2504, %v2674
      %v2769 = vmul.f32 %v2500, %v2679
      %v2770 = vmul.f32 %v2504, %v2679
      %v2771 = vmul.f32 %v2500, %v2684
      %v2772 = vmul.f32 %v2504, %v2684
      %v2773 = vmul.f32 %v2500, %v2689
      %v2774 = vmul.f32 %v2504, %v2689
      %v2775 = vmul.f32 %v2508, %v2694
      %v2776 = vmul.f32 %v2512, %v2694
      %v2777 = vmul.f32 %v2508, %v2699
      %v2778 = vmul.f32 %v2512, %v2699
      %v2779 = vmul.f32 %v2508, %v2704
      %v2780 = vmul.f32 %v2512, %v2704
      %v2781 = vmul.f32 %v2508, %v2709
      %v2782 = vmul.f32 %v2512, %v2709
      %2783 = vrot.lane.b32.xlu0 %v2324, 17
      %v2784 = vpop.permute.xlu0 %2783
      %2785 = vrot.lane.b32.xlu0 %v2326, 17
      %v2786 = vpop.permute.xlu0 %2785
      %2787 = vrot.lane.b32.xlu0 %v2328, 17
      %v2788 = vpop.permute.xlu0 %2787
      %2789 = vrot.lane.b32.xlu0 %v2330, 17
      %v2790 = vpop.permute.xlu0 %2789
      %2791 = vrot.lane.b32.xlu0 %v2325, 17
      %v2792 = vpop.permute.xlu0 %2791
      %2793 = vrot.lane.b32.xlu0 %v2327, 17
      %v2794 = vpop.permute.xlu0 %2793
      %2795 = vrot.lane.b32.xlu0 %v2329, 17
      %v2796 = vpop.permute.xlu0 %2795
      %2797 = vrot.lane.b32.xlu0 %v2331, 17
      %v2798 = vpop.permute.xlu0 %2797
      %v2799 = vlaneseq
      %v2800 = vand.u32 %v2799, 127
      %vm2801 = vcmp.lt.s32.totalorder %v2800, 17
      %v2802 = vsel %vm2801, %v2784, %v2792
      %v2803 = vsel %vm2801, %v2786, %v2794
      %v2804 = vsel %vm2801, %v2788, %v2796
      %v2805 = vsel %vm2801, %v2790, %v2798
      %v2806 = vsel %vm2801, %v2792, %v2784
      %v2807 = vsel %vm2801, %v2794, %v2786
      %v2808 = vsel %vm2801, %v2796, %v2788
      %v2809 = vsel %vm2801, %v2798, %v2790
      %v2810 = vmul.f32 %v2806, %v2711
      %v2811 = vmul.f32 %v2802, %v2712
      %v2812 = vmul.f32 %v2807, %v2713
      %v2813 = vmul.f32 %v2803, %v2714
      %v2814 = vmul.f32 %v2808, %v2715
      %v2815 = vmul.f32 %v2804, %v2716
      %v2816 = vmul.f32 %v2809, %v2717
      %v2817 = vmul.f32 %v2805, %v2718
      %2818 = vrot.lane.b32.xlu0 %v2324, 16
      %v2819 = vpop.permute.xlu0 %2818
      %2820 = vrot.lane.b32.xlu0 %v2326, 16
      %v2821 = vpop.permute.xlu0 %2820
      %2822 = vrot.lane.b32.xlu0 %v2328, 16
      %v2823 = vpop.permute.xlu0 %2822
      %2824 = vrot.lane.b32.xlu0 %v2330, 16
      %v2825 = vpop.permute.xlu0 %2824
      %2826 = vrot.lane.b32.xlu0 %v2325, 16
      %v2827 = vpop.permute.xlu0 %2826
      %2828 = vrot.lane.b32.xlu0 %v2327, 16
      %v2829 = vpop.permute.xlu0 %2828
      %2830 = vrot.lane.b32.xlu0 %v2329, 16
      %v2831 = vpop.permute.xlu0 %2830
      %2832 = vrot.lane.b32.xlu0 %v2331, 16
      %v2833 = vpop.permute.xlu0 %2832
      %vm2834 = vcmp.lt.s32.totalorder %v2800, 16
      %v2835 = vsel %vm2834, %v2819, %v2827
      %v2836 = vsel %vm2834, %v2821, %v2829
      %v2837 = vsel %vm2834, %v2823, %v2831
      %v2838 = vsel %vm2834, %v2825, %v2833
      %v2839 = vsel %vm2834, %v2827, %v2819
      %v2840 = vsel %vm2834, %v2829, %v2821
      %v2841 = vsel %vm2834, %v2831, %v2823
      %v2842 = vsel %vm2834, %v2833, %v2825
      %v2843 = vmul.f32 %v2839, %v2719
      %v2844 = vmul.f32 %v2835, %v2720
      %v2845 = vmul.f32 %v2840, %v2721
      %v2846 = vmul.f32 %v2836, %v2722
      %v2847 = vmul.f32 %v2841, %v2723
      %v2848 = vmul.f32 %v2837, %v2724
      %v2849 = vmul.f32 %v2842, %v2725
      %v2850 = vmul.f32 %v2838, %v2726
      %v2851 = vadd.f32 %v2810, %v2843
      %v2852 = vadd.f32 %v2811, %v2844
      %v2853 = vadd.f32 %v2812, %v2845
      %v2854 = vadd.f32 %v2813, %v2846
      %v2855 = vadd.f32 %v2814, %v2847
      %v2856 = vadd.f32 %v2815, %v2848
      %v2857 = vadd.f32 %v2816, %v2849
      %v2858 = vadd.f32 %v2817, %v2850
      %2859 = vrot.lane.b32.xlu0 %v2324, 15
      %v2860 = vpop.permute.xlu0 %2859
      %2861 = vrot.lane.b32.xlu0 %v2326, 15
      %v2862 = vpop.permute.xlu0 %2861
      %2863 = vrot.lane.b32.xlu0 %v2328, 15
      %v2864 = vpop.permute.xlu0 %2863
      %2865 = vrot.lane.b32.xlu0 %v2330, 15
      %v2866 = vpop.permute.xlu0 %2865
      %2867 = vrot.lane.b32.xlu0 %v2325, 15
      %v2868 = vpop.permute.xlu0 %2867
      %2869 = vrot.lane.b32.xlu0 %v2327, 15
      %v2870 = vpop.permute.xlu0 %2869
      %2871 = vrot.lane.b32.xlu0 %v2329, 15
      %v2872 = vpop.permute.xlu0 %2871
      %2873 = vrot.lane.b32.xlu0 %v2331, 15
      %v2874 = vpop.permute.xlu0 %2873
      %vm2875 = vcmp.lt.s32.totalorder %v2800, 15
      %v2876 = vsel %vm2875, %v2860, %v2868
      %v2877 = vsel %vm2875, %v2862, %v2870
      %v2878 = vsel %vm2875, %v2864, %v2872
      %v2879 = vsel %vm2875, %v2866, %v2874
      %v2880 = vsel %vm2875, %v2868, %v2860
      %v2881 = vsel %vm2875, %v2870, %v2862
      %v2882 = vsel %vm2875, %v2872, %v2864
      %v2883 = vsel %vm2875, %v2874, %v2866
      %v2884 = vmul.f32 %v2880, %v2727
      %v2885 = vmul.f32 %v2876, %v2728
      %v2886 = vmul.f32 %v2881, %v2729
      %v2887 = vmul.f32 %v2877, %v2730
      %v2888 = vmul.f32 %v2882, %v2731
      %v2889 = vmul.f32 %v2878, %v2732
      %v2890 = vmul.f32 %v2883, %v2733
      %v2891 = vmul.f32 %v2879, %v2734
      %v2892 = vadd.f32 %v2851, %v2884
      %v2893 = vadd.f32 %v2852, %v2885
      %v2894 = vadd.f32 %v2853, %v2886
      %v2895 = vadd.f32 %v2854, %v2887
      %v2896 = vadd.f32 %v2855, %v2888
      %v2897 = vadd.f32 %v2856, %v2889
      %v2898 = vadd.f32 %v2857, %v2890
      %v2899 = vadd.f32 %v2858, %v2891
      %2900 = vrot.lane.b32.xlu0 %v2324, 1
      %v2901 = vpop.permute.xlu0 %2900
      %2902 = vrot.lane.b32.xlu0 %v2326, 1
      %v2903 = vpop.permute.xlu0 %2902
      %2904 = vrot.lane.b32.xlu0 %v2328, 1
      %v2905 = vpop.permute.xlu0 %2904
      %2906 = vrot.lane.b32.xlu0 %v2330, 1
      %v2907 = vpop.permute.xlu0 %2906
      %2908 = vrot.lane.b32.xlu0 %v2325, 1
      %v2909 = vpop.permute.xlu0 %2908
      %2910 = vrot.lane.b32.xlu0 %v2327, 1
      %v2911 = vpop.permute.xlu0 %2910
      %2912 = vrot.lane.b32.xlu0 %v2329, 1
      %v2913 = vpop.permute.xlu0 %2912
      %2914 = vrot.lane.b32.xlu0 %v2331, 1
      %v2915 = vpop.permute.xlu0 %2914
      %vm2916 = vcmp.lt.s32.totalorder %v2800, 1
      %v2917 = vsel %vm2916, %v2901, %v2909
      %v2918 = vsel %vm2916, %v2903, %v2911
      %v2919 = vsel %vm2916, %v2905, %v2913
      %v2920 = vsel %vm2916, %v2907, %v2915
      %v2921 = vsel %vm2916, %v2909, %v2901
      %v2922 = vsel %vm2916, %v2911, %v2903
      %v2923 = vsel %vm2916, %v2913, %v2905
      %v2924 = vsel %vm2916, %v2915, %v2907
      %v2925 = vmul.f32 %v2921, %v2735
      %v2926 = vmul.f32 %v2917, %v2736
      %v2927 = vmul.f32 %v2922, %v2737
      %v2928 = vmul.f32 %v2918, %v2738
      %v2929 = vmul.f32 %v2923, %v2739
      %v2930 = vmul.f32 %v2919, %v2740
      %v2931 = vmul.f32 %v2924, %v2741
      %v2932 = vmul.f32 %v2920, %v2742
      %v2933 = vadd.f32 %v2892, %v2925
      %v2934 = vadd.f32 %v2893, %v2926
      %v2935 = vadd.f32 %v2894, %v2927
      %v2936 = vadd.f32 %v2895, %v2928
      %v2937 = vadd.f32 %v2896, %v2929
      %v2938 = vadd.f32 %v2897, %v2930
      %v2939 = vadd.f32 %v2898, %v2931
      %v2940 = vadd.f32 %v2899, %v2932
      %v2941 = vmul.f32 %v2324, %v2743
      %v2942 = vmul.f32 %v2325, %v2744
      %v2943 = vmul.f32 %v2326, %v2745
      %v2944 = vmul.f32 %v2327, %v2746
      %v2945 = vmul.f32 %v2328, %v2747
      %v2946 = vmul.f32 %v2329, %v2748
      %v2947 = vmul.f32 %v2330, %v2749
      %v2948 = vmul.f32 %v2331, %v2750
      %v2949 = vadd.f32 %v2933, %v2941
      %v2950 = vadd.f32 %v2934, %v2942
      %v2951 = vadd.f32 %v2935, %v2943
      %v2952 = vadd.f32 %v2936, %v2944
      %v2953 = vadd.f32 %v2937, %v2945
      %v2954 = vadd.f32 %v2938, %v2946
      %v2955 = vadd.f32 %v2939, %v2947
      %v2956 = vadd.f32 %v2940, %v2948
      %2957 = vrot.lane.b32.xlu0 %v2324, 127
      %v2958 = vpop.permute.xlu0 %2957
      %2959 = vrot.lane.b32.xlu0 %v2326, 127
      %v2960 = vpop.permute.xlu0 %2959
      %2961 = vrot.lane.b32.xlu0 %v2328, 127
      %v2962 = vpop.permute.xlu0 %2961
      %2963 = vrot.lane.b32.xlu0 %v2330, 127
      %v2964 = vpop.permute.xlu0 %2963
      %2965 = vrot.lane.b32.xlu0 %v2325, 127
      %v2966 = vpop.permute.xlu0 %2965
      %2967 = vrot.lane.b32.xlu0 %v2327, 127
      %v2968 = vpop.permute.xlu0 %2967
      %2969 = vrot.lane.b32.xlu0 %v2329, 127
      %v2970 = vpop.permute.xlu0 %2969
      %2971 = vrot.lane.b32.xlu0 %v2331, 127
      %v2972 = vpop.permute.xlu0 %2971
      %vm2973 = vcmp.lt.s32.totalorder %v2800, 127
      %v2974 = vsel %vm2973, %v2958, %v2966
      %v2975 = vsel %vm2973, %v2960, %v2968
      %v2976 = vsel %vm2973, %v2962, %v2970
      %v2977 = vsel %vm2973, %v2964, %v2972
      %v2978 = vsel %vm2973, %v2966, %v2958
      %v2979 = vsel %vm2973, %v2968, %v2960
      %v2980 = vsel %vm2973, %v2970, %v2962
      %v2981 = vsel %vm2973, %v2972, %v2964
      %v2982 = vmul.f32 %v2974, %v2751
      %v2983 = vmul.f32 %v2978, %v2752
      %v2984 = vmul.f32 %v2975, %v2753
      %v2985 = vmul.f32 %v2979, %v2754
      %v2986 = vmul.f32 %v2976, %v2755
      %v2987 = vmul.f32 %v2980, %v2756
      %v2988 = vmul.f32 %v2977, %v2757
      %v2989 = vmul.f32 %v2981, %v2758
      %v2990 = vadd.f32 %v2949, %v2982
      %v2991 = vadd.f32 %v2950, %v2983
      %v2992 = vadd.f32 %v2951, %v2984
      %v2993 = vadd.f32 %v2952, %v2985
      %v2994 = vadd.f32 %v2953, %v2986
      %v2995 = vadd.f32 %v2954, %v2987
      %v2996 = vadd.f32 %v2955, %v2988
      %v2997 = vadd.f32 %v2956, %v2989
      %2998 = vrot.lane.b32.xlu0 %v2324, 113
      %v2999 = vpop.permute.xlu0 %2998
      %3000 = vrot.lane.b32.xlu0 %v2326, 113
      %v3001 = vpop.permute.xlu0 %3000
      %3002 = vrot.lane.b32.xlu0 %v2328, 113
      %v3003 = vpop.permute.xlu0 %3002
      %3004 = vrot.lane.b32.xlu0 %v2330, 113
      %v3005 = vpop.permute.xlu0 %3004
      %3006 = vrot.lane.b32.xlu0 %v2325, 113
      %v3007 = vpop.permute.xlu0 %3006
      %3008 = vrot.lane.b32.xlu0 %v2327, 113
      %v3009 = vpop.permute.xlu0 %3008
      %3010 = vrot.lane.b32.xlu0 %v2329, 113
      %v3011 = vpop.permute.xlu0 %3010
      %3012 = vrot.lane.b32.xlu0 %v2331, 113
      %v3013 = vpop.permute.xlu0 %3012
      %vm3014 = vcmp.lt.s32.totalorder %v2800, 113
      %v3015 = vsel %vm3014, %v2999, %v3007
      %v3016 = vsel %vm3014, %v3001, %v3009
      %v3017 = vsel %vm3014, %v3003, %v3011
      %v3018 = vsel %vm3014, %v3005, %v3013
      %v3019 = vsel %vm3014, %v3007, %v2999
      %v3020 = vsel %vm3014, %v3009, %v3001
      %v3021 = vsel %vm3014, %v3011, %v3003
      %v3022 = vsel %vm3014, %v3013, %v3005
      %v3023 = vmul.f32 %v3015, %v2759
      %v3024 = vmul.f32 %v3019, %v2760
      %v3025 = vmul.f32 %v3016, %v2761
      %v3026 = vmul.f32 %v3020, %v2762
      %v3027 = vmul.f32 %v3017, %v2763
      %v3028 = vmul.f32 %v3021, %v2764
      %v3029 = vmul.f32 %v3018, %v2765
      %v3030 = vmul.f32 %v3022, %v2766
      %v3031 = vadd.f32 %v2990, %v3023
      %v3032 = vadd.f32 %v2991, %v3024
      %v3033 = vadd.f32 %v2992, %v3025
      %v3034 = vadd.f32 %v2993, %v3026
      %v3035 = vadd.f32 %v2994, %v3027
      %v3036 = vadd.f32 %v2995, %v3028
      %v3037 = vadd.f32 %v2996, %v3029
      %v3038 = vadd.f32 %v2997, %v3030
      %3039 = vrot.lane.b32.xlu0 %v2324, 112
      %v3040 = vpop.permute.xlu0 %3039
      %3041 = vrot.lane.b32.xlu0 %v2326, 112
      %v3042 = vpop.permute.xlu0 %3041
      %3043 = vrot.lane.b32.xlu0 %v2328, 112
      %v3044 = vpop.permute.xlu0 %3043
      %3045 = vrot.lane.b32.xlu0 %v2330, 112
      %v3046 = vpop.permute.xlu0 %3045
      %3047 = vrot.lane.b32.xlu0 %v2325, 112
      %v3048 = vpop.permute.xlu0 %3047
      %3049 = vrot.lane.b32.xlu0 %v2327, 112
      %v3050 = vpop.permute.xlu0 %3049
      %3051 = vrot.lane.b32.xlu0 %v2329, 112
      %v3052 = vpop.permute.xlu0 %3051
      %3053 = vrot.lane.b32.xlu0 %v2331, 112
      %v3054 = vpop.permute.xlu0 %3053
      %vm3055 = vcmp.lt.s32.totalorder %v2800, 112
      %v3056 = vsel %vm3055, %v3040, %v3048
      %v3057 = vsel %vm3055, %v3042, %v3050
      %v3058 = vsel %vm3055, %v3044, %v3052
      %v3059 = vsel %vm3055, %v3046, %v3054
      %v3060 = vsel %vm3055, %v3048, %v3040
      %v3061 = vsel %vm3055, %v3050, %v3042
      %v3062 = vsel %vm3055, %v3052, %v3044
      %v3063 = vsel %vm3055, %v3054, %v3046
      %v3064 = vmul.f32 %v3056, %v2767
      %v3065 = vmul.f32 %v3060, %v2768
      %v3066 = vmul.f32 %v3057, %v2769
      %v3067 = vmul.f32 %v3061, %v2770
      %v3068 = vmul.f32 %v3058, %v2771
      %v3069 = vmul.f32 %v3062, %v2772
      %v3070 = vmul.f32 %v3059, %v2773
      %v3071 = vmul.f32 %v3063, %v2774
      %v3072 = vadd.f32 %v3031, %v3064
      %v3073 = vadd.f32 %v3032, %v3065
      %v3074 = vadd.f32 %v3033, %v3066
      %v3075 = vadd.f32 %v3034, %v3067
      %v3076 = vadd.f32 %v3035, %v3068
      %v3077 = vadd.f32 %v3036, %v3069
      %v3078 = vadd.f32 %v3037, %v3070
      %v3079 = vadd.f32 %v3038, %v3071
      %3080 = vrot.lane.b32.xlu0 %v2324, 111
      %v3081 = vpop.permute.xlu0 %3080
      %3082 = vrot.lane.b32.xlu0 %v2326, 111
      %v3083 = vpop.permute.xlu0 %3082
      %3084 = vrot.lane.b32.xlu0 %v2328, 111
      %v3085 = vpop.permute.xlu0 %3084
      %3086 = vrot.lane.b32.xlu0 %v2330, 111
      %v3087 = vpop.permute.xlu0 %3086
      %3088 = vrot.lane.b32.xlu0 %v2325, 111
      %v3089 = vpop.permute.xlu0 %3088
      %3090 = vrot.lane.b32.xlu0 %v2327, 111
      %v3091 = vpop.permute.xlu0 %3090
      %3092 = vrot.lane.b32.xlu0 %v2329, 111
      %v3093 = vpop.permute.xlu0 %3092
      %3094 = vrot.lane.b32.xlu0 %v2331, 111
      %v3095 = vpop.permute.xlu0 %3094
      %vm3096 = vcmp.lt.s32.totalorder %v2800, 111
      %v3097 = vsel %vm3096, %v3081, %v3089
      %v3098 = vsel %vm3096, %v3083, %v3091
      %v3099 = vsel %vm3096, %v3085, %v3093
      %v3100 = vsel %vm3096, %v3087, %v3095
      %v3101 = vsel %vm3096, %v3089, %v3081
      %v3102 = vsel %vm3096, %v3091, %v3083
      %v3103 = vsel %vm3096, %v3093, %v3085
      %v3104 = vsel %vm3096, %v3095, %v3087
      %v3105 = vmul.f32 %v3097, %v2775
      %v3106 = vmul.f32 %v3101, %v2776
      %v3107 = vmul.f32 %v3098, %v2777
      %v3108 = vmul.f32 %v3102, %v2778
      %v3109 = vmul.f32 %v3099, %v2779
      %v3110 = vmul.f32 %v3103, %v2780
      %v3111 = vmul.f32 %v3100, %v2781
      %v3112 = vmul.f32 %v3104, %v2782
      %v3113 = vadd.f32 %v3072, %v3105
      %v3114 = vadd.f32 %v3073, %v3106
      %v3115 = vadd.f32 %v3074, %v3107
      %v3116 = vadd.f32 %v3075, %v3108
      %v3117 = vadd.f32 %v3076, %v3109
      %v3118 = vadd.f32 %v3077, %v3110
      %v3119 = vadd.f32 %v3078, %v3111
      %v3120 = vadd.f32 %v3079, %v3112
      %v3121 = vld [vmem:[%s6] sm:$0xff]
      %v3122 = vld [vmem:[%s6 + $0x8] sm:$0xff]
      %v3123 = vld [vmem:[%s6 + $0x10] sm:$0xff]
      %v3124 = vld [vmem:[%s6 + $0x18] sm:$0xff]
      %3126 = vset.pattern.permute.xlu0 0
      %3127 = vperm.xlu0 %3126, %v3121
      %v3128 = vpop.permute.xlu0 %3127
      %3131 = vset.pattern.permute.xlu0 0
      %3132 = vperm.xlu0 %3131, %v3122
      %v3133 = vpop.permute.xlu0 %3132
      %3136 = vset.pattern.permute.xlu0 0
      %3137 = vperm.xlu0 %3136, %v3123
      %v3138 = vpop.permute.xlu0 %3137
      %3141 = vset.pattern.permute.xlu0 0
      %3142 = vperm.xlu0 %3141, %v3124
      %v3143 = vpop.permute.xlu0 %3142
      %v3145 = vadd.f32 %v3113, %v3128
      %v3146 = vadd.f32 %v3114, %v3128
      %v3147 = vadd.f32 %v3115, %v3133
      %v3148 = vadd.f32 %v3116, %v3133
      %v3149 = vadd.f32 %v3117, %v3138
      %v3150 = vadd.f32 %v3118, %v3138
      %v3151 = vadd.f32 %v3119, %v3143
      %v3152 = vadd.f32 %v3120, %v3143
      %v3153 = vmul.f32 %v2183, %v3145
      %v3154 = vmul.f32 %v2184, %v3146
      %v3155 = vmul.f32 %v2185, %v3147
      %v3156 = vmul.f32 %v2186, %v3148
      %v3157 = vmul.f32 %v2187, %v3149
      %v3158 = vmul.f32 %v2188, %v3150
      %v3159 = vmul.f32 %v2189, %v3151
      %v3160 = vmul.f32 %v2190, %v3152
      %v3161 = vld [vmem:[%s8] sm:$0xff]
      %v3162 = vld [vmem:[%s8 + $0x8] sm:$0xff]
      %v3163 = vld [vmem:[%s8 + $0x10] sm:$0xff]
      %v3164 = vld [vmem:[%s8 + $0x18] sm:$0xff]
      %v3165 = vld [vmem:[%s9] sm:$0xff]
      %v3166 = vld [vmem:[%s9 + $0x8] sm:$0xff]
      %v3167 = vld [vmem:[%s9 + $0x10] sm:$0xff]
      %v3168 = vld [vmem:[%s9 + $0x18] sm:$0xff]
      %3170 = vset.pattern.permute.xlu0 0
      %3171 = vperm.xlu0 %3170, %v3165
      %v3172 = vpop.permute.xlu0 %3171
      %3175 = vset.pattern.permute.xlu0 0
      %3176 = vperm.xlu0 %3175, %v3166
      %v3177 = vpop.permute.xlu0 %3176
      %3180 = vset.pattern.permute.xlu0 0
      %3181 = vperm.xlu0 %3180, %v3167
      %v3182 = vpop.permute.xlu0 %3181
      %3185 = vset.pattern.permute.xlu0 0
      %3186 = vperm.xlu0 %3185, %v3168
      %v3187 = vpop.permute.xlu0 %3186
      %v3190 = vsel %vm448, %v3161, 0
      %v3193 = vsel %vm448, %v3162, 0
      %v3196 = vsel %vm448, %v3163, 0
      %v3199 = vsel %vm448, %v3164, 0
      %3201 = vmatprep.subr.mxu0 0.0
      %3202 = vmatpush1.msra.mxu0 0.0
      %3203 = vmatprep.subr.mxu0 0.0
      %3204 = vmatpush1.msra.mxu0 0.0
      %3205 = vmatprep.subr.mxu0 0.0
      %3206 = vmatpush1.msra.mxu0 0.0
      %3207 = vmatprep.subr.mxu0 0.0
      %3208 = vmatpush1.msra.mxu0 0.0
      %3209 = vmatprep.subr.mxu0 0.0
      %3210 = vmatpush1.msra.mxu0 0.0
      %3211 = vmatprep.subr.mxu0 0.0
      %3212 = vmatpush1.msra.mxu0 0.0
      %3213 = vmatprep.subr.mxu0 0.0
      %3214 = vmatpush1.msra.mxu0 0.0
      %3215 = vmatprep.subr.mxu0 0.0
      %3216 = vmatpush1.msra.mxu0 0.0
      %3217 = vmatprep.subr.mxu0 0.0
      %3218 = vmatpush1.msra.mxu0 0.0
      %3219 = vmatprep.subr.mxu0 0.0
      %3220 = vmatpush1.msra.mxu0 0.0
      %3221 = vmatprep.subr.mxu0 0.0
      %3222 = vmatpush1.msra.mxu0 0.0
      %3223 = vmatprep.subr.mxu0 0.0
      %3224 = vmatpush1.msra.mxu0 0.0
      %v3225 = vand.u32 %v3160, 4294901760
      %3226 = vmatprep.subr.mxu0 %v3225
      %v3227 = vand.u32 %v3159, 4294901760
      %3228 = vmatpush1.msra.mxu0 %v3227
      %v3229 = vand.u32 %v3158, 4294901760
      %3230 = vmatprep.subr.mxu0 %v3229
      %v3231 = vand.u32 %v3157, 4294901760
      %3232 = vmatpush1.msra.mxu0 %v3231
      %v3233 = vand.u32 %v3156, 4294901760
      %3234 = vmatprep.subr.mxu0 %v3233
      %v3235 = vand.u32 %v3155, 4294901760
      %3236 = vmatpush1.msra.mxu0 %v3235
      %v3237 = vand.u32 %v3154, 4294901760
      %3238 = vmatprep.subr.mxu0 %v3237
      %v3239 = vand.u32 %v3153, 4294901760
      %3240 = vmatpush1.msra.mxu0 %v3239
      %3241 = vmatprep.subr.mxu0 0.0
      %3242 = vmatpush2.msra.mxu0 0.0
      %3243 = vmatprep.subr.mxu0 0.0
      %3244 = vmatpush2.msra.mxu0 0.0
      %3245 = vmatprep.subr.mxu0 0.0
      %3246 = vmatpush2.msra.mxu0 0.0
      %3247 = vmatprep.subr.mxu0 0.0
      %3248 = vmatpush2.msra.mxu0 0.0
      %3249 = vmatprep.subr.mxu0 0.0
      %3250 = vmatpush2.msra.mxu0 0.0
      %3251 = vmatprep.subr.mxu0 0.0
      %3252 = vmatpush2.msra.mxu0 0.0
      %3253 = vmatprep.subr.mxu0 0.0
      %3254 = vmatpush2.msra.mxu0 0.0
      %3255 = vmatprep.subr.mxu0 0.0
      %3256 = vmatpush2.msra.mxu0 0.0
      %3257 = vmatprep.subr.mxu0 0.0
      %3258 = vmatpush2.msra.mxu0 0.0
      %3259 = vmatprep.subr.mxu0 0.0
      %3260 = vmatpush2.msra.mxu0 0.0
      %3261 = vmatprep.subr.mxu0 0.0
      %3262 = vmatpush2.msra.mxu0 0.0
      %3263 = vmatprep.subr.mxu0 0.0
      %3264 = vmatpush2.msra.mxu0 0.0
      %3265 = vmatprep.subr.mxu0 0.0
      %3266 = vmatpush2.msra.mxu0 0.0
      %3267 = vmatprep.subr.mxu0 0.0
      %3268 = vmatpush2.msra.mxu0 0.0
      %3269 = vmatprep.subr.mxu0 0.0
      %3270 = vmatpush2.msra.mxu0 0.0
      %3271 = vmatprep.subr.mxu0 0.0
      %3272 = vmatpush2.msra.mxu0 0.0
      %3273 = vmatprep.mubr.f32.mxu0 0.0
      %v3274 = vand.u32 %v3190, 4294901760
      %v3275 = vsub.f32 %v3190, %v3274
      %v3276 = vand.u32 %v3275, 4294901760
      %v3277 = vsub.f32 %v3275, %v3276
      %v3278 = vand.u32 %v3277, 4294901760
      %3279 = vmatmul.mubr.f32.gmra.mxu0 %v3278
      %v3280 = vpop.f32.mrf.mxu0
      %v3281 = vadd.f32 %v3172, %v3280
      %v3282 = vpop.f32.mrf.mxu0
      %v3283 = vadd.f32 %v3172, %v3282
      %3284 = vmatprep.mubr.f32.mxu0 0.0
      %v3285 = vand.u32 %v3193, 4294901760
      %v3286 = vsub.f32 %v3193, %v3285
      %v3287 = vand.u32 %v3286, 4294901760
      %v3288 = vsub.f32 %v3286, %v3287
      %v3289 = vand.u32 %v3288, 4294901760
      %3290 = vmatmul.mubr.f32.gmra.mxu0 %v3289
      %v3291 = vpop.f32.mrf.mxu0
      %v3292 = vadd.f32 %v3177, %v3291
      %v3293 = vpop.f32.mrf.mxu0
      %v3294 = vadd.f32 %v3177, %v3293
      %3295 = vmatprep.mubr.f32.mxu0 0.0
      %v3296 = vand.u32 %v3196, 4294901760
      %v3297 = vsub.f32 %v3196, %v3296
      %v3298 = vand.u32 %v3297, 4294901760
      %v3299 = vsub.f32 %v3297, %v3298
      %v3300 = vand.u32 %v3299, 4294901760
      %3301 = vmatmul.mubr.f32.gmra.mxu0 %v3300
      %v3302 = vpop.f32.mrf.mxu0
      %v3303 = vadd.f32 %v3182, %v3302
      %v3304 = vpop.f32.mrf.mxu0
      %v3305 = vadd.f32 %v3182, %v3304
      %3306 = vmatprep.mubr.f32.mxu0 0.0
      %v3307 = vand.u32 %v3199, 4294901760
      %v3308 = vsub.f32 %v3199, %v3307
      %v3309 = vand.u32 %v3308, 4294901760
      %v3310 = vsub.f32 %v3308, %v3309
      %v3311 = vand.u32 %v3310, 4294901760
      %3312 = vmatmul.mubr.f32.gmra.mxu0 %v3311
      %v3313 = vpop.f32.mrf.mxu0
      %v3314 = vadd.f32 %v3187, %v3313
      %v3315 = vpop.f32.mrf.mxu0
      %v3316 = vadd.f32 %v3187, %v3315
      %3317 = vdwg.mxu0
      %3318 = vmatprep.subr.mxu0 0.0
      %3319 = vmatpush1.msra.mxu0 0.0
      %3320 = vmatprep.subr.mxu0 0.0
      %3321 = vmatpush1.msra.mxu0 0.0
      %3322 = vmatprep.subr.mxu0 0.0
      %3323 = vmatpush1.msra.mxu0 0.0
      %3324 = vmatprep.subr.mxu0 0.0
      %3325 = vmatpush1.msra.mxu0 0.0
      %3326 = vmatprep.subr.mxu0 0.0
      %3327 = vmatpush1.msra.mxu0 0.0
      %3328 = vmatprep.subr.mxu0 0.0
      %3329 = vmatpush1.msra.mxu0 0.0
      %3330 = vmatprep.subr.mxu0 0.0
      %3331 = vmatpush1.msra.mxu0 0.0
      %3332 = vmatprep.subr.mxu0 0.0
      %3333 = vmatpush1.msra.mxu0 0.0
      %3334 = vmatprep.subr.mxu0 0.0
      %3335 = vmatpush1.msra.mxu0 0.0
      %3336 = vmatprep.subr.mxu0 0.0
      %3337 = vmatpush1.msra.mxu0 0.0
      %3338 = vmatprep.subr.mxu0 0.0
      %3339 = vmatpush1.msra.mxu0 0.0
      %3340 = vmatprep.subr.mxu0 0.0
      %3341 = vmatpush1.msra.mxu0 0.0
      %v3342 = vand.u32 %v3160, 4294901760
      %v3343 = vsub.f32 %v3160, %v3342
      %v3344 = vand.u32 %v3343, 4294901760
      %v3345 = vsub.f32 %v3343, %v3344
      %v3346 = vand.u32 %v3345, 4294901760
      %3347 = vmatprep.subr.mxu0 %v3346
      %v3348 = vand.u32 %v3159, 4294901760
      %v3349 = vsub.f32 %v3159, %v3348
      %v3350 = vand.u32 %v3349, 4294901760
      %v3351 = vsub.f32 %v3349, %v3350
      %v3352 = vand.u32 %v3351, 4294901760
      %3353 = vmatpush1.msra.mxu0 %v3352
      %v3354 = vand.u32 %v3158, 4294901760
      %v3355 = vsub.f32 %v3158, %v3354
      %v3356 = vand.u32 %v3355, 4294901760
      %v3357 = vsub.f32 %v3355, %v3356
      %v3358 = vand.u32 %v3357, 4294901760
      %3359 = vmatprep.subr.mxu0 %v3358
      %v3360 = vand.u32 %v3157, 4294901760
      %v3361 = vsub.f32 %v3157, %v3360
      %v3362 = vand.u32 %v3361, 4294901760
      %v3363 = vsub.f32 %v3361, %v3362
      %v3364 = vand.u32 %v3363, 4294901760
      %3365 = vmatpush1.msra.mxu0 %v3364
      %v3366 = vand.u32 %v3156, 4294901760
      %v3367 = vsub.f32 %v3156, %v3366
      %v3368 = vand.u32 %v3367, 4294901760
      %v3369 = vsub.f32 %v3367, %v3368
      %v3370 = vand.u32 %v3369, 4294901760
      %3371 = vmatprep.subr.mxu0 %v3370
      %v3372 = vand.u32 %v3155, 4294901760
      %v3373 = vsub.f32 %v3155, %v3372
      %v3374 = vand.u32 %v3373, 4294901760
      %v3375 = vsub.f32 %v3373, %v3374
      %v3376 = vand.u32 %v3375, 4294901760
      %3377 = vmatpush1.msra.mxu0 %v3376
      %v3378 = vand.u32 %v3154, 4294901760
      %v3379 = vsub.f32 %v3154, %v3378
      %v3380 = vand.u32 %v3379, 4294901760
      %v3381 = vsub.f32 %v3379, %v3380
      %v3382 = vand.u32 %v3381, 4294901760
      %3383 = vmatprep.subr.mxu0 %v3382
      %v3384 = vand.u32 %v3153, 4294901760
      %v3385 = vsub.f32 %v3153, %v3384
      %v3386 = vand.u32 %v3385, 4294901760
      %v3387 = vsub.f32 %v3385, %v3386
      %v3388 = vand.u32 %v3387, 4294901760
      %3389 = vmatpush1.msra.mxu0 %v3388
      %3390 = vmatprep.subr.mxu0 0.0
      %3391 = vmatpush2.msra.mxu0 0.0
      %3392 = vmatprep.subr.mxu0 0.0
      %3393 = vmatpush2.msra.mxu0 0.0
      %3394 = vmatprep.subr.mxu0 0.0
      %3395 = vmatpush2.msra.mxu0 0.0
      %3396 = vmatprep.subr.mxu0 0.0
      %3397 = vmatpush2.msra.mxu0 0.0
      %3398 = vmatprep.subr.mxu0 0.0
      %3399 = vmatpush2.msra.mxu0 0.0
      %3400 = vmatprep.subr.mxu0 0.0
      %3401 = vmatpush2.msra.mxu0 0.0
      %3402 = vmatprep.subr.mxu0 0.0
      %3403 = vmatpush2.msra.mxu0 0.0
      %3404 = vmatprep.subr.mxu0 0.0
      %3405 = vmatpush2.msra.mxu0 0.0
      %3406 = vmatprep.subr.mxu0 0.0
      %3407 = vmatpush2.msra.mxu0 0.0
      %3408 = vmatprep.subr.mxu0 0.0
      %3409 = vmatpush2.msra.mxu0 0.0
      %3410 = vmatprep.subr.mxu0 0.0
      %3411 = vmatpush2.msra.mxu0 0.0
      %3412 = vmatprep.subr.mxu0 0.0
      %3413 = vmatpush2.msra.mxu0 0.0
      %3414 = vmatprep.subr.mxu0 0.0
      %3415 = vmatpush2.msra.mxu0 0.0
      %3416 = vmatprep.subr.mxu0 0.0
      %3417 = vmatpush2.msra.mxu0 0.0
      %3418 = vmatprep.subr.mxu0 0.0
      %3419 = vmatpush2.msra.mxu0 0.0
      %3420 = vmatprep.subr.mxu0 0.0
      %3421 = vmatpush2.msra.mxu0 0.0
      %3422 = vmatprep.mubr.f32.mxu0 0.0
      %v3423 = vand.u32 %v3190, 4294901760
      %3424 = vmatmul.mubr.f32.gmra.mxu0 %v3423
      %v3425 = vpop.f32.mrf.mxu0
      %v3426 = vadd.f32 %v3281, %v3425
      %v3427 = vpop.f32.mrf.mxu0
      %v3428 = vadd.f32 %v3283, %v3427
      %3429 = vmatprep.mubr.f32.mxu0 0.0
      %v3430 = vand.u32 %v3193, 4294901760
      %3431 = vmatmul.mubr.f32.gmra.mxu0 %v3430
      %v3432 = vpop.f32.mrf.mxu0
      %v3433 = vadd.f32 %v3292, %v3432
      %v3434 = vpop.f32.mrf.mxu0
      %v3435 = vadd.f32 %v3294, %v3434
      %3436 = vmatprep.mubr.f32.mxu0 0.0
      %v3437 = vand.u32 %v3196, 4294901760
      %3438 = vmatmul.mubr.f32.gmra.mxu0 %v3437
      %v3439 = vpop.f32.mrf.mxu0
      %v3440 = vadd.f32 %v3303, %v3439
      %v3441 = vpop.f32.mrf.mxu0
      %v3442 = vadd.f32 %v3305, %v3441
      %3443 = vmatprep.mubr.f32.mxu0 0.0
      %v3444 = vand.u32 %v3199, 4294901760
      %3445 = vmatmul.mubr.f32.gmra.mxu0 %v3444
      %v3446 = vpop.f32.mrf.mxu0
      %v3447 = vadd.f32 %v3314, %v3446
      %v3448 = vpop.f32.mrf.mxu0
      %v3449 = vadd.f32 %v3316, %v3448
      %3450 = vdwg.mxu0
      %3451 = vmatprep.subr.mxu0 0.0
      %3452 = vmatpush1.msra.mxu0 0.0
      %3453 = vmatprep.subr.mxu0 0.0
      %3454 = vmatpush1.msra.mxu0 0.0
      %3455 = vmatprep.subr.mxu0 0.0
      %3456 = vmatpush1.msra.mxu0 0.0
      %3457 = vmatprep.subr.mxu0 0.0
      %3458 = vmatpush1.msra.mxu0 0.0
      %3459 = vmatprep.subr.mxu0 0.0
      %3460 = vmatpush1.msra.mxu0 0.0
      %3461 = vmatprep.subr.mxu0 0.0
      %3462 = vmatpush1.msra.mxu0 0.0
      %3463 = vmatprep.subr.mxu0 0.0
      %3464 = vmatpush1.msra.mxu0 0.0
      %3465 = vmatprep.subr.mxu0 0.0
      %3466 = vmatpush1.msra.mxu0 0.0
      %3467 = vmatprep.subr.mxu0 0.0
      %3468 = vmatpush1.msra.mxu0 0.0
      %3469 = vmatprep.subr.mxu0 0.0
      %3470 = vmatpush1.msra.mxu0 0.0
      %3471 = vmatprep.subr.mxu0 0.0
      %3472 = vmatpush1.msra.mxu0 0.0
      %3473 = vmatprep.subr.mxu0 0.0
      %3474 = vmatpush1.msra.mxu0 0.0
      %v3475 = vand.u32 %v3160, 4294901760
      %v3476 = vsub.f32 %v3160, %v3475
      %3477 = vmatprep.subr.mxu0 %v3476
      %v3478 = vand.u32 %v3159, 4294901760
      %v3479 = vsub.f32 %v3159, %v3478
      %3480 = vmatpush1.msra.mxu0 %v3479
      %v3481 = vand.u32 %v3158, 4294901760
      %v3482 = vsub.f32 %v3158, %v3481
      %3483 = vmatprep.subr.mxu0 %v3482
      %v3484 = vand.u32 %v3157, 4294901760
      %v3485 = vsub.f32 %v3157, %v3484
      %3486 = vmatpush1.msra.mxu0 %v3485
      %v3487 = vand.u32 %v3156, 4294901760
      %v3488 = vsub.f32 %v3156, %v3487
      %3489 = vmatprep.subr.mxu0 %v3488
      %v3490 = vand.u32 %v3155, 4294901760
      %v3491 = vsub.f32 %v3155, %v3490
      %3492 = vmatpush1.msra.mxu0 %v3491
      %v3493 = vand.u32 %v3154, 4294901760
      %v3494 = vsub.f32 %v3154, %v3493
      %3495 = vmatprep.subr.mxu0 %v3494
      %v3496 = vand.u32 %v3153, 4294901760
      %v3497 = vsub.f32 %v3153, %v3496
      %3498 = vmatpush1.msra.mxu0 %v3497
      %3499 = vmatprep.subr.mxu0 0.0
      %3500 = vmatpush2.msra.mxu0 0.0
      %3501 = vmatprep.subr.mxu0 0.0
      %3502 = vmatpush2.msra.mxu0 0.0
      %3503 = vmatprep.subr.mxu0 0.0
      %3504 = vmatpush2.msra.mxu0 0.0
      %3505 = vmatprep.subr.mxu0 0.0
      %3506 = vmatpush2.msra.mxu0 0.0
      %3507 = vmatprep.subr.mxu0 0.0
      %3508 = vmatpush2.msra.mxu0 0.0
      %3509 = vmatprep.subr.mxu0 0.0
      %3510 = vmatpush2.msra.mxu0 0.0
      %3511 = vmatprep.subr.mxu0 0.0
      %3512 = vmatpush2.msra.mxu0 0.0
      %3513 = vmatprep.subr.mxu0 0.0
      %3514 = vmatpush2.msra.mxu0 0.0
      %3515 = vmatprep.subr.mxu0 0.0
      %3516 = vmatpush2.msra.mxu0 0.0
      %3517 = vmatprep.subr.mxu0 0.0
      %3518 = vmatpush2.msra.mxu0 0.0
      %3519 = vmatprep.subr.mxu0 0.0
      %3520 = vmatpush2.msra.mxu0 0.0
      %3521 = vmatprep.subr.mxu0 0.0
      %3522 = vmatpush2.msra.mxu0 0.0
      %3523 = vmatprep.subr.mxu0 0.0
      %3524 = vmatpush2.msra.mxu0 0.0
      %3525 = vmatprep.subr.mxu0 0.0
      %3526 = vmatpush2.msra.mxu0 0.0
      %3527 = vmatprep.subr.mxu0 0.0
      %3528 = vmatpush2.msra.mxu0 0.0
      %3529 = vmatprep.subr.mxu0 0.0
      %3530 = vmatpush2.msra.mxu0 0.0
      %3531 = vmatprep.mubr.f32.mxu0 0.0
      %v3532 = vand.u32 %v3190, 4294901760
      %v3533 = vsub.f32 %v3190, %v3532
      %3534 = vmatmul.mubr.f32.gmra.mxu0 %v3533
      %v3535 = vpop.f32.mrf.mxu0
      %v3536 = vadd.f32 %v3426, %v3535
      %v3537 = vpop.f32.mrf.mxu0
      %v3538 = vadd.f32 %v3428, %v3537
      %3539 = vmatprep.mubr.f32.mxu0 0.0
      %v3540 = vand.u32 %v3193, 4294901760
      %v3541 = vsub.f32 %v3193, %v3540
      %3542 = vmatmul.mubr.f32.gmra.mxu0 %v3541
      %v3543 = vpop.f32.mrf.mxu0
      %v3544 = vadd.f32 %v3433, %v3543
      %v3545 = vpop.f32.mrf.mxu0
      %v3546 = vadd.f32 %v3435, %v3545
      %3547 = vmatprep.mubr.f32.mxu0 0.0
      %v3548 = vand.u32 %v3196, 4294901760
      %v3549 = vsub.f32 %v3196, %v3548
      %3550 = vmatmul.mubr.f32.gmra.mxu0 %v3549
      %v3551 = vpop.f32.mrf.mxu0
      %v3552 = vadd.f32 %v3440, %v3551
      %v3553 = vpop.f32.mrf.mxu0
      %v3554 = vadd.f32 %v3442, %v3553
      %3555 = vmatprep.mubr.f32.mxu0 0.0
      %v3556 = vand.u32 %v3199, 4294901760
      %v3557 = vsub.f32 %v3199, %v3556
      %3558 = vmatmul.mubr.f32.gmra.mxu0 %v3557
      %v3559 = vpop.f32.mrf.mxu0
      %v3560 = vadd.f32 %v3447, %v3559
      %v3561 = vpop.f32.mrf.mxu0
      %v3562 = vadd.f32 %v3449, %v3561
      %3563 = vdwg.mxu0
      %3564 = vmatprep.subr.mxu0 0.0
      %3565 = vmatpush1.msra.mxu0 0.0
      %3566 = vmatprep.subr.mxu0 0.0
      %3567 = vmatpush1.msra.mxu0 0.0
      %3568 = vmatprep.subr.mxu0 0.0
      %3569 = vmatpush1.msra.mxu0 0.0
      %3570 = vmatprep.subr.mxu0 0.0
      %3571 = vmatpush1.msra.mxu0 0.0
      %3572 = vmatprep.subr.mxu0 0.0
      %3573 = vmatpush1.msra.mxu0 0.0
      %3574 = vmatprep.subr.mxu0 0.0
      %3575 = vmatpush1.msra.mxu0 0.0
      %3576 = vmatprep.subr.mxu0 0.0
      %3577 = vmatpush1.msra.mxu0 0.0
      %3578 = vmatprep.subr.mxu0 0.0
      %3579 = vmatpush1.msra.mxu0 0.0
      %3580 = vmatprep.subr.mxu0 0.0
      %3581 = vmatpush1.msra.mxu0 0.0
      %3582 = vmatprep.subr.mxu0 0.0
      %3583 = vmatpush1.msra.mxu0 0.0
      %3584 = vmatprep.subr.mxu0 0.0
      %3585 = vmatpush1.msra.mxu0 0.0
      %3586 = vmatprep.subr.mxu0 0.0
      %3587 = vmatpush1.msra.mxu0 0.0
      %v3588 = vand.u32 %v3160, 4294901760
      %3589 = vmatprep.subr.mxu0 %v3588
      %v3590 = vand.u32 %v3159, 4294901760
      %3591 = vmatpush1.msra.mxu0 %v3590
      %v3592 = vand.u32 %v3158, 4294901760
      %3593 = vmatprep.subr.mxu0 %v3592
      %v3594 = vand.u32 %v3157, 4294901760
      %3595 = vmatpush1.msra.mxu0 %v3594
      %v3596 = vand.u32 %v3156, 4294901760
      %3597 = vmatprep.subr.mxu0 %v3596
      %v3598 = vand.u32 %v3155, 4294901760
      %3599 = vmatpush1.msra.mxu0 %v3598
      %v3600 = vand.u32 %v3154, 4294901760
      %3601 = vmatprep.subr.mxu0 %v3600
      %v3602 = vand.u32 %v3153, 4294901760
      %3603 = vmatpush1.msra.mxu0 %v3602
      %3604 = vmatprep.subr.mxu0 0.0
      %3605 = vmatpush2.msra.mxu0 0.0
      %3606 = vmatprep.subr.mxu0 0.0
      %3607 = vmatpush2.msra.mxu0 0.0
      %3608 = vmatprep.subr.mxu0 0.0
      %3609 = vmatpush2.msra.mxu0 0.0
      %3610 = vmatprep.subr.mxu0 0.0
      %3611 = vmatpush2.msra.mxu0 0.0
      %3612 = vmatprep.subr.mxu0 0.0
      %3613 = vmatpush2.msra.mxu0 0.0
      %3614 = vmatprep.subr.mxu0 0.0
      %3615 = vmatpush2.msra.mxu0 0.0
      %3616 = vmatprep.subr.mxu0 0.0
      %3617 = vmatpush2.msra.mxu0 0.0
      %3618 = vmatprep.subr.mxu0 0.0
      %3619 = vmatpush2.msra.mxu0 0.0
      %3620 = vmatprep.subr.mxu0 0.0
      %3621 = vmatpush2.msra.mxu0 0.0
      %3622 = vmatprep.subr.mxu0 0.0
      %3623 = vmatpush2.msra.mxu0 0.0
      %3624 = vmatprep.subr.mxu0 0.0
      %3625 = vmatpush2.msra.mxu0 0.0
      %3626 = vmatprep.subr.mxu0 0.0
      %3627 = vmatpush2.msra.mxu0 0.0
      %3628 = vmatprep.subr.mxu0 0.0
      %3629 = vmatpush2.msra.mxu0 0.0
      %3630 = vmatprep.subr.mxu0 0.0
      %3631 = vmatpush2.msra.mxu0 0.0
      %3632 = vmatprep.subr.mxu0 0.0
      %3633 = vmatpush2.msra.mxu0 0.0
      %3634 = vmatprep.subr.mxu0 0.0
      %3635 = vmatpush2.msra.mxu0 0.0
      %3636 = vmatprep.mubr.f32.mxu0 0.0
      %v3637 = vand.u32 %v3190, 4294901760
      %v3638 = vsub.f32 %v3190, %v3637
      %v3639 = vand.u32 %v3638, 4294901760
      %3640 = vmatmul.mubr.f32.gmra.mxu0 %v3639
      %v3641 = vpop.f32.mrf.mxu0
      %v3642 = vadd.f32 %v3536, %v3641
      %v3643 = vpop.f32.mrf.mxu0
      %v3644 = vadd.f32 %v3538, %v3643
      %3645 = vmatprep.mubr.f32.mxu0 0.0
      %v3646 = vand.u32 %v3193, 4294901760
      %v3647 = vsub.f32 %v3193, %v3646
      %v3648 = vand.u32 %v3647, 4294901760
      %3649 = vmatmul.mubr.f32.gmra.mxu0 %v3648
      %v3650 = vpop.f32.mrf.mxu0
      %v3651 = vadd.f32 %v3544, %v3650
      %v3652 = vpop.f32.mrf.mxu0
      %v3653 = vadd.f32 %v3546, %v3652
      %3654 = vmatprep.mubr.f32.mxu0 0.0
      %v3655 = vand.u32 %v3196, 4294901760
      %v3656 = vsub.f32 %v3196, %v3655
      %v3657 = vand.u32 %v3656, 4294901760
      %3658 = vmatmul.mubr.f32.gmra.mxu0 %v3657
      %v3659 = vpop.f32.mrf.mxu0
      %v3660 = vadd.f32 %v3552, %v3659
      %v3661 = vpop.f32.mrf.mxu0
      %v3662 = vadd.f32 %v3554, %v3661
      %3663 = vmatprep.mubr.f32.mxu0 0.0
      %v3664 = vand.u32 %v3199, 4294901760
      %v3665 = vsub.f32 %v3199, %v3664
      %v3666 = vand.u32 %v3665, 4294901760
      %3667 = vmatmul.mubr.f32.gmra.mxu0 %v3666
      %v3668 = vpop.f32.mrf.mxu0
      %v3669 = vadd.f32 %v3560, %v3668
      %v3670 = vpop.f32.mrf.mxu0
      %v3671 = vadd.f32 %v3562, %v3670
      %3672 = vdwg.mxu0
      %3673 = vmatprep.subr.mxu0 0.0
      %3674 = vmatpush1.msra.mxu0 0.0
      %3675 = vmatprep.subr.mxu0 0.0
      %3676 = vmatpush1.msra.mxu0 0.0
      %3677 = vmatprep.subr.mxu0 0.0
      %3678 = vmatpush1.msra.mxu0 0.0
      %3679 = vmatprep.subr.mxu0 0.0
      %3680 = vmatpush1.msra.mxu0 0.0
      %3681 = vmatprep.subr.mxu0 0.0
      %3682 = vmatpush1.msra.mxu0 0.0
      %3683 = vmatprep.subr.mxu0 0.0
      %3684 = vmatpush1.msra.mxu0 0.0
      %3685 = vmatprep.subr.mxu0 0.0
      %3686 = vmatpush1.msra.mxu0 0.0
      %3687 = vmatprep.subr.mxu0 0.0
      %3688 = vmatpush1.msra.mxu0 0.0
      %3689 = vmatprep.subr.mxu0 0.0
      %3690 = vmatpush1.msra.mxu0 0.0
      %3691 = vmatprep.subr.mxu0 0.0
      %3692 = vmatpush1.msra.mxu0 0.0
      %3693 = vmatprep.subr.mxu0 0.0
      %3694 = vmatpush1.msra.mxu0 0.0
      %3695 = vmatprep.subr.mxu0 0.0
      %3696 = vmatpush1.msra.mxu0 0.0
      %v3697 = vand.u32 %v3160, 4294901760
      %v3698 = vsub.f32 %v3160, %v3697
      %v3699 = vand.u32 %v3698, 4294901760
      %3700 = vmatprep.subr.mxu0 %v3699
      %v3701 = vand.u32 %v3159, 4294901760
      %v3702 = vsub.f32 %v3159, %v3701
      %v3703 = vand.u32 %v3702, 4294901760
      %3704 = vmatpush1.msra.mxu0 %v3703
      %v3705 = vand.u32 %v3158, 4294901760
      %v3706 = vsub.f32 %v3158, %v3705
      %v3707 = vand.u32 %v3706, 4294901760
      %3708 = vmatprep.subr.mxu0 %v3707
      %v3709 = vand.u32 %v3157, 4294901760
      %v3710 = vsub.f32 %v3157, %v3709
      %v3711 = vand.u32 %v3710, 4294901760
      %3712 = vmatpush1.msra.mxu0 %v3711
      %v3713 = vand.u32 %v3156, 4294901760
      %v3714 = vsub.f32 %v3156, %v3713
      %v3715 = vand.u32 %v3714, 4294901760
      %3716 = vmatprep.subr.mxu0 %v3715
      %v3717 = vand.u32 %v3155, 4294901760
      %v3718 = vsub.f32 %v3155, %v3717
      %v3719 = vand.u32 %v3718, 4294901760
      %3720 = vmatpush1.msra.mxu0 %v3719
      %v3721 = vand.u32 %v3154, 4294901760
      %v3722 = vsub.f32 %v3154, %v3721
      %v3723 = vand.u32 %v3722, 4294901760
      %3724 = vmatprep.subr.mxu0 %v3723
      %v3725 = vand.u32 %v3153, 4294901760
      %v3726 = vsub.f32 %v3153, %v3725
      %v3727 = vand.u32 %v3726, 4294901760
      %3728 = vmatpush1.msra.mxu0 %v3727
      %3729 = vmatprep.subr.mxu0 0.0
      %3730 = vmatpush2.msra.mxu0 0.0
      %3731 = vmatprep.subr.mxu0 0.0
      %3732 = vmatpush2.msra.mxu0 0.0
      %3733 = vmatprep.subr.mxu0 0.0
      %3734 = vmatpush2.msra.mxu0 0.0
      %3735 = vmatprep.subr.mxu0 0.0
      %3736 = vmatpush2.msra.mxu0 0.0
      %3737 = vmatprep.subr.mxu0 0.0
      %3738 = vmatpush2.msra.mxu0 0.0
      %3739 = vmatprep.subr.mxu0 0.0
      %3740 = vmatpush2.msra.mxu0 0.0
      %3741 = vmatprep.subr.mxu0 0.0
      %3742 = vmatpush2.msra.mxu0 0.0
      %3743 = vmatprep.subr.mxu0 0.0
      %3744 = vmatpush2.msra.mxu0 0.0
      %3745 = vmatprep.subr.mxu0 0.0
      %3746 = vmatpush2.msra.mxu0 0.0
      %3747 = vmatprep.subr.mxu0 0.0
      %3748 = vmatpush2.msra.mxu0 0.0
      %3749 = vmatprep.subr.mxu0 0.0
      %3750 = vmatpush2.msra.mxu0 0.0
      %3751 = vmatprep.subr.mxu0 0.0
      %3752 = vmatpush2.msra.mxu0 0.0
      %3753 = vmatprep.subr.mxu0 0.0
      %3754 = vmatpush2.msra.mxu0 0.0
      %3755 = vmatprep.subr.mxu0 0.0
      %3756 = vmatpush2.msra.mxu0 0.0
      %3757 = vmatprep.subr.mxu0 0.0
      %3758 = vmatpush2.msra.mxu0 0.0
      %3759 = vmatprep.subr.mxu0 0.0
      %3760 = vmatpush2.msra.mxu0 0.0
      %3761 = vmatprep.mubr.f32.mxu0 0.0
      %v3762 = vand.u32 %v3190, 4294901760
      %3763 = vmatmul.mubr.f32.gmra.mxu0 %v3762
      %v3764 = vpop.f32.mrf.mxu0
      %v3765 = vadd.f32 %v3642, %v3764
      %v3766 = vpop.f32.mrf.mxu0
      %v3767 = vadd.f32 %v3644, %v3766
      %3768 = vmatprep.mubr.f32.mxu0 0.0
      %v3769 = vand.u32 %v3193, 4294901760
      %3770 = vmatmul.mubr.f32.gmra.mxu0 %v3769
      %v3771 = vpop.f32.mrf.mxu0
      %v3772 = vadd.f32 %v3651, %v3771
      %v3773 = vpop.f32.mrf.mxu0
      %v3774 = vadd.f32 %v3653, %v3773
      %3775 = vmatprep.mubr.f32.mxu0 0.0
      %v3776 = vand.u32 %v3196, 4294901760
      %3777 = vmatmul.mubr.f32.gmra.mxu0 %v3776
      %v3778 = vpop.f32.mrf.mxu0
      %v3779 = vadd.f32 %v3660, %v3778
      %v3780 = vpop.f32.mrf.mxu0
      %v3781 = vadd.f32 %v3662, %v3780
      %3782 = vmatprep.mubr.f32.mxu0 0.0
      %v3783 = vand.u32 %v3199, 4294901760
      %3784 = vmatmul.mubr.f32.gmra.mxu0 %v3783
      %v3785 = vpop.f32.mrf.mxu0
      %v3786 = vadd.f32 %v3669, %v3785
      %v3787 = vpop.f32.mrf.mxu0
      %v3788 = vadd.f32 %v3671, %v3787
      %3789 = vdwg.mxu0
      %3790 = vmatprep.subr.mxu0 0.0
      %3791 = vmatpush1.msra.mxu0 0.0
      %3792 = vmatprep.subr.mxu0 0.0
      %3793 = vmatpush1.msra.mxu0 0.0
      %3794 = vmatprep.subr.mxu0 0.0
      %3795 = vmatpush1.msra.mxu0 0.0
      %3796 = vmatprep.subr.mxu0 0.0
      %3797 = vmatpush1.msra.mxu0 0.0
      %3798 = vmatprep.subr.mxu0 0.0
      %3799 = vmatpush1.msra.mxu0 0.0
      %3800 = vmatprep.subr.mxu0 0.0
      %3801 = vmatpush1.msra.mxu0 0.0
      %3802 = vmatprep.subr.mxu0 0.0
      %3803 = vmatpush1.msra.mxu0 0.0
      %3804 = vmatprep.subr.mxu0 0.0
      %3805 = vmatpush1.msra.mxu0 0.0
      %3806 = vmatprep.subr.mxu0 0.0
      %3807 = vmatpush1.msra.mxu0 0.0
      %3808 = vmatprep.subr.mxu0 0.0
      %3809 = vmatpush1.msra.mxu0 0.0
      %3810 = vmatprep.subr.mxu0 0.0
      %3811 = vmatpush1.msra.mxu0 0.0
      %3812 = vmatprep.subr.mxu0 0.0
      %3813 = vmatpush1.msra.mxu0 0.0
      %v3814 = vand.u32 %v3160, 4294901760
      %3815 = vmatprep.subr.mxu0 %v3814
      %v3816 = vand.u32 %v3159, 4294901760
      %3817 = vmatpush1.msra.mxu0 %v3816
      %v3818 = vand.u32 %v3158, 4294901760
      %3819 = vmatprep.subr.mxu0 %v3818
      %v3820 = vand.u32 %v3157, 4294901760
      %3821 = vmatpush1.msra.mxu0 %v3820
      %v3822 = vand.u32 %v3156, 4294901760
      %3823 = vmatprep.subr.mxu0 %v3822
      %v3824 = vand.u32 %v3155, 4294901760
      %3825 = vmatpush1.msra.mxu0 %v3824
      %v3826 = vand.u32 %v3154, 4294901760
      %3827 = vmatprep.subr.mxu0 %v3826
      %v3828 = vand.u32 %v3153, 4294901760
      %3829 = vmatpush1.msra.mxu0 %v3828
      %3830 = vmatprep.subr.mxu0 0.0
      %3831 = vmatpush2.msra.mxu0 0.0
      %3832 = vmatprep.subr.mxu0 0.0
      %3833 = vmatpush2.msra.mxu0 0.0
      %3834 = vmatprep.subr.mxu0 0.0
      %3835 = vmatpush2.msra.mxu0 0.0
      %3836 = vmatprep.subr.mxu0 0.0
      %3837 = vmatpush2.msra.mxu0 0.0
      %3838 = vmatprep.subr.mxu0 0.0
      %3839 = vmatpush2.msra.mxu0 0.0
      %3840 = vmatprep.subr.mxu0 0.0
      %3841 = vmatpush2.msra.mxu0 0.0
      %3842 = vmatprep.subr.mxu0 0.0
      %3843 = vmatpush2.msra.mxu0 0.0
      %3844 = vmatprep.subr.mxu0 0.0
      %3845 = vmatpush2.msra.mxu0 0.0
      %3846 = vmatprep.subr.mxu0 0.0
      %3847 = vmatpush2.msra.mxu0 0.0
      %3848 = vmatprep.subr.mxu0 0.0
      %3849 = vmatpush2.msra.mxu0 0.0
      %3850 = vmatprep.subr.mxu0 0.0
      %3851 = vmatpush2.msra.mxu0 0.0
      %3852 = vmatprep.subr.mxu0 0.0
      %3853 = vmatpush2.msra.mxu0 0.0
      %3854 = vmatprep.subr.mxu0 0.0
      %3855 = vmatpush2.msra.mxu0 0.0
      %3856 = vmatprep.subr.mxu0 0.0
      %3857 = vmatpush2.msra.mxu0 0.0
      %3858 = vmatprep.subr.mxu0 0.0
      %3859 = vmatpush2.msra.mxu0 0.0
      %3860 = vmatprep.subr.mxu0 0.0
      %3861 = vmatpush2.msra.mxu0 0.0
      %3862 = vmatprep.mubr.f32.mxu0 0.0
      %v3863 = vand.u32 %v3190, 4294901760
      %3864 = vmatmul.mubr.f32.gmra.mxu0 %v3863
      %v3865 = vpop.f32.mrf.mxu0
      %v3866 = vadd.f32 %v3765, %v3865
      %v3867 = vpop.f32.mrf.mxu0
      %v3868 = vadd.f32 %v3767, %v3867
      %3869 = vmatprep.mubr.f32.mxu0 0.0
      %v3870 = vand.u32 %v3193, 4294901760
      %3871 = vmatmul.mubr.f32.gmra.mxu0 %v3870
      %v3872 = vpop.f32.mrf.mxu0
      %v3873 = vadd.f32 %v3772, %v3872
      %v3874 = vpop.f32.mrf.mxu0
      %v3875 = vadd.f32 %v3774, %v3874
      %3876 = vmatprep.mubr.f32.mxu0 0.0
      %v3877 = vand.u32 %v3196, 4294901760
      %3878 = vmatmul.mubr.f32.gmra.mxu0 %v3877
      %v3879 = vpop.f32.mrf.mxu0
      %v3880 = vadd.f32 %v3779, %v3879
      %v3881 = vpop.f32.mrf.mxu0
      %v3882 = vadd.f32 %v3781, %v3881
      %3883 = vmatprep.mubr.f32.mxu0 0.0
      %v3884 = vand.u32 %v3199, 4294901760
      %3885 = vmatmul.mubr.f32.gmra.mxu0 %v3884
      %v3886 = vpop.f32.mrf.mxu0
      %v3887 = vadd.f32 %v3786, %v3886
      %v3888 = vpop.f32.mrf.mxu0
      %v3889 = vadd.f32 %v3788, %v3888
      %3890 = vdwg.mxu0
      %3891 = vxpose.xlu0.b32.start [1/16] %v3866, 128
      %3892 = vxpose.xlu0.b32.cont [2/16] %v3873, 128
      %3893 = vxpose.xlu0.b32.cont [3/16] %v3880, 128
      %3894 = vxpose.xlu0.b32.cont [4/16] %v3887, 128
      %3895 = vxpose.xlu0.b32.cont [5/16] 0.0, 128
      %3896 = vxpose.xlu0.b32.cont [6/16] 0.0, 128
      %3897 = vxpose.xlu0.b32.cont [7/16] 0.0, 128
      %3898 = vxpose.xlu0.b32.cont [8/16] 0.0, 128
      %3899 = vxpose.xlu0.b32.cont [9/16] 0.0, 128
      %3900 = vxpose.xlu0.b32.cont [10/16] 0.0, 128
      %3901 = vxpose.xlu0.b32.cont [11/16] 0.0, 128
      %3902 = vxpose.xlu0.b32.cont [12/16] 0.0, 128
      %3903 = vxpose.xlu0.b32.cont [13/16] 0.0, 128
      %3904 = vxpose.xlu0.b32.cont [14/16] 0.0, 128
      %3905 = vxpose.xlu0.b32.cont [15/16] 0.0, 128
      %3906 = vxpose.xlu0.b32.end [16/16] 0.0, 128
      %v3907 = vpop.trf.xlu0
      %v3908 = vpop.trf.xlu0
      %v3909 = vpop.trf.xlu0
      %v3910 = vpop.trf.xlu0
      %v3911 = vpop.trf.xlu0
      %v3912 = vpop.trf.xlu0
      %v3913 = vpop.trf.xlu0
      %v3914 = vpop.trf.xlu0
      %v3915 = vpop.trf.xlu0
      %v3916 = vpop.trf.xlu0
      %v3917 = vpop.trf.xlu0
      %v3918 = vpop.trf.xlu0
      %v3919 = vpop.trf.xlu0
      %v3920 = vpop.trf.xlu0
      %v3921 = vpop.trf.xlu0
      %v3922 = vpop.trf.xlu0
      %3923 = vxpose.xlu0.b32.start [1/16] %v3868, 128
      %3924 = vxpose.xlu0.b32.cont [2/16] %v3875, 128
      %3925 = vxpose.xlu0.b32.cont [3/16] %v3882, 128
      %3926 = vxpose.xlu0.b32.cont [4/16] %v3889, 128
      %3927 = vxpose.xlu0.b32.cont [5/16] 0.0, 128
      %3928 = vxpose.xlu0.b32.cont [6/16] 0.0, 128
      %3929 = vxpose.xlu0.b32.cont [7/16] 0.0, 128
      %3930 = vxpose.xlu0.b32.cont [8/16] 0.0, 128
      %3931 = vxpose.xlu0.b32.cont [9/16] 0.0, 128
      %3932 = vxpose.xlu0.b32.cont [10/16] 0.0, 128
      %3933 = vxpose.xlu0.b32.cont [11/16] 0.0, 128
      %3934 = vxpose.xlu0.b32.cont [12/16] 0.0, 128
      %3935 = vxpose.xlu0.b32.cont [13/16] 0.0, 128
      %3936 = vxpose.xlu0.b32.cont [14/16] 0.0, 128
      %3937 = vxpose.xlu0.b32.cont [15/16] 0.0, 128
      %3938 = vxpose.xlu0.b32.end [16/16] 0.0, 128
      %v3939 = vpop.trf.xlu0
      %v3940 = vpop.trf.xlu0
      %v3941 = vpop.trf.xlu0
      %v3942 = vpop.trf.xlu0
      %v3943 = vpop.trf.xlu0
      %v3944 = vpop.trf.xlu0
      %v3945 = vpop.trf.xlu0
      %v3946 = vpop.trf.xlu0
      %v3947 = vpop.trf.xlu0
      %v3948 = vpop.trf.xlu0
      %v3949 = vpop.trf.xlu0
      %v3950 = vpop.trf.xlu0
      %v3951 = vpop.trf.xlu0
      %v3952 = vpop.trf.xlu0
      %v3953 = vpop.trf.xlu0
      %v3954 = vpop.trf.xlu0
      %3955 = vst.msk [vmem:[%s359] sm:$0xff] %vm448, %v3907
      %3956 = vst.msk [vmem:[%s359 + $0x8] sm:$0xff] %vm448, %v3908
      %3957 = vst.msk [vmem:[%s359 + $0x10] sm:$0xff] %vm448, %v3909
      %3958 = vst.msk [vmem:[%s359 + $0x18] sm:$0xff] %vm448, %v3910
      %3959 = vst.msk [vmem:[%s359 + $0x20] sm:$0xff] %vm448, %v3911
      %3960 = vst.msk [vmem:[%s359 + $0x28] sm:$0xff] %vm448, %v3912
      %3961 = vst.msk [vmem:[%s359 + $0x30] sm:$0xff] %vm448, %v3913
      %3962 = vst.msk [vmem:[%s359 + $0x38] sm:$0xff] %vm448, %v3914
      %3963 = vst.msk [vmem:[%s359 + $0x40] sm:$0xff] %vm448, %v3915
      %3964 = vst.msk [vmem:[%s359 + $0x48] sm:$0xff] %vm448, %v3916
      %3965 = vst.msk [vmem:[%s359 + $0x50] sm:$0xff] %vm448, %v3917
      %3966 = vst.msk [vmem:[%s359 + $0x58] sm:$0xff] %vm448, %v3918
      %3967 = vst.msk [vmem:[%s359 + $0x60] sm:$0xff] %vm448, %v3919
      %3968 = vst.msk [vmem:[%s359 + $0x68] sm:$0xff] %vm448, %v3920
      %3969 = vst.msk [vmem:[%s359 + $0x70] sm:$0xff] %vm448, %v3921
      %3970 = vst.msk [vmem:[%s359 + $0x78] sm:$0xff] %vm448, %v3922
      %3971 = vst.msk [vmem:[%s359 + $0x80] sm:$0xff] %vm448, %v3939
      %3972 = vst.msk [vmem:[%s359 + $0x88] sm:$0xff] %vm448, %v3940
      %3973 = vst.msk [vmem:[%s359 + $0x90] sm:$0xff] %vm448, %v3941
      %3974 = vst.msk [vmem:[%s359 + $0x98] sm:$0xff] %vm448, %v3942
      %3975 = vst.msk [vmem:[%s359 + $0xa0] sm:$0xff] %vm448, %v3943
      %3976 = vst.msk [vmem:[%s359 + $0xa8] sm:$0xff] %vm448, %v3944
      %3977 = vst.msk [vmem:[%s359 + $0xb0] sm:$0xff] %vm448, %v3945
      %3978 = vst.msk [vmem:[%s359 + $0xb8] sm:$0xff] %vm448, %v3946
      %3979 = vst.msk [vmem:[%s359 + $0xc0] sm:$0xff] %vm448, %v3947
      %3980 = vst.msk [vmem:[%s359 + $0xc8] sm:$0xff] %vm448, %v3948
      %3981 = vst.msk [vmem:[%s359 + $0xd0] sm:$0xff] %vm448, %v3949
      %3982 = vst.msk [vmem:[%s359 + $0xd8] sm:$0xff] %vm448, %v3950
      %3983 = vst.msk [vmem:[%s359 + $0xe0] sm:$0xff] %vm448, %v3951
      %3984 = vst.msk [vmem:[%s359 + $0xe8] sm:$0xff] %vm448, %v3952
      %3985 = vst.msk [vmem:[%s359 + $0xf0] sm:$0xff] %vm448, %v3953
      %3986 = vst.msk [vmem:[%s359 + $0xf8] sm:$0xff] %vm448, %v3954
      %p3987 = scmp.lt.s32.totalorder %s21, 1
      %s3988 = scalar_select %p3987, %s21, 1
      %s3989 = smul.addr %s3988, 32
      %s3990 = smul.addr %s3989, 8
      %s3991 = scalar_lea.vmem %s10, %s3990
      // Predicated region
      $region61: #{tpu_custom_call.1} parent=59 // pred_check
        %p3992 = pneg %p254
      $region62: #{tpu_custom_call.1} parent=59 // pred_check_branch
        %3994 = sbr.rel (%p3992) target = $region64
      $region63: #{tpu_custom_call.1} parent=59 // pred_region
        _
      $region64: #{tpu_custom_call.1} parent=59 // pred_fallthru
        _
    $region60: #{tpu_custom_call.1} parent=5 // pred_fallthru
      _
    %p3995 = scmp.le.s32.totalorder 2, %s16
    // Predicated region
    $region65: #{tpu_custom_call.1} parent=5 // pred_check
      %p3996 = pneg %p3995
    $region66: #{tpu_custom_call.1} parent=5 // pred_check_branch
      %3998 = sbr.rel (%p3996) target = $region68
    $region67: #{tpu_custom_call.1} parent=5 // pred_region
      %s3999 = ssub.s32 %s16, 2
      // Predicated region
      $region69: #{tpu_custom_call.1} parent=67 // pred_check
        %p4000 = pneg %p260
      $region70: #{tpu_custom_call.1} parent=67 // pred_check_branch
        %4002 = sbr.rel (%p4000) target = $region72
      $region71: #{tpu_custom_call.1} parent=67 // pred_region
        %p4003 = scmp.lt.s32.totalorder %s22, 1
        %s4004 = scalar_select %p4003, %s22, 1
        %s4005 = smul.addr %s4004, 32
        %s4006 = smul.addr %s4005, 8
        %s4007 = scalar_lea.vmem %s10, %s4006
      $region72: #{tpu_custom_call.1} parent=67 // pred_fallthru
        _
    $region68: #{tpu_custom_call.1} parent=5 // pred_fallthru
      _
  $region6: #{tpu_custom_call.1} parent=0 // loop_footer
    %s20 = sadd.s32 1, %s16
  $region7: #{tpu_custom_call.1} parent=0 // loop_footer_branch
    %15 = sbr.rel target = $region3
  $region8: #{tpu_custom_call.1} parent=0 // loop_exit
    _

</llo_original>
